<compile_context>
chip_gen: v5e
topology: v5e:2x2
jax: 0.10.0
libtpu: 0.0.40
codegen_flags: <defaults>
</compile_context>

<pallas_src>
import inspect
import math
import functools

import jax
import jax.numpy as jnp
from jax import lax
from jax.experimental import pallas as pl
from jax.experimental.pallas import tpu as pltpu


def transblock_kernel(x_ref,
                      wqkv_ref, bqkv_ref, wo_ref, bo_ref,
                      g1_ref, b1_ref, g2_ref, b2_ref,
                      w1_ref, f1_ref, w2_ref, f2_ref,
                      o_ref,
                      kv_ref,
                      *, n_heads, head_dim, tq, eps=1e-5):
    f32 = jnp.float32
    bf16 = jnp.bfloat16
    D = n_heads * head_dim
    qt = pl.program_id(1)

    def layer_norm(v, g, b):
        # single-pass variance (E[x^2] - mu^2); inputs are zero-ish mean so the
        # precision loss vs the two-pass form is negligible here.
        mu = jnp.mean(v, axis=-1, keepdims=True)
        ms = jnp.mean(v * v, axis=-1, keepdims=True)
        var = jnp.maximum(ms - mu * mu, 0.0)
        return (v - mu) * lax.rsqrt(var + eps) * g + b

    # ---- once per batch element (first query tile): LayerNorm the full
    #      sequence, project K|V with one (S,D)x(D,2D) matmul, cache bf16 in
    #      VMEM scratch; later query tiles of the same batch element reuse it.
    @pl.when(qt == 0)
    def _():
        x_full = x_ref[...].astype(f32)                            # (S, D)
        xn_full = layer_norm(x_full, g1_ref[...], b1_ref[...])
        kv = jnp.dot(xn_full.astype(bf16), wqkv_ref[:, D:],
                     preferred_element_type=f32) + bqkv_ref[:, D:]
        kv_ref[...] = kv.astype(bf16)                              # (S, 2D)

    # ---- per query tile ----
    row0 = pl.multiple_of(qt * tq, tq)
    xq = x_ref[pl.ds(row0, tq), :].astype(f32)                     # (tq, D)
    xnq = layer_norm(xq, g1_ref[...], b1_ref[...])

    # Q projection; 1/sqrt(head_dim) is pre-folded into wq/bq in the wrapper.
    q = (jnp.dot(xnq.astype(bf16), wqkv_ref[:, :D],
                 preferred_element_type=f32) + bqkv_ref[:, :D]).astype(bf16)

    # Per-head attention over the cached full-sequence K|V.  head_dim is a
    # multiple of 128, so every head slice / concat is a static lane-aligned
    # slab (no cross-lane shuffles) and no kh.T is ever materialized.
    attn_heads = []
    for h in range(n_heads):
        lo = h * head_dim
        qh = q[:, lo:lo + head_dim]                                # (tq, hd) bf16
        kh = kv_ref[:, lo:lo + head_dim]                           # (S, hd)  bf16
        vh = kv_ref[:, D + lo:D + lo + head_dim]                   # (S, hd)  bf16
        s = lax.dot_general(qh, kh, (((1,), (1,)), ((), ())),
                            preferred_element_type=f32)            # (tq, S)
        m = jnp.max(s, axis=-1, keepdims=True)
        e = jnp.exp(s - m)
        denom = jnp.sum(e, axis=-1, keepdims=True)
        # fused normalize + bf16 cast; reciprocal goes to the EUP slot.
        p = (e * pl.reciprocal(denom, approx=True)).astype(bf16)
        attn_heads.append(
            jnp.dot(p, vh, preferred_element_type=f32).astype(bf16))
    attn = jnp.concatenate(attn_heads, axis=-1)                    # (tq, D) bf16

    # Output projection at full MXU width (N = D), then LayerNorm 2 + FFN.
    y = jnp.dot(attn, wo_ref[...], preferred_element_type=f32) + bo_ref[...]
    yn = layer_norm(y, g2_ref[...], b2_ref[...])
    h1 = jnp.dot(yn.astype(bf16), w1_ref[...],
                 preferred_element_type=f32) + f1_ref[...]
    h2 = jnp.dot(h1.astype(bf16), w2_ref[...],
                 preferred_element_type=f32) + f2_ref[...]
    o_ref[...] = jnp.maximum(h2, 0.0)


def _vmem_capacity_bytes():
    """Physical VMEM per TensorCore; conservative fallback = v7x (64 MiB)."""
    try:
        cap = getattr(pltpu.get_tpu_info(), "vmem_capacity_bytes", None)
        if cap:
            return int(cap)
    except Exception:   # hardware query only; never masks kernel errors
        pass
    return 64 * 1024 * 1024


def _blockspec_supports_pipeline_mode():
    """Explicit API check (replaces the old broad try/except fallback)."""
    try:
        return (hasattr(pl, "Buffered")
                and "pipeline_mode" in inspect.signature(pl.BlockSpec).parameters)
    except (TypeError, ValueError):
        return False


def trans_block(x, params, n_heads, *, tq=None):
    """x: (B, S, D) float32.  params: dict of f32 weights (see init_params)."""
    B, S, D = x.shape
    F = params["w1"].shape[1]
    H = n_heads
    assert D % H == 0, "model_dim must be divisible by n_heads"
    hd = D // H
    assert hd % 128 == 0, "head_dim must be a multiple of 128 (lane-aligned)"
    assert D % 128 == 0 and F % 128 == 0 and S % 8 == 0

    if tq is None:
        tq = min(S, 256)
    assert S % tq == 0 and tq % 8 == 0, "tq must divide S and be a multiple of 8"
    nq = S // tq

    use_buffered = _blockspec_supports_pipeline_mode()

    # ---- generation-aware VMEM budget: 80% of physical VMEM leaves headroom
    #      for Mosaic internal scratch (~51 MiB v7x, ~102 MiB v5e/v6e). ----
    vmem_limit = int(_vmem_capacity_bytes() * 0.8)
    wbuf = 1 if use_buffered else 2
    weight_bytes = (4 * D * D + 2 * D * F) * 2 * wbuf       # bf16 matmul weights
    bias_bytes = (9 * D + F) * 4 * wbuf                     # f32 biases / LN params
    kv_bytes = S * 2 * D * 2                                # cached K|V scratch (bf16)
    act_bytes = (2 * S * D * 2                              # x block (dbl-buffered bf16)
                 + 2 * tq * D * 4                           # out block (dbl-buffered f32)
                 + 3 * S * D * 4                            # LN + K|V projection temps
                 + 6 * tq * D * 4                           # q / y / yn / attn temps
                 + 4 * tq * S * 4                           # scores + exp (headroom)
                 + 2 * tq * F * 4)                          # feed-forward activations
    need = weight_bytes + bias_bytes + kv_bytes + act_bytes
    if need > vmem_limit:
        # TODO(synk): flash-style online-softmax K/V streaming for sequences
        # whose full K|V cache / score tiles exceed the VMEM budget.
        raise ValueError(
            f"TransBlock working set ~{need / 2**20:.1f} MiB exceeds "
            f"{vmem_limit / 2**20:.0f} MiB VMEM budget; reduce tq or tile K/V.")

    bf16 = jnp.bfloat16
    scale = 1.0 / math.sqrt(hd)
    # Fused QKV weight/bias with 1/sqrt(head_dim) folded into the Q columns
    # (scaled in f32 before the bf16 cast): (xW + b)*s == x(Ws) + (bs).
    wqkv = jnp.concatenate(
        [params["wq"] * scale, params["wk"], params["wv"]], axis=1).astype(bf16)
    bqkv = jnp.concatenate(
        [params["bq"] * scale, params["bk"], params["bv"]], axis=1)   # (1, 3D) f32

    operands = (x.astype(bf16),                     # stream activations as bf16
                wqkv, bqkv,
                params["wo"].astype(bf16), params["bo"],
                params["gamma1"], params["beta1"],
                params["gamma2"], params["beta2"],
                params["w1"].astype(bf16), params["bf1"],
                params["w2"].astype(bf16), params["bf2"])

    kernel = functools.partial(transblock_kernel, n_heads=H, head_dim=hd, tq=tq)

    def wspec(shape):
        idx = lambda b, q: (0,) * len(shape)
        if use_buffered:
            # constant index map -> single-buffer the resident weights
            return pl.BlockSpec(shape, idx, pipeline_mode=pl.Buffered(1))
        return pl.BlockSpec(shape, idx)

    flops = 2 * B * S * (4 * D * D + 2 * S * D + 2 * D * F)
    cost = pl.CostEstimate(
        flops=flops,
        transcendentals=B * H * S * S,
        bytes_accessed=B * S * D * (2 + 4)                   # bf16 in, f32 out
        + (4 * D * D + 2 * D * F) * 2 + (9 * D + F) * 4)     # weights read once

    return pl.pallas_call(
        kernel,
        out_shape=jax.ShapeDtypeStruct((B, S, D), jnp.float32),
        grid_spec=pltpu.PrefetchScalarGridSpec(
            num_scalar_prefetch=0,
            grid=(B, nq),
            in_specs=[
                pl.BlockSpec((None, S, D), lambda b, q: (b, 0, 0)),    # x (full seq)
                wspec((D, 3 * D)), wspec((1, 3 * D)),                  # wqkv, bqkv
                wspec((D, D)), wspec((1, D)),                          # wo, bo
                wspec((1, D)), wspec((1, D)),                          # gamma1, beta1
                wspec((1, D)), wspec((1, D)),                          # gamma2, beta2
                wspec((D, F)), wspec((1, F)),                          # w1, bf1
                wspec((F, D)), wspec((1, D)),                          # w2, bf2
            ],
            out_specs=pl.BlockSpec((None, tq, D), lambda b, q: (b, q, 0)),
            scratch_shapes=[pltpu.VMEM((S, 2 * D), jnp.bfloat16)],     # cached K|V
        ),
        compiler_params=pltpu.CompilerParams(
            # batch axis feeds both v7x TensorCores; the query-tile axis must
            # be "arbitrary" (it carries the cached-K/V scratch dependency).
            dimension_semantics=("parallel", "arbitrary"),
            vmem_limit_bytes=vmem_limit),
        cost_estimate=cost,
    )(*operands)


def init_params(key, model_dim, ff_dim):
    """Deterministic synthetic init. Linear weights stored as (in, out), f32."""
    keys = jax.random.split(key, 12)
    scale_d = 1.0 / math.sqrt(model_dim)
    scale_f = 1.0 / math.sqrt(ff_dim)

    def lin(k, din, dout, s):
        return jax.random.uniform(k, (din, dout), jnp.float32, -s, s)

    def bias(k, d, s):
        return jax.random.uniform(k, (1, d), jnp.float32, -s, s)

    return {
        "wq": lin(keys[0], model_dim, model_dim, scale_d),
        "bq": bias(keys[1], model_dim, scale_d),
        "wk": lin(keys[2], model_dim, model_dim, scale_d),
        "bk": bias(keys[3], model_dim, scale_d),
        "wv": lin(keys[4], model_dim, model_dim, scale_d),
        "bv": bias(keys[5], model_dim, scale_d),
        "wo": lin(keys[6], model_dim, model_dim, scale_d),
        "bo": bias(keys[7], model_dim, scale_d),
        "gamma1": jnp.ones((1, model_dim), jnp.float32),
        "beta1": jnp.zeros((1, model_dim), jnp.float32),
        "gamma2": jnp.ones((1, model_dim), jnp.float32),
        "beta2": jnp.zeros((1, model_dim), jnp.float32),
        "w1": lin(keys[8], model_dim, ff_dim, scale_d),
        "bf1": bias(keys[9], ff_dim, scale_d),
        "w2": lin(keys[10], ff_dim, model_dim, scale_f),
        "bf2": bias(keys[11], model_dim, scale_f),
    }


def trans_block_ref(x, p, n_heads, eps=1e-5):
    """Pure-JAX reference mirroring the PyTorch forward, with the same
    bf16-operand / f32-accumulate matmul numerics (and bf16 activation
    streaming of the input) as the kernel."""
    B, S, D = x.shape
    hd = D // n_heads
    bf = lambda t: t.astype(jnp.bfloat16)
    x = x.astype(jnp.bfloat16).astype(jnp.float32)   # kernel streams x in bf16

    def mm(a, b):
        return jnp.dot(bf(a), bf(b), preferred_element_type=jnp.float32)

    def ln(v, g, b):
        mu = jnp.mean(v, -1, keepdims=True)
        var = jnp.mean((v - mu) ** 2, -1, keepdims=True)
        return (v - mu) / jnp.sqrt(var + eps) * g + b

    xn = ln(x, p["gamma1"][0], p["beta1"][0])
    q = mm(xn, p["wq"]) + p["bq"][0]
    k = mm(xn, p["wk"]) + p["bk"][0]
    v = mm(xn, p["wv"]) + p["bv"][0]

    def split(t):
        return t.reshape(B, S, n_heads, hd).transpose(0, 2, 1, 3)

    Q, K, V = split(q), split(k), split(v)
    scores = jnp.einsum("bhqd,bhkd->bhqk", bf(Q), bf(K),
                        preferred_element_type=jnp.float32) / math.sqrt(hd)
    probs = jax.nn.softmax(scores, axis=-1)
    out = jnp.einsum("bhqk,bhkd->bhqd", bf(probs), bf(V),
                     preferred_element_type=jnp.float32)
    out = out.transpose(0, 2, 1, 3).reshape(B, S, D)
    y = mm(out, p["wo"]) + p["bo"][0]
    yn = ln(y, p["gamma2"][0], p["beta2"][0])
    h1 = mm(yn, p["w1"]) + p["bf1"][0]
    h2 = mm(h1, p["w2"]) + p["bf2"][0]
    return jnp.maximum(h2, 0.0)


if __name__ == "__main__":
    # Lane-dense small shapes: D / head_dim / ff_dim multiples of 128.
    # S=128 with tq=64 gives 2 query tiles per batch element, exercising both
    # the K|V-cache-fill (qt==0) and the K|V-reuse (qt>0) paths.
    B, S, D = 2, 128, 256
    n_heads = 2                      # head_dim = 128
    ff_dim = D                       # TransBlock default: ff_dim = model_dim
    tq = 64

    key = jax.random.PRNGKey(0)
    kx, kp = jax.random.split(key)
    x = jax.random.normal(kx, (B, S, D), jnp.float32)
    params = init_params(kp, D, ff_dim)

    out = trans_block(x, params, n_heads, tq=tq)
    out = jax.block_until_ready(out)

    ref = trans_block_ref(x, params, n_heads)
    assert out.shape == (B, S, D)
    err = jnp.max(jnp.abs(out - ref))
    assert jnp.allclose(out, ref, atol=1e-2, rtol=1e-2), f"max abs err = {err}"

    print("KERNEL_OK")
</pallas_src>

<mosaic_0001>
module attributes {stable_mosaic.version = 11 : i64} {
  func.func @transblock_kernel(%arg0: i32, %arg1: i32, %arg2: memref<1x128x256xbf16, #tpu.memory_space<vmem>>, %arg3: memref<256x768xbf16, #tpu.memory_space<vmem>>, %arg4: memref<1x768xf32, #tpu.memory_space<vmem>>, %arg5: memref<256x256xbf16, #tpu.memory_space<vmem>>, %arg6: memref<1x256xf32, #tpu.memory_space<vmem>>, %arg7: memref<1x256xf32, #tpu.memory_space<vmem>>, %arg8: memref<1x256xf32, #tpu.memory_space<vmem>>, %arg9: memref<1x256xf32, #tpu.memory_space<vmem>>, %arg10: memref<1x256xf32, #tpu.memory_space<vmem>>, %arg11: memref<256x256xbf16, #tpu.memory_space<vmem>>, %arg12: memref<1x256xf32, #tpu.memory_space<vmem>>, %arg13: memref<256x256xbf16, #tpu.memory_space<vmem>>, %arg14: memref<1x256xf32, #tpu.memory_space<vmem>>, %arg15: memref<1x64x256xf32, #tpu.memory_space<vmem>>, %arg16: memref<128x512xbf16, #tpu.memory_space<vmem>>) attributes {dimension_semantics = [#tpu.dimension_semantics<parallel>, #tpu.dimension_semantics<arbitrary>], iteration_bounds = array<i64: 2, 2>, scalar_prefetch = 0 : i64, scratch_operands = 1 : i64, tpu.core_type = #tpu.core_type<tc>, window_params = [{transform_indices = @transform_0, window_bounds = array<i64: 1, 128, 256>}, {pipeline_mode = #tpu.pipeline_mode<synchronous>, transform_indices = @transform_1, window_bounds = array<i64: 256, 768>}, {pipeline_mode = #tpu.pipeline_mode<synchronous>, transform_indices = @transform_2, window_bounds = array<i64: 1, 768>}, {pipeline_mode = #tpu.pipeline_mode<synchronous>, transform_indices = @transform_3, window_bounds = array<i64: 256, 256>}, {pipeline_mode = #tpu.pipeline_mode<synchronous>, transform_indices = @transform_4, window_bounds = array<i64: 1, 256>}, {pipeline_mode = #tpu.pipeline_mode<synchronous>, transform_indices = @transform_5, window_bounds = array<i64: 1, 256>}, {pipeline_mode = #tpu.pipeline_mode<synchronous>, transform_indices = @transform_6, window_bounds = array<i64: 1, 256>}, {pipeline_mode = #tpu.pipeline_mode<synchronous>, transform_indices = @transform_7, window_bounds = array<i64: 1, 256>}, {pipeline_mode = #tpu.pipeline_mode<synchronous>, transform_indices = @transform_8, window_bounds = array<i64: 1, 256>}, {pipeline_mode = #tpu.pipeline_mode<synchronous>, transform_indices = @transform_9, window_bounds = array<i64: 256, 256>}, {pipeline_mode = #tpu.pipeline_mode<synchronous>, transform_indices = @transform_10, window_bounds = array<i64: 1, 256>}, {pipeline_mode = #tpu.pipeline_mode<synchronous>, transform_indices = @transform_11, window_bounds = array<i64: 256, 256>}, {pipeline_mode = #tpu.pipeline_mode<synchronous>, transform_indices = @transform_12, window_bounds = array<i64: 1, 256>}, {transform_indices = @transform_13, window_bounds = array<i64: 1, 64, 256>}]} {
    %c0_i32 = arith.constant 0 : i32
    %0 = arith.cmpi eq, %arg1, %c0_i32 : i32
    %1 = arith.extui %0 : i1 to i32
    %c0_i32_0 = arith.constant 0 : i32
    %2 = arith.cmpi ne, %1, %c0_i32_0 : i32
    scf.if %2 {
      %c0_58 = arith.constant 0 : index
      %c0_59 = arith.constant 0 : index
      %c0_60 = arith.constant 0 : index
      %125 = vector.load %arg2[%c0_58, %c0_59, %c0_60] : memref<1x128x256xbf16, #tpu.memory_space<vmem>>, vector<1x128x256xbf16>
      %126 = vector.shape_cast %125 : vector<1x128x256xbf16> to vector<128x256xbf16>
      %127 = arith.extf %126 : vector<128x256xbf16> to vector<128x256xf32>
      %c0_61 = arith.constant 0 : index
      %c0_62 = arith.constant 0 : index
      %128 = vector.load %arg7[%c0_61, %c0_62] : memref<1x256xf32, #tpu.memory_space<vmem>>, vector<1x256xf32>
      %c0_63 = arith.constant 0 : index
      %c0_64 = arith.constant 0 : index
      %129 = vector.load %arg8[%c0_63, %c0_64] : memref<1x256xf32, #tpu.memory_space<vmem>>, vector<1x256xf32>
      %cst_65 = arith.constant dense<0.000000e+00> : vector<128xf32>
      %130 = vector.multi_reduction <add>, %127, %cst_65 [1] : vector<128x256xf32> to vector<128xf32>
      %131 = vector.shape_cast %130 : vector<128xf32> to vector<128x1xf32>
      %cst_66 = arith.constant 2.560000e+02 : f32
      %132 = vector.broadcast %cst_66 : f32 to vector<128x1xf32>
      %133 = arith.divf %131, %132 : vector<128x1xf32>
      %134 = arith.mulf %127, %127 : vector<128x256xf32>
      %cst_67 = arith.constant dense<0.000000e+00> : vector<128xf32>
      %135 = vector.multi_reduction <add>, %134, %cst_67 [1] : vector<128x256xf32> to vector<128xf32>
      %136 = vector.shape_cast %135 : vector<128xf32> to vector<128x1xf32>
      %cst_68 = arith.constant 2.560000e+02 : f32
      %137 = vector.broadcast %cst_68 : f32 to vector<128x1xf32>
      %138 = arith.divf %136, %137 : vector<128x1xf32>
      %139 = arith.mulf %133, %133 : vector<128x1xf32>
      %140 = arith.subf %138, %139 : vector<128x1xf32>
      %cst_69 = arith.constant 0.000000e+00 : f32
      %141 = vector.broadcast %cst_69 : f32 to vector<128x1xf32>
      %142 = arith.maximumf %140, %141 : vector<128x1xf32>
      %143 = vector.broadcast %133 : vector<128x1xf32> to vector<128x256xf32>
      %144 = arith.subf %127, %143 : vector<128x256xf32>
      %cst_70 = arith.constant 9.99999974E-6 : f32
      %145 = vector.broadcast %cst_70 : f32 to vector<128x1xf32>
      %146 = arith.addf %142, %145 : vector<128x1xf32>
      %147 = math.rsqrt %146 : vector<128x1xf32>
      %148 = vector.broadcast %147 : vector<128x1xf32> to vector<128x256xf32>
      %149 = arith.mulf %144, %148 : vector<128x256xf32>
      %150 = vector.broadcast %128 : vector<1x256xf32> to vector<128x256xf32>
      %151 = arith.mulf %149, %150 : vector<128x256xf32>
      %152 = vector.broadcast %129 : vector<1x256xf32> to vector<128x256xf32>
      %153 = arith.addf %151, %152 : vector<128x256xf32>
      %154 = arith.truncf %153 : vector<128x256xf32> to vector<128x256xbf16>
      %c0_71 = arith.constant 0 : index
      %c256_72 = arith.constant 256 : index
      %155 = vector.load %arg3[%c0_71, %c256_72] : memref<256x768xbf16, #tpu.memory_space<vmem>>, vector<256x512xbf16>
      %cst_73 = arith.constant dense<0.000000e+00> : vector<128x512xf32>
      %156 = tpu.matmul %154, %155, %cst_73 {dimension_numbers = #tpu.dot_dimension_numbers<[1], [0], [0], [1], [0, 0, 1, 1], [], []>} : vector<128x256xbf16>, vector<256x512xbf16>, vector<128x512xf32> -> vector<128x512xf32>
      %c0_74 = arith.constant 0 : index
      %c256_75 = arith.constant 256 : index
      %157 = vector.load %arg4[%c0_74, %c256_75] : memref<1x768xf32, #tpu.memory_space<vmem>>, vector<1x512xf32>
      %158 = vector.broadcast %157 : vector<1x512xf32> to vector<128x512xf32>
      %159 = arith.addf %156, %158 : vector<128x512xf32>
      %160 = arith.truncf %159 : vector<128x512xf32> to vector<128x512xbf16>
      %c0_76 = arith.constant 0 : index
      %c0_77 = arith.constant 0 : index
      %161 = vector.load %arg16[%c0_76, %c0_77] : memref<128x512xbf16, #tpu.memory_space<vmem>>, vector<128x512xbf16>
      tpu.vector_store %arg16[%c0_76, %c0_77], %160 {strides = array<i32>} : memref<128x512xbf16, #tpu.memory_space<vmem>>, vector<128x512xbf16>,
    } else {
    }
    %c64_i32 = arith.constant 64 : i32
    %3 = arith.muli %arg1, %c64_i32 : i32
    %4 = tpu.assume_multiple %3, 64 : i32
    %c0 = arith.constant 0 : index
    %5 = arith.index_cast %4 : i32 to index
    %c0_1 = arith.constant 0 : index
    %6 = vector.load %arg2[%c0, %5, %c0_1] : memref<1x128x256xbf16, #tpu.memory_space<vmem>>, vector<1x64x256xbf16>
    %7 = vector.shape_cast %6 : vector<1x64x256xbf16> to vector<64x256xbf16>
    %8 = arith.extf %7 : vector<64x256xbf16> to vector<64x256xf32>
    %c0_2 = arith.constant 0 : index
    %c0_3 = arith.constant 0 : index
    %9 = vector.load %arg7[%c0_2, %c0_3] : memref<1x256xf32, #tpu.memory_space<vmem>>, vector<1x256xf32>
    %c0_4 = arith.constant 0 : index
    %c0_5 = arith.constant 0 : index
    %10 = vector.load %arg8[%c0_4, %c0_5] : memref<1x256xf32, #tpu.memory_space<vmem>>, vector<1x256xf32>
    %cst = arith.constant dense<0.000000e+00> : vector<64xf32>
    %11 = vector.multi_reduction <add>, %8, %cst [1] : vector<64x256xf32> to vector<64xf32>
    %12 = vector.shape_cast %11 : vector<64xf32> to vector<64x1xf32>
    %cst_6 = arith.constant 2.560000e+02 : f32
    %13 = vector.broadcast %cst_6 : f32 to vector<64x1xf32>
    %14 = arith.divf %12, %13 : vector<64x1xf32>
    %15 = arith.mulf %8, %8 : vector<64x256xf32>
    %cst_7 = arith.constant dense<0.000000e+00> : vector<64xf32>
    %16 = vector.multi_reduction <add>, %15, %cst_7 [1] : vector<64x256xf32> to vector<64xf32>
    %17 = vector.shape_cast %16 : vector<64xf32> to vector<64x1xf32>
    %cst_8 = arith.constant 2.560000e+02 : f32
    %18 = vector.broadcast %cst_8 : f32 to vector<64x1xf32>
    %19 = arith.divf %17, %18 : vector<64x1xf32>
    %20 = arith.mulf %14, %14 : vector<64x1xf32>
    %21 = arith.subf %19, %20 : vector<64x1xf32>
    %cst_9 = arith.constant 0.000000e+00 : f32
    %22 = vector.broadcast %cst_9 : f32 to vector<64x1xf32>
    %23 = arith.maximumf %21, %22 : vector<64x1xf32>
    %24 = vector.broadcast %14 : vector<64x1xf32> to vector<64x256xf32>
    %25 = arith.subf %8, %24 : vector<64x256xf32>
    %cst_10 = arith.constant 9.99999974E-6 : f32
    %26 = vector.broadcast %cst_10 : f32 to vector<64x1xf32>
    %27 = arith.addf %23, %26 : vector<64x1xf32>
    %28 = math.rsqrt %27 : vector<64x1xf32>
    %29 = vector.broadcast %28 : vector<64x1xf32> to vector<64x256xf32>
    %30 = arith.mulf %25, %29 : vector<64x256xf32>
    %31 = vector.broadcast %9 : vector<1x256xf32> to vector<64x256xf32>
    %32 = arith.mulf %30, %31 : vector<64x256xf32>
    %33 = vector.broadcast %10 : vector<1x256xf32> to vector<64x256xf32>
    %34 = arith.addf %32, %33 : vector<64x256xf32>
    %35 = arith.truncf %34 : vector<64x256xf32> to vector<64x256xbf16>
    %c0_11 = arith.constant 0 : index
    %c0_12 = arith.constant 0 : index
    %36 = vector.load %arg3[%c0_11, %c0_12] : memref<256x768xbf16, #tpu.memory_space<vmem>>, vector<256x256xbf16>
    %cst_13 = arith.constant dense<0.000000e+00> : vector<64x256xf32>
    %37 = tpu.matmul %35, %36, %cst_13 {dimension_numbers = #tpu.dot_dimension_numbers<[1], [0], [0], [1], [0, 0, 1, 1], [], []>} : vector<64x256xbf16>, vector<256x256xbf16>, vector<64x256xf32> -> vector<64x256xf32>
    %c0_14 = arith.constant 0 : index
    %c0_15 = arith.constant 0 : index
    %38 = vector.load %arg4[%c0_14, %c0_15] : memref<1x768xf32, #tpu.memory_space<vmem>>, vector<1x256xf32>
    %39 = vector.broadcast %38 : vector<1x256xf32> to vector<64x256xf32>
    %40 = arith.addf %37, %39 : vector<64x256xf32>
    %41 = arith.truncf %40 : vector<64x256xf32> to vector<64x256xbf16>
    %42 = vector.extract_strided_slice %41 {offsets = [0, 0], sizes = [64, 128], strides = [1, 1]} : vector<64x256xbf16> to vector<64x128xbf16>
    %c0_16 = arith.constant 0 : index
    %c0_17 = arith.constant 0 : index
    %43 = vector.load %arg16[%c0_16, %c0_17] : memref<128x512xbf16, #tpu.memory_space<vmem>>, vector<128x128xbf16>
    %c0_18 = arith.constant 0 : index
    %c256 = arith.constant 256 : index
    %44 = vector.load %arg16[%c0_18, %c256] : memref<128x512xbf16, #tpu.memory_space<vmem>>, vector<128x128xbf16>
    %cst_19 = arith.constant dense<0.000000e+00> : vector<64x128xf32>
    %45 = tpu.matmul %42, %43, %cst_19 {dimension_numbers = #tpu.dot_dimension_numbers<[1], [1], [0], [0], [0, 0, 1, 0], [], []>} : vector<64x128xbf16>, vector<128x128xbf16>, vector<64x128xf32> -> vector<64x128xf32>
    %cst_20 = arith.constant dense<0xFF800000> : vector<64xf32>
    %46 = vector.multi_reduction <maximumf>, %45, %cst_20 [1] : vector<64x128xf32> to vector<64xf32>
    %47 = vector.shape_cast %46 : vector<64xf32> to vector<64x1xf32>
    %48 = vector.broadcast %47 : vector<64x1xf32> to vector<64x128xf32>
    %49 = arith.subf %45, %48 : vector<64x128xf32>
    %50 = math.exp %49 : vector<64x128xf32>
    %cst_21 = arith.constant dense<0.000000e+00> : vector<64xf32>
    %51 = vector.multi_reduction <add>, %50, %cst_21 [1] : vector<64x128xf32> to vector<64xf32>
    %52 = vector.shape_cast %51 : vector<64xf32> to vector<64x1xf32>
    %53 = tpu.reciprocal %52 {approx = true} : vector<64x1xf32> -> vector<64x1xf32>
    %54 = vector.broadcast %53 : vector<64x1xf32> to vector<64x128xf32>
    %55 = arith.mulf %50, %54 : vector<64x128xf32>
    %56 = arith.truncf %55 : vector<64x128xf32> to vector<64x128xbf16>
    %cst_22 = arith.constant dense<0.000000e+00> : vector<64x128xf32>
    %57 = tpu.matmul %56, %44, %cst_22 {dimension_numbers = #tpu.dot_dimension_numbers<[1], [0], [0], [1], [0, 0, 1, 1], [], []>} : vector<64x128xbf16>, vector<128x128xbf16>, vector<64x128xf32> -> vector<64x128xf32>
    %58 = arith.truncf %57 : vector<64x128xf32> to vector<64x128xbf16>
    %59 = vector.extract_strided_slice %41 {offsets = [0, 128], sizes = [64, 128], strides = [1, 1]} : vector<64x256xbf16> to vector<64x128xbf16>
    %c0_23 = arith.constant 0 : index
    %c128 = arith.constant 128 : index
    %60 = vector.load %arg16[%c0_23, %c128] : memref<128x512xbf16, #tpu.memory_space<vmem>>, vector<128x128xbf16>
    %c0_24 = arith.constant 0 : index
    %c384 = arith.constant 384 : index
    %61 = vector.load %arg16[%c0_24, %c384] : memref<128x512xbf16, #tpu.memory_space<vmem>>, vector<128x128xbf16>
    %cst_25 = arith.constant dense<0.000000e+00> : vector<64x128xf32>
    %62 = tpu.matmul %59, %60, %cst_25 {dimension_numbers = #tpu.dot_dimension_numbers<[1], [1], [0], [0], [0, 0, 1, 0], [], []>} : vector<64x128xbf16>, vector<128x128xbf16>, vector<64x128xf32> -> vector<64x128xf32>
    %cst_26 = arith.constant dense<0xFF800000> : vector<64xf32>
    %63 = vector.multi_reduction <maximumf>, %62, %cst_26 [1] : vector<64x128xf32> to vector<64xf32>
    %64 = vector.shape_cast %63 : vector<64xf32> to vector<64x1xf32>
    %65 = vector.broadcast %64 : vector<64x1xf32> to vector<64x128xf32>
    %66 = arith.subf %62, %65 : vector<64x128xf32>
    %67 = math.exp %66 : vector<64x128xf32>
    %cst_27 = arith.constant dense<0.000000e+00> : vector<64xf32>
    %68 = vector.multi_reduction <add>, %67, %cst_27 [1] : vector<64x128xf32> to vector<64xf32>
    %69 = vector.shape_cast %68 : vector<64xf32> to vector<64x1xf32>
    %70 = tpu.reciprocal %69 {approx = true} : vector<64x1xf32> -> vector<64x1xf32>
    %71 = vector.broadcast %70 : vector<64x1xf32> to vector<64x128xf32>
    %72 = arith.mulf %67, %71 : vector<64x128xf32>
    %73 = arith.truncf %72 : vector<64x128xf32> to vector<64x128xbf16>
    %cst_28 = arith.constant dense<0.000000e+00> : vector<64x128xf32>
    %74 = tpu.matmul %73, %61, %cst_28 {dimension_numbers = #tpu.dot_dimension_numbers<[1], [0], [0], [1], [0, 0, 1, 1], [], []>} : vector<64x128xbf16>, vector<128x128xbf16>, vector<64x128xf32> -> vector<64x128xf32>
    %75 = arith.truncf %74 : vector<64x128xf32> to vector<64x128xbf16>
    %76 = tpu.concatenate %58, %75 in 1 : vector<64x128xbf16>, vector<64x128xbf16> -> vector<64x256xbf16>
    %c0_29 = arith.constant 0 : index
    %c0_30 = arith.constant 0 : index
    %77 = vector.load %arg5[%c0_29, %c0_30] : memref<256x256xbf16, #tpu.memory_space<vmem>>, vector<256x256xbf16>
    %cst_31 = arith.constant dense<0.000000e+00> : vector<64x256xf32>
    %78 = tpu.matmul %76, %77, %cst_31 {dimension_numbers = #tpu.dot_dimension_numbers<[1], [0], [0], [1], [0, 0, 1, 1], [], []>} : vector<64x256xbf16>, vector<256x256xbf16>, vector<64x256xf32> -> vector<64x256xf32>
    %c0_32 = arith.constant 0 : index
    %c0_33 = arith.constant 0 : index
    %79 = vector.load %arg6[%c0_32, %c0_33] : memref<1x256xf32, #tpu.memory_space<vmem>>, vector<1x256xf32>
    %80 = vector.broadcast %79 : vector<1x256xf32> to vector<64x256xf32>
    %81 = arith.addf %78, %80 : vector<64x256xf32>
    %c0_34 = arith.constant 0 : index
    %c0_35 = arith.constant 0 : index
    %82 = vector.load %arg9[%c0_34, %c0_35] : memref<1x256xf32, #tpu.memory_space<vmem>>, vector<1x256xf32>
    %c0_36 = arith.constant 0 : index
    %c0_37 = arith.constant 0 : index
    %83 = vector.load %arg10[%c0_36, %c0_37] : memref<1x256xf32, #tpu.memory_space<vmem>>, vector<1x256xf32>
    %cst_38 = arith.constant dense<0.000000e+00> : vector<64xf32>
    %84 = vector.multi_reduction <add>, %81, %cst_38 [1] : vector<64x256xf32> to vector<64xf32>
    %85 = vector.shape_cast %84 : vector<64xf32> to vector<64x1xf32>
    %cst_39 = arith.constant 2.560000e+02 : f32
    %86 = vector.broadcast %cst_39 : f32 to vector<64x1xf32>
    %87 = arith.divf %85, %86 : vector<64x1xf32>
    %88 = arith.mulf %81, %81 : vector<64x256xf32>
    %cst_40 = arith.constant dense<0.000000e+00> : vector<64xf32>
    %89 = vector.multi_reduction <add>, %88, %cst_40 [1] : vector<64x256xf32> to vector<64xf32>
    %90 = vector.shape_cast %89 : vector<64xf32> to vector<64x1xf32>
    %cst_41 = arith.constant 2.560000e+02 : f32
    %91 = vector.broadcast %cst_41 : f32 to vector<64x1xf32>
    %92 = arith.divf %90, %91 : vector<64x1xf32>
    %93 = arith.mulf %87, %87 : vector<64x1xf32>
    %94 = arith.subf %92, %93 : vector<64x1xf32>
    %cst_42 = arith.constant 0.000000e+00 : f32
    %95 = vector.broadcast %cst_42 : f32 to vector<64x1xf32>
    %96 = arith.maximumf %94, %95 : vector<64x1xf32>
    %97 = vector.broadcast %87 : vector<64x1xf32> to vector<64x256xf32>
    %98 = arith.subf %81, %97 : vector<64x256xf32>
    %cst_43 = arith.constant 9.99999974E-6 : f32
    %99 = vector.broadcast %cst_43 : f32 to vector<64x1xf32>
    %100 = arith.addf %96, %99 : vector<64x1xf32>
    %101 = math.rsqrt %100 : vector<64x1xf32>
    %102 = vector.broadcast %101 : vector<64x1xf32> to vector<64x256xf32>
    %103 = arith.mulf %98, %102 : vector<64x256xf32>
    %104 = vector.broadcast %82 : vector<1x256xf32> to vector<64x256xf32>
    %105 = arith.mulf %103, %104 : vector<64x256xf32>
    %106 = vector.broadcast %83 : vector<1x256xf32> to vector<64x256xf32>
    %107 = arith.addf %105, %106 : vector<64x256xf32>
    %108 = arith.truncf %107 : vector<64x256xf32> to vector<64x256xbf16>
    %c0_44 = arith.constant 0 : index
    %c0_45 = arith.constant 0 : index
    %109 = vector.load %arg11[%c0_44, %c0_45] : memref<256x256xbf16, #tpu.memory_space<vmem>>, vector<256x256xbf16>
    %cst_46 = arith.constant dense<0.000000e+00> : vector<64x256xf32>
    %110 = tpu.matmul %108, %109, %cst_46 {dimension_numbers = #tpu.dot_dimension_numbers<[1], [0], [0], [1], [0, 0, 1, 1], [], []>} : vector<64x256xbf16>, vector<256x256xbf16>, vector<64x256xf32> -> vector<64x256xf32>
    %c0_47 = arith.constant 0 : index
    %c0_48 = arith.constant 0 : index
    %111 = vector.load %arg12[%c0_47, %c0_48] : memref<1x256xf32, #tpu.memory_space<vmem>>, vector<1x256xf32>
    %112 = vector.broadcast %111 : vector<1x256xf32> to vector<64x256xf32>
    %113 = arith.addf %110, %112 : vector<64x256xf32>
    %114 = arith.truncf %113 : vector<64x256xf32> to vector<64x256xbf16>
    %c0_49 = arith.constant 0 : index
    %c0_50 = arith.constant 0 : index
    %115 = vector.load %arg13[%c0_49, %c0_50] : memref<256x256xbf16, #tpu.memory_space<vmem>>, vector<256x256xbf16>
    %cst_51 = arith.constant dense<0.000000e+00> : vector<64x256xf32>
    %116 = tpu.matmul %114, %115, %cst_51 {dimension_numbers = #tpu.dot_dimension_numbers<[1], [0], [0], [1], [0, 0, 1, 1], [], []>} : vector<64x256xbf16>, vector<256x256xbf16>, vector<64x256xf32> -> vector<64x256xf32>
    %c0_52 = arith.constant 0 : index
    %c0_53 = arith.constant 0 : index
    %117 = vector.load %arg14[%c0_52, %c0_53] : memref<1x256xf32, #tpu.memory_space<vmem>>, vector<1x256xf32>
    %118 = vector.broadcast %117 : vector<1x256xf32> to vector<64x256xf32>
    %119 = arith.addf %116, %118 : vector<64x256xf32>
    %cst_54 = arith.constant 0.000000e+00 : f32
    %120 = vector.broadcast %cst_54 : f32 to vector<64x256xf32>
    %121 = arith.maximumf %119, %120 : vector<64x256xf32>
    %c0_55 = arith.constant 0 : index
    %c0_56 = arith.constant 0 : index
    %c0_57 = arith.constant 0 : index
    %122 = vector.load %arg15[%c0_55, %c0_56, %c0_57] : memref<1x64x256xf32, #tpu.memory_space<vmem>>, vector<1x64x256xf32>
    %123 = vector.shape_cast %122 : vector<1x64x256xf32> to vector<64x256xf32>
    %124 = vector.shape_cast %121 : vector<64x256xf32> to vector<1x64x256xf32>
    tpu.vector_store %arg15[%c0_55, %c0_56, %c0_57], %124 {strides = array<i32>} : memref<1x64x256xf32, #tpu.memory_space<vmem>>, vector<1x64x256xf32>,
    return
  }
  func.func @transform_0(%arg0: i32, %arg1: i32) -> (i32, i32, i32) {
    %c0_i32 = arith.constant 0 : i32
    %c0_i32_0 = arith.constant 0 : i32
    %c0_i32_1 = arith.constant 0 : i32
    return %arg0, %c0_i32, %c0_i32_0 : i32, i32, i32
  }
  func.func @transform_1(%arg0: i32, %arg1: i32) -> (i32, i32) {
    %c0_i32 = arith.constant 0 : i32
    %c0_i32_0 = arith.constant 0 : i32
    %c0_i32_1 = arith.constant 0 : i32
    return %c0_i32, %c0_i32_0 : i32, i32
  }
  func.func @transform_2(%arg0: i32, %arg1: i32) -> (i32, i32) {
    %c0_i32 = arith.constant 0 : i32
    %c0_i32_0 = arith.constant 0 : i32
    %c0_i32_1 = arith.constant 0 : i32
    return %c0_i32, %c0_i32_0 : i32, i32
  }
  func.func @transform_3(%arg0: i32, %arg1: i32) -> (i32, i32) {
    %c0_i32 = arith.constant 0 : i32
    %c0_i32_0 = arith.constant 0 : i32
    %c0_i32_1 = arith.constant 0 : i32
    return %c0_i32, %c0_i32_0 : i32, i32
  }
  func.func @transform_4(%arg0: i32, %arg1: i32) -> (i32, i32) {
    %c0_i32 = arith.constant 0 : i32
    %c0_i32_0 = arith.constant 0 : i32
    %c0_i32_1 = arith.constant 0 : i32
    return %c0_i32, %c0_i32_0 : i32, i32
  }
  func.func @transform_5(%arg0: i32, %arg1: i32) -> (i32, i32) {
    %c0_i32 = arith.constant 0 : i32
    %c0_i32_0 = arith.constant 0 : i32
    %c0_i32_1 = arith.constant 0 : i32
    return %c0_i32, %c0_i32_0 : i32, i32
  }
  func.func @transform_6(%arg0: i32, %arg1: i32) -> (i32, i32) {
    %c0_i32 = arith.constant 0 : i32
    %c0_i32_0 = arith.constant 0 : i32
    %c0_i32_1 = arith.constant 0 : i32
    return %c0_i32, %c0_i32_0 : i32, i32
  }
  func.func @transform_7(%arg0: i32, %arg1: i32) -> (i32, i32) {
    %c0_i32 = arith.constant 0 : i32
    %c0_i32_0 = arith.constant 0 : i32
    %c0_i32_1 = arith.constant 0 : i32
    return %c0_i32, %c0_i32_0 : i32, i32
  }
  func.func @transform_8(%arg0: i32, %arg1: i32) -> (i32, i32) {
    %c0_i32 = arith.constant 0 : i32
    %c0_i32_0 = arith.constant 0 : i32
    %c0_i32_1 = arith.constant 0 : i32
    return %c0_i32, %c0_i32_0 : i32, i32
  }
  func.func @transform_9(%arg0: i32, %arg1: i32) -> (i32, i32) {
    %c0_i32 = arith.constant 0 : i32
    %c0_i32_0 = arith.constant 0 : i32
    %c0_i32_1 = arith.constant 0 : i32
    return %c0_i32, %c0_i32_0 : i32, i32
  }
  func.func @transform_10(%arg0: i32, %arg1: i32) -> (i32, i32) {
    %c0_i32 = arith.constant 0 : i32
    %c0_i32_0 = arith.constant 0 : i32
    %c0_i32_1 = arith.constant 0 : i32
    return %c0_i32, %c0_i32_0 : i32, i32
  }
  func.func @transform_11(%arg0: i32, %arg1: i32) -> (i32, i32) {
    %c0_i32 = arith.constant 0 : i32
    %c0_i32_0 = arith.constant 0 : i32
    %c0_i32_1 = arith.constant 0 : i32
    return %c0_i32, %c0_i32_0 : i32, i32
  }
  func.func @transform_12(%arg0: i32, %arg1: i32) -> (i32, i32) {
    %c0_i32 = arith.constant 0 : i32
    %c0_i32_0 = arith.constant 0 : i32
    %c0_i32_1 = arith.constant 0 : i32
    return %c0_i32, %c0_i32_0 : i32, i32
  }
  func.func @transform_13(%arg0: i32, %arg1: i32) -> (i32, i32, i32) {
    %c0_i32 = arith.constant 0 : i32
    %c0_i32_0 = arith.constant 0 : i32
    return %arg0, %arg1, %c0_i32 : i32, i32, i32
  }
}

</mosaic_0001>

<llo_original>
// kernel: tpu_custom_call.1
$region0: #{tpu_custom_call.1}
  #allocation0 [shape = 'u32[]', space=smem, size = 0x4, offset = 0x4, fixed_abs, tag = 'smem constant byte address 0x4 - core index']
  #allocation1 [shape = 'u32[72,128]{1,0:T(1,128)}', space=vmem, size = 0x9000, scoped, tag = 'internal scratch']
  #allocation2 [shape = 'bf16[128,512]{1,0:T(8,128)(2,1)}', space=vmem, size = 0x20000, scoped, tag = 'scratch operand']
  %s0 = inlined_call_operand.hbm [shape: bf16[2,128,256], index: 0, kind: input, shape index: {}]
  %s1 = inlined_call_operand.hbm [shape: bf16[256,768], index: 1, kind: input, shape index: {}]
  %s2 = inlined_call_operand.hbm [shape: f32[1,768], index: 2, kind: input, shape index: {}]
  %s3 = inlined_call_operand.hbm [shape: bf16[256,256], index: 3, kind: input, shape index: {}]
  %s4 = inlined_call_operand.vmem [shape: f32[1,256], index: 4, kind: input, shape index: {}]
  %s5 = inlined_call_operand.vmem [shape: f32[1,256], index: 5, kind: input, shape index: {}]
  %s6 = inlined_call_operand.hbm [shape: f32[1,256], index: 6, kind: input, shape index: {}]
  %s7 = inlined_call_operand.vmem [shape: f32[1,256], index: 7, kind: input, shape index: {}]
  %s8 = inlined_call_operand.hbm [shape: f32[1,256], index: 8, kind: input, shape index: {}]
  %s9 = inlined_call_operand.hbm [shape: bf16[256,256], index: 9, kind: input, shape index: {}]
  %s10 = inlined_call_operand.vmem [shape: f32[1,256], index: 10, kind: input, shape index: {}]
  %s11 = inlined_call_operand.hbm [shape: bf16[256,256], index: 11, kind: input, shape index: {}]
  %s12 = inlined_call_operand.vmem [shape: f32[1,256], index: 12, kind: input, shape index: {}]
  %s13 = inlined_call_operand.hbm [shape: f32[2,128,256], index: 13, kind: output, shape index: {}]
  %s14 = sld [smem:[#allocation0]]
  $region121: #{tpu_custom_call.1} parent=0
    _
  %s16 = ssub.s32 1, %s14
  %s17 = scalar_select 0, %s16, %s14
  $region1: #{tpu_custom_call.1} parent=0
    #allocation3 [shape = 'u8[131072]{0}', space=vmem, size = 0x20000, scoped, tag = 'input window, operand 0']
    #allocation4 [shape = 's32[2]{0}', space=sflag, size = 0x8, scoped, tag = 'scoped memory for tpu_custom_call.1']
    #allocation5 [shape = 's32[2]{0}', space=sflag, size = 0x8, scoped, tag = 'scoped memory for tpu_custom_call.1']
    #allocation6 [shape = 'u8[393216]{0}', space=vmem, size = 0x60000, scoped, tag = 'input window, operand 1, single buffered']
    #allocation7 [shape = 's32[1]{0}', space=sflag, size = 0x4, scoped, tag = 'scoped memory for tpu_custom_call.1']
    #allocation8 [shape = 'u8[3072]{0}', space=vmem, size = 0xc00, scoped, tag = 'input window, operand 2, single buffered']
    #allocation9 [shape = 'u8[131072]{0}', space=vmem, size = 0x20000, scoped, tag = 'input window, operand 3, single buffered']
    #allocation10 [shape = 's32[1]{0}', space=sflag, size = 0x4, scoped, tag = 'scoped memory for tpu_custom_call.1']
    #allocation11 [shape = 'u8[1024]{0}', space=vmem, size = 0x400, scoped, tag = 'input window, operand 6, single buffered']
    #allocation12 [shape = 'u8[1024]{0}', space=vmem, size = 0x400, scoped, tag = 'input window, operand 8, single buffered']
    #allocation13 [shape = 's32[1]{0}', space=sflag, size = 0x4, scoped, tag = 'scoped memory for tpu_custom_call.1']
    #allocation14 [shape = 'u8[131072]{0}', space=vmem, size = 0x20000, scoped, tag = 'input window, operand 9, single buffered']
    #allocation15 [shape = 'u8[131072]{0}', space=vmem, size = 0x20000, scoped, tag = 'input window, operand 11, single buffered']
    #allocation16 [shape = 's32[1]{0}', space=sflag, size = 0x4, scoped, tag = 'scoped memory for tpu_custom_call.1']
    #allocation17 [shape = 'u8[131072]{0}', space=vmem, size = 0x20000, scoped, tag = 'output window, operand 0']
    %18 = vsyncpa [#allocation4], 0
    %s19 = scalar_lea.sflag [#allocation4], 1
    %20 = vsyncpa %s19, 0
    %21 = vsyncpa [#allocation7], 0
    %22 = vsyncpa [#allocation10], 0
    %23 = vsyncpa [#allocation13], 0
    %24 = vsyncpa [#allocation16], 0
    %25 = vsyncpa [#allocation5], 0
    %s26 = scalar_lea.sflag [#allocation5], 1
    %27 = vsyncpa %s26, 0
    loop: start=0, step=1, limit=6
    $region2: #{tpu_custom_call.1} parent=1 // loop_pre_header
      _
    $region3: #{tpu_custom_call.1} parent=1 // loop_header
      %s29 = sphi 0, %s33
      %p30 = scmp.ge.s32.totalorder %s29, 6
      %s36 = sphi 0, %s48
      %s37 = sphi 0, %s44
      %s38 = sphi 0, %s36
      %s39 = sphi 0, %s37
      %s40 = sphi 0, %s38
      %s41 = sphi 0, %s39
      %s51 = sphi 0, %s53
      %s54 = sphi 0, %s51
      %s55 = sphi 0, %s54
      %s71 = sphi 0, %s55
      %s75 = sphi 0, %s75
      %s77 = sphi 0, %s75
      %s78 = sphi 0, %s77
      %s92 = sphi 0, %s78
      %s96 = sphi 0, %s96
      %s98 = sphi 0, %s96
      %s99 = sphi 0, %s98
      %s113 = sphi 0, %s99
      %s117 = sphi 0, %s117
      %s119 = sphi 0, %s117
      %s120 = sphi 0, %s119
      %s134 = sphi 0, %s120
      %s138 = sphi 0, %s138
      %s140 = sphi 0, %s138
      %s141 = sphi 0, %s140
      %s155 = sphi 0, %s141
      %s159 = sphi 0, %s159
      %s161 = sphi 0, %s159
      %s162 = sphi 0, %s161
      %s176 = sphi 0, %s162
      %s180 = sphi 0, %s180
      %s182 = sphi 0, %s180
      %s183 = sphi 0, %s182
      %s197 = sphi 0, %s183
      %s201 = sphi 0, %s201
      %s203 = sphi 0, %s201
      %s204 = sphi 0, %s203
      %s218 = sphi 0, %s204
      %s222 = sphi 0, %s222
      %s224 = sphi 0, %s222
      %s225 = sphi 0, %s224
      %s239 = sphi 0, %s225
      %s243 = sphi 0, %s243
      %s245 = sphi 0, %s243
      %s246 = sphi 0, %s245
      %s260 = sphi 0, %s246
      %s264 = sphi 0, %s264
      %s266 = sphi 0, %s264
      %s267 = sphi 0, %s266
      %s281 = sphi 0, %s267
      %s285 = sphi 0, %s285
      %s287 = sphi 0, %s285
      %s288 = sphi 0, %s287
      %s302 = sphi 0, %s288
      %s306 = sphi 0, %s306
      %s308 = sphi 0, %s306
      %s309 = sphi 0, %s308
      %s323 = sphi 0, %s309
      %s331 = sphi 0, %s333
      %s334 = sphi 0, %s331
      %s335 = sphi 0, %s334
      %s351 = sphi 0, %s335
    $region4: #{tpu_custom_call.1} parent=1 // loop_header_branch
      %32 = sbr.rel (%p30) target = $region8
    $region5: #{tpu_custom_call.1} parent=1 // loop_body
      %s34 = ssub.s32 %s29, 1
      %s35 = ssub.s32 %s29, 2
      %s42 = sadd.s32 1, %s37
      %p43 = scmp.ge.s32.totalorder %s42, 2
      %s44 = scalar_select %p43, 0, %s42
      %s45 = sadd.s32 1, %s36
      %s46 = scalar_select %p43, %s45, %s36
      %p47 = scmp.ge.s32.totalorder %s46, 2
      %s48 = scalar_select %p47, 0, %s46
      %s49 = ssub.s32 %s36, %s48
      %p50 = scmp.eq.s32.totalorder %s49, 0
      %s52 = sadd.s32 %s51, 1
      %s53 = scalar_select %p50, %s51, %s52
      %p56 = pneg %p50
      %p57 = scmp.eq.s32.totalorder %s29, 3
      %p58 = por %p56, %p57
      %p59 = scmp.ne.s32.totalorder %s51, %s54
      %p60 = scmp.eq.s32.totalorder %s29, 0
      %p61 = por %p59, %p60
      %p62 = scmp.ne.s32.totalorder %s51, %s54
      %p63 = scmp.eq.s32.totalorder %s34, 3
      %p64 = por %p62, %p63
      %p65 = scmp.ne.s32.totalorder %s54, %s55
      %p66 = scmp.eq.s32.totalorder %s34, 0
      %p67 = por %p65, %p66
      %p68 = scmp.ne.s32.totalorder %s54, %s55
      %p69 = scmp.eq.s32.totalorder %s35, 3
      %p70 = por %p68, %p69
      %p72 = scmp.ne.s32.totalorder %s55, %s71
      %p73 = scmp.eq.s32.totalorder %s35, 0
      %p74 = por %p72, %p73
      %s76 = sadd.s32 %s75, 1
      %p79 = scmp.eq.s32.totalorder %s29, 3
      %p80 = scmp.ne.s32.totalorder %s75, %s77
      %p81 = scmp.eq.s32.totalorder %s29, 0
      %p82 = por %p80, %p81
      %p83 = scmp.ne.s32.totalorder %s75, %s77
      %p84 = scmp.eq.s32.totalorder %s34, 3
      %p85 = por %p83, %p84
      %p86 = scmp.ne.s32.totalorder %s77, %s78
      %p87 = scmp.eq.s32.totalorder %s34, 0
      %p88 = por %p86, %p87
      %p89 = scmp.ne.s32.totalorder %s77, %s78
      %p90 = scmp.eq.s32.totalorder %s35, 3
      %p91 = por %p89, %p90
      %p93 = scmp.ne.s32.totalorder %s78, %s92
      %p94 = scmp.eq.s32.totalorder %s35, 0
      %p95 = por %p93, %p94
      %s97 = sadd.s32 %s96, 1
      %p100 = scmp.eq.s32.totalorder %s29, 3
      %p101 = scmp.ne.s32.totalorder %s96, %s98
      %p102 = scmp.eq.s32.totalorder %s29, 0
      %p103 = por %p101, %p102
      %p104 = scmp.ne.s32.totalorder %s96, %s98
      %p105 = scmp.eq.s32.totalorder %s34, 3
      %p106 = por %p104, %p105
      %p107 = scmp.ne.s32.totalorder %s98, %s99
      %p108 = scmp.eq.s32.totalorder %s34, 0
      %p109 = por %p107, %p108
      %p110 = scmp.ne.s32.totalorder %s98, %s99
      %p111 = scmp.eq.s32.totalorder %s35, 3
      %p112 = por %p110, %p111
      %p114 = scmp.ne.s32.totalorder %s99, %s113
      %p115 = scmp.eq.s32.totalorder %s35, 0
      %p116 = por %p114, %p115
      %s118 = sadd.s32 %s117, 1
      %p121 = scmp.eq.s32.totalorder %s29, 3
      %p122 = scmp.ne.s32.totalorder %s117, %s119
      %p123 = scmp.eq.s32.totalorder %s29, 0
      %p124 = por %p122, %p123
      %p125 = scmp.ne.s32.totalorder %s117, %s119
      %p126 = scmp.eq.s32.totalorder %s34, 3
      %p127 = por %p125, %p126
      %p128 = scmp.ne.s32.totalorder %s119, %s120
      %p129 = scmp.eq.s32.totalorder %s34, 0
      %p130 = por %p128, %p129
      %p131 = scmp.ne.s32.totalorder %s119, %s120
      %p132 = scmp.eq.s32.totalorder %s35, 3
      %p133 = por %p131, %p132
      %p135 = scmp.ne.s32.totalorder %s120, %s134
      %p136 = scmp.eq.s32.totalorder %s35, 0
      %p137 = por %p135, %p136
      %s139 = sadd.s32 %s138, 1
      %p142 = scmp.eq.s32.totalorder %s29, 3
      %p143 = scmp.ne.s32.totalorder %s138, %s140
      %p144 = scmp.eq.s32.totalorder %s29, 0
      %p145 = por %p143, %p144
      %p146 = scmp.ne.s32.totalorder %s138, %s140
      %p147 = scmp.eq.s32.totalorder %s34, 3
      %p148 = por %p146, %p147
      %p149 = scmp.ne.s32.totalorder %s140, %s141
      %p150 = scmp.eq.s32.totalorder %s34, 0
      %p151 = por %p149, %p150
      %p152 = scmp.ne.s32.totalorder %s140, %s141
      %p153 = scmp.eq.s32.totalorder %s35, 3
      %p154 = por %p152, %p153
      %p156 = scmp.ne.s32.totalorder %s141, %s155
      %p157 = scmp.eq.s32.totalorder %s35, 0
      %p158 = por %p156, %p157
      %s160 = sadd.s32 %s159, 1
      %p163 = scmp.eq.s32.totalorder %s29, 3
      %p164 = scmp.ne.s32.totalorder %s159, %s161
      %p165 = scmp.eq.s32.totalorder %s29, 0
      %p166 = por %p164, %p165
      %p167 = scmp.ne.s32.totalorder %s159, %s161
      %p168 = scmp.eq.s32.totalorder %s34, 3
      %p169 = por %p167, %p168
      %p170 = scmp.ne.s32.totalorder %s161, %s162
      %p171 = scmp.eq.s32.totalorder %s34, 0
      %p172 = por %p170, %p171
      %p173 = scmp.ne.s32.totalorder %s161, %s162
      %p174 = scmp.eq.s32.totalorder %s35, 3
      %p175 = por %p173, %p174
      %p177 = scmp.ne.s32.totalorder %s162, %s176
      %p178 = scmp.eq.s32.totalorder %s35, 0
      %p179 = por %p177, %p178
      %s181 = sadd.s32 %s180, 1
      %p184 = scmp.eq.s32.totalorder %s29, 3
      %p185 = scmp.ne.s32.totalorder %s180, %s182
      %p186 = scmp.eq.s32.totalorder %s29, 0
      %p187 = por %p185, %p186
      %p188 = scmp.ne.s32.totalorder %s180, %s182
      %p189 = scmp.eq.s32.totalorder %s34, 3
      %p190 = por %p188, %p189
      %p191 = scmp.ne.s32.totalorder %s182, %s183
      %p192 = scmp.eq.s32.totalorder %s34, 0
      %p193 = por %p191, %p192
      %p194 = scmp.ne.s32.totalorder %s182, %s183
      %p195 = scmp.eq.s32.totalorder %s35, 3
      %p196 = por %p194, %p195
      %p198 = scmp.ne.s32.totalorder %s183, %s197
      %p199 = scmp.eq.s32.totalorder %s35, 0
      %p200 = por %p198, %p199
      %s202 = sadd.s32 %s201, 1
      %p205 = scmp.eq.s32.totalorder %s29, 3
      %p206 = scmp.ne.s32.totalorder %s201, %s203
      %p207 = scmp.eq.s32.totalorder %s29, 0
      %p208 = por %p206, %p207
      %p209 = scmp.ne.s32.totalorder %s201, %s203
      %p210 = scmp.eq.s32.totalorder %s34, 3
      %p211 = por %p209, %p210
      %p212 = scmp.ne.s32.totalorder %s203, %s204
      %p213 = scmp.eq.s32.totalorder %s34, 0
      %p214 = por %p212, %p213
      %p215 = scmp.ne.s32.totalorder %s203, %s204
      %p216 = scmp.eq.s32.totalorder %s35, 3
      %p217 = por %p215, %p216
      %p219 = scmp.ne.s32.totalorder %s204, %s218
      %p220 = scmp.eq.s32.totalorder %s35, 0
      %p221 = por %p219, %p220
      %s223 = sadd.s32 %s222, 1
      %p226 = scmp.eq.s32.totalorder %s29, 3
      %p227 = scmp.ne.s32.totalorder %s222, %s224
      %p228 = scmp.eq.s32.totalorder %s29, 0
      %p229 = por %p227, %p228
      %p230 = scmp.ne.s32.totalorder %s222, %s224
      %p231 = scmp.eq.s32.totalorder %s34, 3
      %p232 = por %p230, %p231
      %p233 = scmp.ne.s32.totalorder %s224, %s225
      %p234 = scmp.eq.s32.totalorder %s34, 0
      %p235 = por %p233, %p234
      %p236 = scmp.ne.s32.totalorder %s224, %s225
      %p237 = scmp.eq.s32.totalorder %s35, 3
      %p238 = por %p236, %p237
      %p240 = scmp.ne.s32.totalorder %s225, %s239
      %p241 = scmp.eq.s32.totalorder %s35, 0
      %p242 = por %p240, %p241
      %s244 = sadd.s32 %s243, 1
      %p247 = scmp.eq.s32.totalorder %s29, 3
      %p248 = scmp.ne.s32.totalorder %s243, %s245
      %p249 = scmp.eq.s32.totalorder %s29, 0
      %p250 = por %p248, %p249
      %p251 = scmp.ne.s32.totalorder %s243, %s245
      %p252 = scmp.eq.s32.totalorder %s34, 3
      %p253 = por %p251, %p252
      %p254 = scmp.ne.s32.totalorder %s245, %s246
      %p255 = scmp.eq.s32.totalorder %s34, 0
      %p256 = por %p254, %p255
      %p257 = scmp.ne.s32.totalorder %s245, %s246
      %p258 = scmp.eq.s32.totalorder %s35, 3
      %p259 = por %p257, %p258
      %p261 = scmp.ne.s32.totalorder %s246, %s260
      %p262 = scmp.eq.s32.totalorder %s35, 0
      %p263 = por %p261, %p262
      %s265 = sadd.s32 %s264, 1
      %p268 = scmp.eq.s32.totalorder %s29, 3
      %p269 = scmp.ne.s32.totalorder %s264, %s266
      %p270 = scmp.eq.s32.totalorder %s29, 0
      %p271 = por %p269, %p270
      %p272 = scmp.ne.s32.totalorder %s264, %s266
      %p273 = scmp.eq.s32.totalorder %s34, 3
      %p274 = por %p272, %p273
      %p275 = scmp.ne.s32.totalorder %s266, %s267
      %p276 = scmp.eq.s32.totalorder %s34, 0
      %p277 = por %p275, %p276
      %p278 = scmp.ne.s32.totalorder %s266, %s267
      %p279 = scmp.eq.s32.totalorder %s35, 3
      %p280 = por %p278, %p279
      %p282 = scmp.ne.s32.totalorder %s267, %s281
      %p283 = scmp.eq.s32.totalorder %s35, 0
      %p284 = por %p282, %p283
      %s286 = sadd.s32 %s285, 1
      %p289 = scmp.eq.s32.totalorder %s29, 3
      %p290 = scmp.ne.s32.totalorder %s285, %s287
      %p291 = scmp.eq.s32.totalorder %s29, 0
      %p292 = por %p290, %p291
      %p293 = scmp.ne.s32.totalorder %s285, %s287
      %p294 = scmp.eq.s32.totalorder %s34, 3
      %p295 = por %p293, %p294
      %p296 = scmp.ne.s32.totalorder %s287, %s288
      %p297 = scmp.eq.s32.totalorder %s34, 0
      %p298 = por %p296, %p297
      %p299 = scmp.ne.s32.totalorder %s287, %s288
      %p300 = scmp.eq.s32.totalorder %s35, 3
      %p301 = por %p299, %p300
      %p303 = scmp.ne.s32.totalorder %s288, %s302
      %p304 = scmp.eq.s32.totalorder %s35, 0
      %p305 = por %p303, %p304
      %s307 = sadd.s32 %s306, 1
      %p310 = scmp.eq.s32.totalorder %s29, 3
      %p311 = scmp.ne.s32.totalorder %s306, %s308
      %p312 = scmp.eq.s32.totalorder %s29, 0
      %p313 = por %p311, %p312
      %p314 = scmp.ne.s32.totalorder %s306, %s308
      %p315 = scmp.eq.s32.totalorder %s34, 3
      %p316 = por %p314, %p315
      %p317 = scmp.ne.s32.totalorder %s308, %s309
      %p318 = scmp.eq.s32.totalorder %s34, 0
      %p319 = por %p317, %p318
      %p320 = scmp.ne.s32.totalorder %s308, %s309
      %p321 = scmp.eq.s32.totalorder %s35, 3
      %p322 = por %p320, %p321
      %p324 = scmp.ne.s32.totalorder %s309, %s323
      %p325 = scmp.eq.s32.totalorder %s35, 0
      %p326 = por %p324, %p325
      %s327 = ssub.s32 %s36, %s48
      %s328 = ssub.s32 %s37, %s44
      %s329 = sor.u32 %s327, %s328
      %p330 = scmp.eq.s32.totalorder %s329, 0
      %s332 = sadd.s32 %s331, 1
      %s333 = scalar_select %p330, %s331, %s332
      %p336 = pneg %p330
      %p337 = scmp.eq.s32.totalorder %s29, 3
      %p338 = por %p336, %p337
      %p339 = scmp.ne.s32.totalorder %s331, %s334
      %p340 = scmp.eq.s32.totalorder %s29, 0
      %p341 = por %p339, %p340
      %p342 = scmp.ne.s32.totalorder %s331, %s334
      %p343 = scmp.eq.s32.totalorder %s34, 3
      %p344 = por %p342, %p343
      %p345 = scmp.ne.s32.totalorder %s334, %s335
      %p346 = scmp.eq.s32.totalorder %s34, 0
      %p347 = por %p345, %p346
      %p348 = scmp.ne.s32.totalorder %s334, %s335
      %p349 = scmp.eq.s32.totalorder %s35, 3
      %p350 = por %p348, %p349
      %p352 = scmp.ne.s32.totalorder %s335, %s351
      %p353 = scmp.eq.s32.totalorder %s35, 0
      %p354 = por %p352, %p353
      %p355 = scmp.le.s32.totalorder 1, %s29
      %p356 = scmp.lt.s32.totalorder %s29, 5
      %p357 = pnand %p355, %p356
      %p358 = pneg %p357
      // Predicated region
      $region9: #{tpu_custom_call.1} parent=5 // pred_check
        _
      $region10: #{tpu_custom_call.1} parent=5 // pred_check_branch
        %360 = sbr.rel (%p357) target = $region12
      $region11: #{tpu_custom_call.1} parent=5 // pred_region
        %s361 = ssub.s32 %s29, 1
        // Predicated region
        $region13: #{tpu_custom_call.1} parent=11 // pred_check
          %p362 = pneg %p88
        $region14: #{tpu_custom_call.1} parent=11 // pred_check_branch
          %364 = sbr.rel (%p362) target = $region16
        $region15: #{tpu_custom_call.1} parent=11 // pred_region
          %366 = vsyncadd [#allocation7], 0
          %s367 = sshll.u32 %s1, 4
          %s368 = int_to_ptr.hbm [resolvable:$true] %s367
          %s369 = sshll.u32 [#allocation6], 4
          %s370 = int_to_ptr.vmem [resolvable:$true] %s369
          %375 = dma.hbm_to_vmem [thread:$0]  %s368, 12288, %s370, [#allocation7], 384, 384, 24
        $region16: #{tpu_custom_call.1} parent=11 // pred_fallthru
          _
        // Predicated region
        $region17: #{tpu_custom_call.1} parent=11 // pred_check
          %p376 = pneg %p109
        $region18: #{tpu_custom_call.1} parent=11 // pred_check_branch
          %378 = sbr.rel (%p376) target = $region20
        $region19: #{tpu_custom_call.1} parent=11 // pred_region
          %380 = vsyncadd [#allocation7], 0
          %s382 = sshll.u32 %s2, 4
          %s383 = int_to_ptr.hbm [resolvable:$true] %s382
          %s384 = sshll.u32 [#allocation8], 4
          %s385 = int_to_ptr.vmem [resolvable:$true] %s384
          %387 = dma.hbm_to_vmem [thread:$0]  %s383, 96, %s385, [#allocation7]
        $region20: #{tpu_custom_call.1} parent=11 // pred_fallthru
          _
        // Predicated region
        $region21: #{tpu_custom_call.1} parent=11 // pred_check
          %p388 = pneg %p130
        $region22: #{tpu_custom_call.1} parent=11 // pred_check_branch
          %390 = sbr.rel (%p388) target = $region24
        $region23: #{tpu_custom_call.1} parent=11 // pred_region
          %392 = vsyncadd [#allocation10], 0
          %s393 = sshll.u32 %s3, 4
          %s394 = int_to_ptr.hbm [resolvable:$true] %s393
          %s395 = sshll.u32 [#allocation9], 4
          %s396 = int_to_ptr.vmem [resolvable:$true] %s395
          %401 = dma.hbm_to_vmem [thread:$0]  %s394, 4096, %s396, [#allocation10], 128, 128, 8
        $region24: #{tpu_custom_call.1} parent=11 // pred_fallthru
          _
        // Predicated region
        $region25: #{tpu_custom_call.1} parent=11 // pred_check
          %p402 = pneg %p151
        $region26: #{tpu_custom_call.1} parent=11 // pred_check_branch
          %404 = sbr.rel (%p402) target = $region28
        $region27: #{tpu_custom_call.1} parent=11 // pred_region
          _
        $region28: #{tpu_custom_call.1} parent=11 // pred_fallthru
          _
        // Predicated region
        $region29: #{tpu_custom_call.1} parent=11 // pred_check
          %p405 = pneg %p172
        $region30: #{tpu_custom_call.1} parent=11 // pred_check_branch
          %407 = sbr.rel (%p405) target = $region32
        $region31: #{tpu_custom_call.1} parent=11 // pred_region
          _
        $region32: #{tpu_custom_call.1} parent=11 // pred_fallthru
          _
        // Predicated region
        $region33: #{tpu_custom_call.1} parent=11 // pred_check
          %p408 = pneg %p193
        $region34: #{tpu_custom_call.1} parent=11 // pred_check_branch
          %410 = sbr.rel (%p408) target = $region36
        $region35: #{tpu_custom_call.1} parent=11 // pred_region
          %412 = vsyncadd [#allocation10], 0
          %s414 = sshll.u32 %s6, 4
          %s415 = int_to_ptr.hbm [resolvable:$true] %s414
          %s416 = sshll.u32 [#allocation11], 4
          %s417 = int_to_ptr.vmem [resolvable:$true] %s416
          %419 = dma.hbm_to_vmem [thread:$0]  %s415, 32, %s417, [#allocation10]
        $region36: #{tpu_custom_call.1} parent=11 // pred_fallthru
          _
        // Predicated region
        $region37: #{tpu_custom_call.1} parent=11 // pred_check
          %p420 = pneg %p214
        $region38: #{tpu_custom_call.1} parent=11 // pred_check_branch
          %422 = sbr.rel (%p420) target = $region40
        $region39: #{tpu_custom_call.1} parent=11 // pred_region
          _
        $region40: #{tpu_custom_call.1} parent=11 // pred_fallthru
          _
        // Predicated region
        $region41: #{tpu_custom_call.1} parent=11 // pred_check
          %p423 = pneg %p235
        $region42: #{tpu_custom_call.1} parent=11 // pred_check_branch
          %425 = sbr.rel (%p423) target = $region44
        $region43: #{tpu_custom_call.1} parent=11 // pred_region
          %427 = vsyncadd [#allocation13], 0
          %s429 = sshll.u32 %s8, 4
          %s430 = int_to_ptr.hbm [resolvable:$true] %s429
          %s431 = sshll.u32 [#allocation12], 4
          %s432 = int_to_ptr.vmem [resolvable:$true] %s431
          %434 = dma.hbm_to_vmem [thread:$0]  %s430, 32, %s432, [#allocation13]
        $region44: #{tpu_custom_call.1} parent=11 // pred_fallthru
          _
        // Predicated region
        $region45: #{tpu_custom_call.1} parent=11 // pred_check
          %p435 = pneg %p256
        $region46: #{tpu_custom_call.1} parent=11 // pred_check_branch
          %437 = sbr.rel (%p435) target = $region48
        $region47: #{tpu_custom_call.1} parent=11 // pred_region
          %439 = vsyncadd [#allocation13], 0
          %s440 = sshll.u32 %s9, 4
          %s441 = int_to_ptr.hbm [resolvable:$true] %s440
          %s442 = sshll.u32 [#allocation14], 4
          %s443 = int_to_ptr.vmem [resolvable:$true] %s442
          %448 = dma.hbm_to_vmem [thread:$0]  %s441, 4096, %s443, [#allocation13], 128, 128, 8
        $region48: #{tpu_custom_call.1} parent=11 // pred_fallthru
          _
        // Predicated region
        $region49: #{tpu_custom_call.1} parent=11 // pred_check
          %p449 = pneg %p277
        $region50: #{tpu_custom_call.1} parent=11 // pred_check_branch
          %451 = sbr.rel (%p449) target = $region52
        $region51: #{tpu_custom_call.1} parent=11 // pred_region
          _
        $region52: #{tpu_custom_call.1} parent=11 // pred_fallthru
          _
        // Predicated region
        $region53: #{tpu_custom_call.1} parent=11 // pred_check
          %p452 = pneg %p298
        $region54: #{tpu_custom_call.1} parent=11 // pred_check_branch
          %454 = sbr.rel (%p452) target = $region56
        $region55: #{tpu_custom_call.1} parent=11 // pred_region
          %456 = vsyncadd [#allocation16], 0
          %s457 = sshll.u32 %s11, 4
          %s458 = int_to_ptr.hbm [resolvable:$true] %s457
          %s459 = sshll.u32 [#allocation15], 4
          %s460 = int_to_ptr.vmem [resolvable:$true] %s459
          %465 = dma.hbm_to_vmem [thread:$0]  %s458, 4096, %s460, [#allocation16], 128, 128, 8
        $region56: #{tpu_custom_call.1} parent=11 // pred_fallthru
          _
        // Predicated region
        $region57: #{tpu_custom_call.1} parent=11 // pred_check
          %p466 = pneg %p319
        $region58: #{tpu_custom_call.1} parent=11 // pred_check_branch
          %468 = sbr.rel (%p466) target = $region60
        $region59: #{tpu_custom_call.1} parent=11 // pred_region
          _
        $region60: #{tpu_custom_call.1} parent=11 // pred_fallthru
          _
      $region12: #{tpu_custom_call.1} parent=5 // pred_fallthru
        _
      %p469 = scmp.lt.s32.totalorder %s29, 4
      // Predicated region
      $region61: #{tpu_custom_call.1} parent=5 // pred_check
        %p470 = pneg %p469
      $region62: #{tpu_custom_call.1} parent=5 // pred_check_branch
        %472 = sbr.rel (%p470) target = $region64
      $region63: #{tpu_custom_call.1} parent=5 // pred_region
        // Predicated region
        $region65: #{tpu_custom_call.1} parent=63 // pred_check
          %p473 = pneg %p61
        $region66: #{tpu_custom_call.1} parent=63 // pred_check_branch
          %475 = sbr.rel (%p473) target = $region68
        $region67: #{tpu_custom_call.1} parent=63 // pred_region
          %s476 = sand.u32 %s51, 1
          %s477 = scalar_lea.sflag [#allocation4], %s476
          %s478 = sand.u32 %s51, 1
          %s479 = smul.addr %s478, 128
          %s480 = scalar_lea.vmem [#allocation3], %s479
          %482 = vsyncadd %s477, 0
          %s483 = smul.addr %s36, 32
          %s484 = smul.addr %s483, 4
          %s485 = scalar_lea.hbm %s0, %s484
          %s486 = sshll.u32 %s485, 4
          %s487 = int_to_ptr.hbm [resolvable:$true] %s486
          %s488 = sshll.u32 %s480, 4
          %s489 = int_to_ptr.vmem [resolvable:$true] %s488
          %494 = dma.hbm_to_vmem [thread:$0]  %s487, 2048, %s489, %s477, 128, 128, 8
        $region68: #{tpu_custom_call.1} parent=63 // pred_fallthru
          _
      $region64: #{tpu_custom_call.1} parent=5 // pred_fallthru
        _
      %p495 = scmp.le.s32.totalorder 1, %s29
      %p496 = scmp.lt.s32.totalorder %s29, 5
      %p497 = pnand %p495, %p496
      %p498 = pneg %p497
      // Predicated region
      $region69: #{tpu_custom_call.1} parent=5 // pred_check
        _
      $region70: #{tpu_custom_call.1} parent=5 // pred_check_branch
        %500 = sbr.rel (%p497) target = $region72
      $region71: #{tpu_custom_call.1} parent=5 // pred_region
        %s501 = ssub.s32 %s29, 1
        %s502 = sand.u32 %s54, 1
        %s503 = scalar_lea.sflag [#allocation4], %s502
        %s504 = sand.u32 %s54, 1
        %s505 = smul.addr %s504, 128
        %s506 = scalar_lea.vmem [#allocation3], %s505
        // Predicated region
        $region73: #{tpu_custom_call.1} parent=71 // pred_check
          %p507 = pneg %p67
        $region74: #{tpu_custom_call.1} parent=71 // pred_check_branch
          %509 = sbr.rel (%p507) target = $region76
        $region75: #{tpu_custom_call.1} parent=71 // pred_region
          %511 = dma.done %s503, 2048
        $region76: #{tpu_custom_call.1} parent=71 // pred_fallthru
          _
        // Predicated region
        $region77: #{tpu_custom_call.1} parent=71 // pred_check
          %p512 = pneg %p88
        $region78: #{tpu_custom_call.1} parent=71 // pred_check_branch
          %514 = sbr.rel (%p512) target = $region80
        $region79: #{tpu_custom_call.1} parent=71 // pred_region
          %516 = dma.done [#allocation7], 12288
        $region80: #{tpu_custom_call.1} parent=71 // pred_fallthru
          _
        // Predicated region
        $region81: #{tpu_custom_call.1} parent=71 // pred_check
          %p517 = pneg %p109
        $region82: #{tpu_custom_call.1} parent=71 // pred_check_branch
          %519 = sbr.rel (%p517) target = $region84
        $region83: #{tpu_custom_call.1} parent=71 // pred_region
          %521 = dma.done [#allocation7], 96
        $region84: #{tpu_custom_call.1} parent=71 // pred_fallthru
          _
        // Predicated region
        $region85: #{tpu_custom_call.1} parent=71 // pred_check
          %p522 = pneg %p130
        $region86: #{tpu_custom_call.1} parent=71 // pred_check_branch
          %524 = sbr.rel (%p522) target = $region88
        $region87: #{tpu_custom_call.1} parent=71 // pred_region
          %526 = dma.done [#allocation10], 4096
        $region88: #{tpu_custom_call.1} parent=71 // pred_fallthru
          _
        // Predicated region
        $region89: #{tpu_custom_call.1} parent=71 // pred_check
          %p527 = pneg %p193
        $region90: #{tpu_custom_call.1} parent=71 // pred_check_branch
          %529 = sbr.rel (%p527) target = $region92
        $region91: #{tpu_custom_call.1} parent=71 // pred_region
          %531 = dma.done [#allocation10], 32
        $region92: #{tpu_custom_call.1} parent=71 // pred_fallthru
          _
        // Predicated region
        $region93: #{tpu_custom_call.1} parent=71 // pred_check
          %p532 = pneg %p235
        $region94: #{tpu_custom_call.1} parent=71 // pred_check_branch
          %534 = sbr.rel (%p532) target = $region96
        $region95: #{tpu_custom_call.1} parent=71 // pred_region
          %536 = dma.done [#allocation13], 32
        $region96: #{tpu_custom_call.1} parent=71 // pred_fallthru
          _
        // Predicated region
        $region97: #{tpu_custom_call.1} parent=71 // pred_check
          %p537 = pneg %p256
        $region98: #{tpu_custom_call.1} parent=71 // pred_check_branch
          %539 = sbr.rel (%p537) target = $region100
        $region99: #{tpu_custom_call.1} parent=71 // pred_region
          %541 = dma.done [#allocation13], 4096
        $region100: #{tpu_custom_call.1} parent=71 // pred_fallthru
          _
        // Predicated region
        $region101: #{tpu_custom_call.1} parent=71 // pred_check
          %p542 = pneg %p298
        $region102: #{tpu_custom_call.1} parent=71 // pred_check_branch
          %544 = sbr.rel (%p542) target = $region104
        $region103: #{tpu_custom_call.1} parent=71 // pred_region
          %546 = dma.done [#allocation16], 4096
        $region104: #{tpu_custom_call.1} parent=71 // pred_fallthru
          _
        %s547 = sand.u32 %s54, 1
        %s548 = scalar_lea.sflag [#allocation4], %s547
        %s549 = sand.u32 %s54, 1
        %s550 = smul.addr %s549, 128
        %s551 = scalar_lea.vmem [#allocation3], %s550
        %p552 = pneg %p67
        %p553 = pneg %p64
        %p554 = pneg %p88
        %p555 = pneg %p85
        %p556 = pneg %p109
        %p557 = pneg %p106
        %p558 = pneg %p130
        %p559 = pneg %p127
        %p560 = pneg %p151
        %p561 = pneg %p148
        %p562 = pneg %p172
        %p563 = pneg %p169
        %p564 = pneg %p193
        %p565 = pneg %p190
        %p566 = pneg %p214
        %p567 = pneg %p211
        %p568 = pneg %p235
        %p569 = pneg %p232
        %p570 = pneg %p256
        %p571 = pneg %p253
        %p572 = pneg %p277
        %p573 = pneg %p274
        %p574 = pneg %p298
        %p575 = pneg %p295
        %p576 = pneg %p319
        %p577 = pneg %p316
        %p578 = pneg %p347
        %p579 = pneg %p344
        %s580 = sand.u32 %s334, 1
        %s581 = scalar_lea.sflag [#allocation5], %s580
        %s582 = sand.u32 %s334, 1
        %s583 = smul.addr %s582, 128
        %s584 = scalar_lea.vmem [#allocation17], %s583
        %s585 = smul.u32 8, %s39
        %p586 = scmp.eq.s32.totalorder %s39, 0
        // Predicated region
        $region105: #{tpu_custom_call.1} parent=71 // pred_check
          %p587 = pneg %p586
        $region106: #{tpu_custom_call.1} parent=71 // pred_check_branch
          %589 = sbr.rel (%p587) target = $region108
        $region107: #{tpu_custom_call.1} parent=71 // pred_region
          %v590 = vld [vmem:[%s506] sm:$0xff]
          %v591 = vld [vmem:[%s506 + $0x8] sm:$0xff]
          %v592 = vld [vmem:[%s506 + $0x10] sm:$0xff]
          %v593 = vld [vmem:[%s506 + $0x18] sm:$0xff]
          %v594 = vld [vmem:[%s506 + $0x20] sm:$0xff]
          %v595 = vld [vmem:[%s506 + $0x28] sm:$0xff]
          %v596 = vld [vmem:[%s506 + $0x30] sm:$0xff]
          %v597 = vld [vmem:[%s506 + $0x38] sm:$0xff]
          %v598 = vld [vmem:[%s506 + $0x40] sm:$0xff]
          %v599 = vld [vmem:[%s506 + $0x48] sm:$0xff]
          %v600 = vld [vmem:[%s506 + $0x50] sm:$0xff]
          %v601 = vld [vmem:[%s506 + $0x58] sm:$0xff]
          %v602 = vld [vmem:[%s506 + $0x60] sm:$0xff]
          %v603 = vld [vmem:[%s506 + $0x68] sm:$0xff]
          %v604 = vld [vmem:[%s506 + $0x70] sm:$0xff]
          %v605 = vld [vmem:[%s506 + $0x78] sm:$0xff]
          %v606 = vunpack.c.l.bf16 %v590
          %v607 = vunpack.c.h.bf16 %v590
          %v608 = vunpack.c.l.bf16 %v591
          %v609 = vunpack.c.h.bf16 %v591
          %v610 = vunpack.c.l.bf16 %v592
          %v611 = vunpack.c.h.bf16 %v592
          %v612 = vunpack.c.l.bf16 %v593
          %v613 = vunpack.c.h.bf16 %v593
          %v614 = vunpack.c.l.bf16 %v594
          %v615 = vunpack.c.h.bf16 %v594
          %v616 = vunpack.c.l.bf16 %v595
          %v617 = vunpack.c.h.bf16 %v595
          %v618 = vunpack.c.l.bf16 %v596
          %v619 = vunpack.c.h.bf16 %v596
          %v620 = vunpack.c.l.bf16 %v597
          %v621 = vunpack.c.h.bf16 %v597
          %v622 = vunpack.c.l.bf16 %v598
          %v623 = vunpack.c.h.bf16 %v598
          %v624 = vunpack.c.l.bf16 %v599
          %v625 = vunpack.c.h.bf16 %v599
          %v626 = vunpack.c.l.bf16 %v600
          %v627 = vunpack.c.h.bf16 %v600
          %v628 = vunpack.c.l.bf16 %v601
          %v629 = vunpack.c.h.bf16 %v601
          %v630 = vunpack.c.l.bf16 %v602
          %v631 = vunpack.c.h.bf16 %v602
          %v632 = vunpack.c.l.bf16 %v603
          %v633 = vunpack.c.h.bf16 %v603
          %v634 = vunpack.c.l.bf16 %v604
          %v635 = vunpack.c.h.bf16 %v604
          %v636 = vunpack.c.l.bf16 %v605
          %v637 = vunpack.c.h.bf16 %v605
          %v638 = vld [vmem:[%s5] sm:$0x3]
          %v639 = vld [vmem:[#allocation11] sm:$0x3]
          %v640 = vadd.f32 %v606, %v607
          %641 = vadd.xlane.f32.xlu0 %v640
          %v642 = vpop.xlane.xlu0 %641
          %v643 = vadd.f32 %v608, %v609
          %644 = vadd.xlane.f32.xlu0 %v643
          %v645 = vpop.xlane.xlu0 %644
          %v646 = vadd.f32 %v610, %v611
          %647 = vadd.xlane.f32.xlu0 %v646
          %v648 = vpop.xlane.xlu0 %647
          %v649 = vadd.f32 %v612, %v613
          %650 = vadd.xlane.f32.xlu0 %v649
          %v651 = vpop.xlane.xlu0 %650
          %v652 = vadd.f32 %v614, %v615
          %653 = vadd.xlane.f32.xlu0 %v652
          %v654 = vpop.xlane.xlu0 %653
          %v655 = vadd.f32 %v616, %v617
          %656 = vadd.xlane.f32.xlu0 %v655
          %v657 = vpop.xlane.xlu0 %656
          %v658 = vadd.f32 %v618, %v619
          %659 = vadd.xlane.f32.xlu0 %v658
          %v660 = vpop.xlane.xlu0 %659
          %v661 = vadd.f32 %v620, %v621
          %662 = vadd.xlane.f32.xlu0 %v661
          %v663 = vpop.xlane.xlu0 %662
          %v664 = vadd.f32 %v622, %v623
          %665 = vadd.xlane.f32.xlu0 %v664
          %v666 = vpop.xlane.xlu0 %665
          %v667 = vadd.f32 %v624, %v625
          %668 = vadd.xlane.f32.xlu0 %v667
          %v669 = vpop.xlane.xlu0 %668
          %v670 = vadd.f32 %v626, %v627
          %671 = vadd.xlane.f32.xlu0 %v670
          %v672 = vpop.xlane.xlu0 %671
          %v673 = vadd.f32 %v628, %v629
          %674 = vadd.xlane.f32.xlu0 %v673
          %v675 = vpop.xlane.xlu0 %674
          %v676 = vadd.f32 %v630, %v631
          %677 = vadd.xlane.f32.xlu0 %v676
          %v678 = vpop.xlane.xlu0 %677
          %v679 = vadd.f32 %v632, %v633
          %680 = vadd.xlane.f32.xlu0 %v679
          %v681 = vpop.xlane.xlu0 %680
          %v682 = vadd.f32 %v634, %v635
          %683 = vadd.xlane.f32.xlu0 %v682
          %v684 = vpop.xlane.xlu0 %683
          %v685 = vadd.f32 %v636, %v637
          %686 = vadd.xlane.f32.xlu0 %v685
          %v687 = vpop.xlane.xlu0 %686
          %v688 = vrcp.pop 256.0
          %v689 = vmul.f32 256.0, %v688
          %v690 = vsub.f32 1.0, %v689
          %v691 = vmul.f32 %v688, %v690
          %v692 = vadd.f32 %v688, %v691
          %vm693 = vweird.f32 %v688
          %v694 = vsel %vm693, %v688, %v692
          %v695 = vmul.f32 %v642, %v694
          %v696 = vmul.f32 %v645, %v694
          %v697 = vmul.f32 %v648, %v694
          %v698 = vmul.f32 %v651, %v694
          %v699 = vmul.f32 %v654, %v694
          %v700 = vmul.f32 %v657, %v694
          %v701 = vmul.f32 %v660, %v694
          %v702 = vmul.f32 %v663, %v694
          %v703 = vmul.f32 %v666, %v694
          %v704 = vmul.f32 %v669, %v694
          %v705 = vmul.f32 %v672, %v694
          %v706 = vmul.f32 %v675, %v694
          %v707 = vmul.f32 %v678, %v694
          %v708 = vmul.f32 %v681, %v694
          %v709 = vmul.f32 %v684, %v694
          %v710 = vmul.f32 %v687, %v694
          %v711 = vmul.f32 %v606, %v606
          %v712 = vmul.f32 %v607, %v607
          %v713 = vmul.f32 %v608, %v608
          %v714 = vmul.f32 %v609, %v609
          %v715 = vmul.f32 %v610, %v610
          %v716 = vmul.f32 %v611, %v611
          %v717 = vmul.f32 %v612, %v612
          %v718 = vmul.f32 %v613, %v613
          %v719 = vmul.f32 %v614, %v614
          %v720 = vmul.f32 %v615, %v615
          %v721 = vmul.f32 %v616, %v616
          %v722 = vmul.f32 %v617, %v617
          %v723 = vmul.f32 %v618, %v618
          %v724 = vmul.f32 %v619, %v619
          %v725 = vmul.f32 %v620, %v620
          %v726 = vmul.f32 %v621, %v621
          %v727 = vmul.f32 %v622, %v622
          %v728 = vmul.f32 %v623, %v623
          %v729 = vmul.f32 %v624, %v624
          %v730 = vmul.f32 %v625, %v625
          %v731 = vmul.f32 %v626, %v626
          %v732 = vmul.f32 %v627, %v627
          %v733 = vmul.f32 %v628, %v628
          %v734 = vmul.f32 %v629, %v629
          %v735 = vmul.f32 %v630, %v630
          %v736 = vmul.f32 %v631, %v631
          %v737 = vmul.f32 %v632, %v632
          %v738 = vmul.f32 %v633, %v633
          %v739 = vmul.f32 %v634, %v634
          %v740 = vmul.f32 %v635, %v635
          %v741 = vmul.f32 %v636, %v636
          %v742 = vmul.f32 %v637, %v637
          %v743 = vadd.f32 %v711, %v712
          %744 = vadd.xlane.f32.xlu0 %v743
          %v745 = vpop.xlane.xlu0 %744
          %v746 = vadd.f32 %v713, %v714
          %747 = vadd.xlane.f32.xlu0 %v746
          %v748 = vpop.xlane.xlu0 %747
          %v749 = vadd.f32 %v715, %v716
          %750 = vadd.xlane.f32.xlu0 %v749
          %v751 = vpop.xlane.xlu0 %750
          %v752 = vadd.f32 %v717, %v718
          %753 = vadd.xlane.f32.xlu0 %v752
          %v754 = vpop.xlane.xlu0 %753
          %v755 = vadd.f32 %v719, %v720
          %756 = vadd.xlane.f32.xlu0 %v755
          %v757 = vpop.xlane.xlu0 %756
          %v758 = vadd.f32 %v721, %v722
          %759 = vadd.xlane.f32.xlu0 %v758
          %v760 = vpop.xlane.xlu0 %759
          %v761 = vadd.f32 %v723, %v724
          %762 = vadd.xlane.f32.xlu0 %v761
          %v763 = vpop.xlane.xlu0 %762
          %v764 = vadd.f32 %v725, %v726
          %765 = vadd.xlane.f32.xlu0 %v764
          %v766 = vpop.xlane.xlu0 %765
          %v767 = vadd.f32 %v727, %v728
          %768 = vadd.xlane.f32.xlu0 %v767
          %v769 = vpop.xlane.xlu0 %768
          %v770 = vadd.f32 %v729, %v730
          %771 = vadd.xlane.f32.xlu0 %v770
          %v772 = vpop.xlane.xlu0 %771
          %v773 = vadd.f32 %v731, %v732
          %774 = vadd.xlane.f32.xlu0 %v773
          %v775 = vpop.xlane.xlu0 %774
          %v776 = vadd.f32 %v733, %v734
          %777 = vadd.xlane.f32.xlu0 %v776
          %v778 = vpop.xlane.xlu0 %777
          %v779 = vadd.f32 %v735, %v736
          %780 = vadd.xlane.f32.xlu0 %v779
          %v781 = vpop.xlane.xlu0 %780
          %v782 = vadd.f32 %v737, %v738
          %783 = vadd.xlane.f32.xlu0 %v782
          %v784 = vpop.xlane.xlu0 %783
          %v785 = vadd.f32 %v739, %v740
          %786 = vadd.xlane.f32.xlu0 %v785
          %v787 = vpop.xlane.xlu0 %786
          %v788 = vadd.f32 %v741, %v742
          %789 = vadd.xlane.f32.xlu0 %v788
          %v790 = vpop.xlane.xlu0 %789
          %v791 = vmul.f32 %v745, %v694
          %v792 = vmul.f32 %v748, %v694
          %v793 = vmul.f32 %v751, %v694
          %v794 = vmul.f32 %v754, %v694
          %v795 = vmul.f32 %v757, %v694
          %v796 = vmul.f32 %v760, %v694
          %v797 = vmul.f32 %v763, %v694
          %v798 = vmul.f32 %v766, %v694
          %v799 = vmul.f32 %v769, %v694
          %v800 = vmul.f32 %v772, %v694
          %v801 = vmul.f32 %v775, %v694
          %v802 = vmul.f32 %v778, %v694
          %v803 = vmul.f32 %v781, %v694
          %v804 = vmul.f32 %v784, %v694
          %v805 = vmul.f32 %v787, %v694
          %v806 = vmul.f32 %v790, %v694
          %v807 = vmul.f32 %v695, %v695
          %v808 = vmul.f32 %v696, %v696
          %v809 = vmul.f32 %v697, %v697
          %v810 = vmul.f32 %v698, %v698
          %v811 = vmul.f32 %v699, %v699
          %v812 = vmul.f32 %v700, %v700
          %v813 = vmul.f32 %v701, %v701
          %v814 = vmul.f32 %v702, %v702
          %v815 = vmul.f32 %v703, %v703
          %v816 = vmul.f32 %v704, %v704
          %v817 = vmul.f32 %v705, %v705
          %v818 = vmul.f32 %v706, %v706
          %v819 = vmul.f32 %v707, %v707
          %v820 = vmul.f32 %v708, %v708
          %v821 = vmul.f32 %v709, %v709
          %v822 = vmul.f32 %v710, %v710
          %v823 = vsub.f32 %v791, %v807
          %v824 = vsub.f32 %v792, %v808
          %v825 = vsub.f32 %v793, %v809
          %v826 = vsub.f32 %v794, %v810
          %v827 = vsub.f32 %v795, %v811
          %v828 = vsub.f32 %v796, %v812
          %v829 = vsub.f32 %v797, %v813
          %v830 = vsub.f32 %v798, %v814
          %v831 = vsub.f32 %v799, %v815
          %v832 = vsub.f32 %v800, %v816
          %v833 = vsub.f32 %v801, %v817
          %v834 = vsub.f32 %v802, %v818
          %v835 = vsub.f32 %v803, %v819
          %v836 = vsub.f32 %v804, %v820
          %v837 = vsub.f32 %v805, %v821
          %v838 = vsub.f32 %v806, %v822
          %v839 = vmax.f32 %v823, 0.0
          %v840 = vmax.f32 %v824, 0.0
          %v841 = vmax.f32 %v825, 0.0
          %v842 = vmax.f32 %v826, 0.0
          %v843 = vmax.f32 %v827, 0.0
          %v844 = vmax.f32 %v828, 0.0
          %v845 = vmax.f32 %v829, 0.0
          %v846 = vmax.f32 %v830, 0.0
          %v847 = vmax.f32 %v831, 0.0
          %v848 = vmax.f32 %v832, 0.0
          %v849 = vmax.f32 %v833, 0.0
          %v850 = vmax.f32 %v834, 0.0
          %v851 = vmax.f32 %v835, 0.0
          %v852 = vmax.f32 %v836, 0.0
          %v853 = vmax.f32 %v837, 0.0
          %v854 = vmax.f32 %v838, 0.0
          %v855 = vsub.f32 %v606, %v695
          %v856 = vsub.f32 %v607, %v695
          %v857 = vsub.f32 %v608, %v696
          %v858 = vsub.f32 %v609, %v696
          %v859 = vsub.f32 %v610, %v697
          %v860 = vsub.f32 %v611, %v697
          %v861 = vsub.f32 %v612, %v698
          %v862 = vsub.f32 %v613, %v698
          %v863 = vsub.f32 %v614, %v699
          %v864 = vsub.f32 %v615, %v699
          %v865 = vsub.f32 %v616, %v700
          %v866 = vsub.f32 %v617, %v700
          %v867 = vsub.f32 %v618, %v701
          %v868 = vsub.f32 %v619, %v701
          %v869 = vsub.f32 %v620, %v702
          %v870 = vsub.f32 %v621, %v702
          %v871 = vsub.f32 %v622, %v703
          %v872 = vsub.f32 %v623, %v703
          %v873 = vsub.f32 %v624, %v704
          %v874 = vsub.f32 %v625, %v704
          %v875 = vsub.f32 %v626, %v705
          %v876 = vsub.f32 %v627, %v705
          %v877 = vsub.f32 %v628, %v706
          %v878 = vsub.f32 %v629, %v706
          %v879 = vsub.f32 %v630, %v707
          %v880 = vsub.f32 %v631, %v707
          %v881 = vsub.f32 %v632, %v708
          %v882 = vsub.f32 %v633, %v708
          %v883 = vsub.f32 %v634, %v709
          %v884 = vsub.f32 %v635, %v709
          %v885 = vsub.f32 %v636, %v710
          %v886 = vsub.f32 %v637, %v710
          %v887 = vadd.f32 %v839, 1e-05
          %v888 = vadd.f32 %v840, 1e-05
          %v889 = vadd.f32 %v841, 1e-05
          %v890 = vadd.f32 %v842, 1e-05
          %v891 = vadd.f32 %v843, 1e-05
          %v892 = vadd.f32 %v844, 1e-05
          %v893 = vadd.f32 %v845, 1e-05
          %v894 = vadd.f32 %v846, 1e-05
          %v895 = vadd.f32 %v847, 1e-05
          %v896 = vadd.f32 %v848, 1e-05
          %v897 = vadd.f32 %v849, 1e-05
          %v898 = vadd.f32 %v850, 1e-05
          %v899 = vadd.f32 %v851, 1e-05
          %v900 = vadd.f32 %v852, 1e-05
          %v901 = vadd.f32 %v853, 1e-05
          %v902 = vadd.f32 %v854, 1e-05
          %v903 = vrsqrt.pop %v887
          %v904 = vmul.f32 %v903, %v887
          %v905 = vmul.f32 %v904, %v903
          %v906 = vmul.f32 0.5, %v905
          %v907 = vsub.f32 1.5, %v906
          %v908 = vmul.f32 %v903, %v907
          %vm909 = vweird.f32 %v887
          %vm910 = vweird.f32 %v903
          %vm911 = vmor %vm909, %vm910
          %v912 = vsel %vm911, %v903, %v908
          %v913 = vrsqrt.pop %v888
          %v914 = vmul.f32 %v913, %v888
          %v915 = vmul.f32 %v914, %v913
          %v916 = vmul.f32 0.5, %v915
          %v917 = vsub.f32 1.5, %v916
          %v918 = vmul.f32 %v913, %v917
          %vm919 = vweird.f32 %v888
          %vm920 = vweird.f32 %v913
          %vm921 = vmor %vm919, %vm920
          %v922 = vsel %vm921, %v913, %v918
          %v923 = vrsqrt.pop %v889
          %v924 = vmul.f32 %v923, %v889
          %v925 = vmul.f32 %v924, %v923
          %v926 = vmul.f32 0.5, %v925
          %v927 = vsub.f32 1.5, %v926
          %v928 = vmul.f32 %v923, %v927
          %vm929 = vweird.f32 %v889
          %vm930 = vweird.f32 %v923
          %vm931 = vmor %vm929, %vm930
          %v932 = vsel %vm931, %v923, %v928
          %v933 = vrsqrt.pop %v890
          %v934 = vmul.f32 %v933, %v890
          %v935 = vmul.f32 %v934, %v933
          %v936 = vmul.f32 0.5, %v935
          %v937 = vsub.f32 1.5, %v936
          %v938 = vmul.f32 %v933, %v937
          %vm939 = vweird.f32 %v890
          %vm940 = vweird.f32 %v933
          %vm941 = vmor %vm939, %vm940
          %v942 = vsel %vm941, %v933, %v938
          %v943 = vrsqrt.pop %v891
          %v944 = vmul.f32 %v943, %v891
          %v945 = vmul.f32 %v944, %v943
          %v946 = vmul.f32 0.5, %v945
          %v947 = vsub.f32 1.5, %v946
          %v948 = vmul.f32 %v943, %v947
          %vm949 = vweird.f32 %v891
          %vm950 = vweird.f32 %v943
          %vm951 = vmor %vm949, %vm950
          %v952 = vsel %vm951, %v943, %v948
          %v953 = vrsqrt.pop %v892
          %v954 = vmul.f32 %v953, %v892
          %v955 = vmul.f32 %v954, %v953
          %v956 = vmul.f32 0.5, %v955
          %v957 = vsub.f32 1.5, %v956
          %v958 = vmul.f32 %v953, %v957
          %vm959 = vweird.f32 %v892
          %vm960 = vweird.f32 %v953
          %vm961 = vmor %vm959, %vm960
          %v962 = vsel %vm961, %v953, %v958
          %v963 = vrsqrt.pop %v893
          %v964 = vmul.f32 %v963, %v893
          %v965 = vmul.f32 %v964, %v963
          %v966 = vmul.f32 0.5, %v965
          %v967 = vsub.f32 1.5, %v966
          %v968 = vmul.f32 %v963, %v967
          %vm969 = vweird.f32 %v893
          %vm970 = vweird.f32 %v963
          %vm971 = vmor %vm969, %vm970
          %v972 = vsel %vm971, %v963, %v968
          %v973 = vrsqrt.pop %v894
          %v974 = vmul.f32 %v973, %v894
          %v975 = vmul.f32 %v974, %v973
          %v976 = vmul.f32 0.5, %v975
          %v977 = vsub.f32 1.5, %v976
          %v978 = vmul.f32 %v973, %v977
          %vm979 = vweird.f32 %v894
          %vm980 = vweird.f32 %v973
          %vm981 = vmor %vm979, %vm980
          %v982 = vsel %vm981, %v973, %v978
          %v983 = vrsqrt.pop %v895
          %v984 = vmul.f32 %v983, %v895
          %v985 = vmul.f32 %v984, %v983
          %v986 = vmul.f32 0.5, %v985
          %v987 = vsub.f32 1.5, %v986
          %v988 = vmul.f32 %v983, %v987
          %vm989 = vweird.f32 %v895
          %vm990 = vweird.f32 %v983
          %vm991 = vmor %vm989, %vm990
          %v992 = vsel %vm991, %v983, %v988
          %v993 = vrsqrt.pop %v896
          %v994 = vmul.f32 %v993, %v896
          %v995 = vmul.f32 %v994, %v993
          %v996 = vmul.f32 0.5, %v995
          %v997 = vsub.f32 1.5, %v996
          %v998 = vmul.f32 %v993, %v997
          %vm999 = vweird.f32 %v896
          %vm1000 = vweird.f32 %v993
          %vm1001 = vmor %vm999, %vm1000
          %v1002 = vsel %vm1001, %v993, %v998
          %v1003 = vrsqrt.pop %v897
          %v1004 = vmul.f32 %v1003, %v897
          %v1005 = vmul.f32 %v1004, %v1003
          %v1006 = vmul.f32 0.5, %v1005
          %v1007 = vsub.f32 1.5, %v1006
          %v1008 = vmul.f32 %v1003, %v1007
          %vm1009 = vweird.f32 %v897
          %vm1010 = vweird.f32 %v1003
          %vm1011 = vmor %vm1009, %vm1010
          %v1012 = vsel %vm1011, %v1003, %v1008
          %v1013 = vrsqrt.pop %v898
          %v1014 = vmul.f32 %v1013, %v898
          %v1015 = vmul.f32 %v1014, %v1013
          %v1016 = vmul.f32 0.5, %v1015
          %v1017 = vsub.f32 1.5, %v1016
          %v1018 = vmul.f32 %v1013, %v1017
          %vm1019 = vweird.f32 %v898
          %vm1020 = vweird.f32 %v1013
          %vm1021 = vmor %vm1019, %vm1020
          %v1022 = vsel %vm1021, %v1013, %v1018
          %v1023 = vrsqrt.pop %v899
          %v1024 = vmul.f32 %v1023, %v899
          %v1025 = vmul.f32 %v1024, %v1023
          %v1026 = vmul.f32 0.5, %v1025
          %v1027 = vsub.f32 1.5, %v1026
          %v1028 = vmul.f32 %v1023, %v1027
          %vm1029 = vweird.f32 %v899
          %vm1030 = vweird.f32 %v1023
          %vm1031 = vmor %vm1029, %vm1030
          %v1032 = vsel %vm1031, %v1023, %v1028
          %v1033 = vrsqrt.pop %v900
          %v1034 = vmul.f32 %v1033, %v900
          %v1035 = vmul.f32 %v1034, %v1033
          %v1036 = vmul.f32 0.5, %v1035
          %v1037 = vsub.f32 1.5, %v1036
          %v1038 = vmul.f32 %v1033, %v1037
          %vm1039 = vweird.f32 %v900
          %vm1040 = vweird.f32 %v1033
          %vm1041 = vmor %vm1039, %vm1040
          %v1042 = vsel %vm1041, %v1033, %v1038
          %v1043 = vrsqrt.pop %v901
          %v1044 = vmul.f32 %v1043, %v901
          %v1045 = vmul.f32 %v1044, %v1043
          %v1046 = vmul.f32 0.5, %v1045
          %v1047 = vsub.f32 1.5, %v1046
          %v1048 = vmul.f32 %v1043, %v1047
          %vm1049 = vweird.f32 %v901
          %vm1050 = vweird.f32 %v1043
          %vm1051 = vmor %vm1049, %vm1050
          %v1052 = vsel %vm1051, %v1043, %v1048
          %v1053 = vrsqrt.pop %v902
          %v1054 = vmul.f32 %v1053, %v902
          %v1055 = vmul.f32 %v1054, %v1053
          %v1056 = vmul.f32 0.5, %v1055
          %v1057 = vsub.f32 1.5, %v1056
          %v1058 = vmul.f32 %v1053, %v1057
          %vm1059 = vweird.f32 %v902
          %vm1060 = vweird.f32 %v1053
          %vm1061 = vmor %vm1059, %vm1060
          %v1062 = vsel %vm1061, %v1053, %v1058
          %v1063 = vmul.f32 %v855, %v912
          %v1064 = vmul.f32 %v856, %v912
          %v1065 = vmul.f32 %v857, %v922
          %v1066 = vmul.f32 %v858, %v922
          %v1067 = vmul.f32 %v859, %v932
          %v1068 = vmul.f32 %v860, %v932
          %v1069 = vmul.f32 %v861, %v942
          %v1070 = vmul.f32 %v862, %v942
          %v1071 = vmul.f32 %v863, %v952
          %v1072 = vmul.f32 %v864, %v952
          %v1073 = vmul.f32 %v865, %v962
          %v1074 = vmul.f32 %v866, %v962
          %v1075 = vmul.f32 %v867, %v972
          %v1076 = vmul.f32 %v868, %v972
          %v1077 = vmul.f32 %v869, %v982
          %v1078 = vmul.f32 %v870, %v982
          %v1079 = vmul.f32 %v871, %v992
          %v1080 = vmul.f32 %v872, %v992
          %v1081 = vmul.f32 %v873, %v1002
          %v1082 = vmul.f32 %v874, %v1002
          %v1083 = vmul.f32 %v875, %v1012
          %v1084 = vmul.f32 %v876, %v1012
          %v1085 = vmul.f32 %v877, %v1022
          %v1086 = vmul.f32 %v878, %v1022
          %v1087 = vmul.f32 %v879, %v1032
          %v1088 = vmul.f32 %v880, %v1032
          %v1089 = vmul.f32 %v881, %v1042
          %v1090 = vmul.f32 %v882, %v1042
          %v1091 = vmul.f32 %v883, %v1052
          %v1092 = vmul.f32 %v884, %v1052
          %v1093 = vmul.f32 %v885, %v1062
          %v1094 = vmul.f32 %v886, %v1062
          %v1096 = vperm.slane %v638, 0
          %v1097 = vperm.slane %v638, 1
          %v1100 = vmul.f32 %v1063, %v1096
          %v1101 = vmul.f32 %v1064, %v1097
          %v1102 = vmul.f32 %v1065, %v1096
          %v1103 = vmul.f32 %v1066, %v1097
          %v1104 = vmul.f32 %v1067, %v1096
          %v1105 = vmul.f32 %v1068, %v1097
          %v1106 = vmul.f32 %v1069, %v1096
          %v1107 = vmul.f32 %v1070, %v1097
          %v1108 = vmul.f32 %v1071, %v1096
          %v1109 = vmul.f32 %v1072, %v1097
          %v1110 = vmul.f32 %v1073, %v1096
          %v1111 = vmul.f32 %v1074, %v1097
          %v1112 = vmul.f32 %v1075, %v1096
          %v1113 = vmul.f32 %v1076, %v1097
          %v1114 = vmul.f32 %v1077, %v1096
          %v1115 = vmul.f32 %v1078, %v1097
          %v1116 = vmul.f32 %v1079, %v1096
          %v1117 = vmul.f32 %v1080, %v1097
          %v1118 = vmul.f32 %v1081, %v1096
          %v1119 = vmul.f32 %v1082, %v1097
          %v1120 = vmul.f32 %v1083, %v1096
          %v1121 = vmul.f32 %v1084, %v1097
          %v1122 = vmul.f32 %v1085, %v1096
          %v1123 = vmul.f32 %v1086, %v1097
          %v1124 = vmul.f32 %v1087, %v1096
          %v1125 = vmul.f32 %v1088, %v1097
          %v1126 = vmul.f32 %v1089, %v1096
          %v1127 = vmul.f32 %v1090, %v1097
          %v1128 = vmul.f32 %v1091, %v1096
          %v1129 = vmul.f32 %v1092, %v1097
          %v1130 = vmul.f32 %v1093, %v1096
          %v1131 = vmul.f32 %v1094, %v1097
          %v1133 = vperm.slane %v639, 0
          %v1134 = vperm.slane %v639, 1
          %v1137 = vadd.f32 %v1100, %v1133
          %v1138 = vadd.f32 %v1101, %v1134
          %v1139 = vadd.f32 %v1102, %v1133
          %v1140 = vadd.f32 %v1103, %v1134
          %v1141 = vadd.f32 %v1104, %v1133
          %v1142 = vadd.f32 %v1105, %v1134
          %v1143 = vadd.f32 %v1106, %v1133
          %v1144 = vadd.f32 %v1107, %v1134
          %v1145 = vadd.f32 %v1108, %v1133
          %v1146 = vadd.f32 %v1109, %v1134
          %v1147 = vadd.f32 %v1110, %v1133
          %v1148 = vadd.f32 %v1111, %v1134
          %v1149 = vadd.f32 %v1112, %v1133
          %v1150 = vadd.f32 %v1113, %v1134
          %v1151 = vadd.f32 %v1114, %v1133
          %v1152 = vadd.f32 %v1115, %v1134
          %v1153 = vadd.f32 %v1116, %v1133
          %v1154 = vadd.f32 %v1117, %v1134
          %v1155 = vadd.f32 %v1118, %v1133
          %v1156 = vadd.f32 %v1119, %v1134
          %v1157 = vadd.f32 %v1120, %v1133
          %v1158 = vadd.f32 %v1121, %v1134
          %v1159 = vadd.f32 %v1122, %v1133
          %v1160 = vadd.f32 %v1123, %v1134
          %v1161 = vadd.f32 %v1124, %v1133
          %v1162 = vadd.f32 %v1125, %v1134
          %v1163 = vadd.f32 %v1126, %v1133
          %v1164 = vadd.f32 %v1127, %v1134
          %v1165 = vadd.f32 %v1128, %v1133
          %v1166 = vadd.f32 %v1129, %v1134
          %v1167 = vadd.f32 %v1130, %v1133
          %v1168 = vadd.f32 %v1131, %v1134
          %v1169 = vpack.c.bf16 %v1139, %v1137
          %v1170 = vpack.c.bf16 %v1140, %v1138
          %v1171 = vpack.c.bf16 %v1143, %v1141
          %v1172 = vpack.c.bf16 %v1144, %v1142
          %v1173 = vpack.c.bf16 %v1147, %v1145
          %v1174 = vpack.c.bf16 %v1148, %v1146
          %v1175 = vpack.c.bf16 %v1151, %v1149
          %v1176 = vpack.c.bf16 %v1152, %v1150
          %v1177 = vpack.c.bf16 %v1155, %v1153
          %v1178 = vpack.c.bf16 %v1156, %v1154
          %v1179 = vpack.c.bf16 %v1159, %v1157
          %v1180 = vpack.c.bf16 %v1160, %v1158
          %v1181 = vpack.c.bf16 %v1163, %v1161
          %v1182 = vpack.c.bf16 %v1164, %v1162
          %v1183 = vpack.c.bf16 %v1167, %v1165
          %v1184 = vpack.c.bf16 %v1168, %v1166
          %v1185 = vld [vmem:[#allocation6 + $0x8] sm:$0xff]
          %v1186 = vld [vmem:[#allocation6 + $0x10] sm:$0xff]
          %v1187 = vld [vmem:[#allocation6 + $0x20] sm:$0xff]
          %v1188 = vld [vmem:[#allocation6 + $0x28] sm:$0xff]
          %v1189 = vld [vmem:[#allocation6 + $0x38] sm:$0xff]
          %v1190 = vld [vmem:[#allocation6 + $0x40] sm:$0xff]
          %v1191 = vld [vmem:[#allocation6 + $0x50] sm:$0xff]
          %v1192 = vld [vmem:[#allocation6 + $0x58] sm:$0xff]
          %v1193 = vld [vmem:[#allocation6 + $0x68] sm:$0xff]
          %v1194 = vld [vmem:[#allocation6 + $0x70] sm:$0xff]
          %v1195 = vld [vmem:[#allocation6 + $0x80] sm:$0xff]
          %v1196 = vld [vmem:[#allocation6 + $0x88] sm:$0xff]
          %v1197 = vld [vmem:[#allocation6 + $0x98] sm:$0xff]
          %v1198 = vld [vmem:[#allocation6 + $0xa0] sm:$0xff]
          %v1199 = vld [vmem:[#allocation6 + $0xb0] sm:$0xff]
          %v1200 = vld [vmem:[#allocation6 + $0xb8] sm:$0xff]
          %v1201 = vld [vmem:[#allocation6 + $0xc8] sm:$0xff]
          %v1202 = vld [vmem:[#allocation6 + $0xd0] sm:$0xff]
          %v1203 = vld [vmem:[#allocation6 + $0xe0] sm:$0xff]
          %v1204 = vld [vmem:[#allocation6 + $0xe8] sm:$0xff]
          %v1205 = vld [vmem:[#allocation6 + $0xf8] sm:$0xff]
          %v1206 = vld [vmem:[#allocation6 + $0x100] sm:$0xff]
          %v1207 = vld [vmem:[#allocation6 + $0x110] sm:$0xff]
          %v1208 = vld [vmem:[#allocation6 + $0x118] sm:$0xff]
          %v1209 = vld [vmem:[#allocation6 + $0x128] sm:$0xff]
          %v1210 = vld [vmem:[#allocation6 + $0x130] sm:$0xff]
          %v1211 = vld [vmem:[#allocation6 + $0x140] sm:$0xff]
          %v1212 = vld [vmem:[#allocation6 + $0x148] sm:$0xff]
          %v1213 = vld [vmem:[#allocation6 + $0x158] sm:$0xff]
          %v1214 = vld [vmem:[#allocation6 + $0x160] sm:$0xff]
          %v1215 = vld [vmem:[#allocation6 + $0x170] sm:$0xff]
          %v1216 = vld [vmem:[#allocation6 + $0x178] sm:$0xff]
          %v1217 = vld [vmem:[#allocation6 + $0x188] sm:$0xff]
          %v1218 = vld [vmem:[#allocation6 + $0x190] sm:$0xff]
          %v1219 = vld [vmem:[#allocation6 + $0x1a0] sm:$0xff]
          %v1220 = vld [vmem:[#allocation6 + $0x1a8] sm:$0xff]
          %v1221 = vld [vmem:[#allocation6 + $0x1b8] sm:$0xff]
          %v1222 = vld [vmem:[#allocation6 + $0x1c0] sm:$0xff]
          %v1223 = vld [vmem:[#allocation6 + $0x1d0] sm:$0xff]
          %v1224 = vld [vmem:[#allocation6 + $0x1d8] sm:$0xff]
          %v1225 = vld [vmem:[#allocation6 + $0x1e8] sm:$0xff]
          %v1226 = vld [vmem:[#allocation6 + $0x1f0] sm:$0xff]
          %v1227 = vld [vmem:[#allocation6 + $0x200] sm:$0xff]
          %v1228 = vld [vmem:[#allocation6 + $0x208] sm:$0xff]
          %v1229 = vld [vmem:[#allocation6 + $0x218] sm:$0xff]
          %v1230 = vld [vmem:[#allocation6 + $0x220] sm:$0xff]
          %v1231 = vld [vmem:[#allocation6 + $0x230] sm:$0xff]
          %v1232 = vld [vmem:[#allocation6 + $0x238] sm:$0xff]
          %v1233 = vld [vmem:[#allocation6 + $0x248] sm:$0xff]
          %v1234 = vld [vmem:[#allocation6 + $0x250] sm:$0xff]
          %v1235 = vld [vmem:[#allocation6 + $0x260] sm:$0xff]
          %v1236 = vld [vmem:[#allocation6 + $0x268] sm:$0xff]
          %v1237 = vld [vmem:[#allocation6 + $0x278] sm:$0xff]
          %v1238 = vld [vmem:[#allocation6 + $0x280] sm:$0xff]
          %v1239 = vld [vmem:[#allocation6 + $0x290] sm:$0xff]
          %v1240 = vld [vmem:[#allocation6 + $0x298] sm:$0xff]
          %v1241 = vld [vmem:[#allocation6 + $0x2a8] sm:$0xff]
          %v1242 = vld [vmem:[#allocation6 + $0x2b0] sm:$0xff]
          %v1243 = vld [vmem:[#allocation6 + $0x2c0] sm:$0xff]
          %v1244 = vld [vmem:[#allocation6 + $0x2c8] sm:$0xff]
          %v1245 = vld [vmem:[#allocation6 + $0x2d8] sm:$0xff]
          %v1246 = vld [vmem:[#allocation6 + $0x2e0] sm:$0xff]
          %v1247 = vld [vmem:[#allocation6 + $0x2f0] sm:$0xff]
          %v1248 = vld [vmem:[#allocation6 + $0x2f8] sm:$0xff]
          %v1249 = vld [vmem:[#allocation8 + $0x2] sm:$0xf]
          %v1251 = vperm.slane %v1249, 0
          %v1252 = vperm.slane %v1249, 1
          %v1253 = vperm.slane %v1249, 2
          %v1254 = vperm.slane %v1249, 3
          %v1323 = vunpack.c.l.b16 %v1185
          %v1324 = vunpack.c.h.b16 %v1185
          %v1325 = vunpack.c.l.b16 %v1186
          %v1326 = vunpack.c.h.b16 %v1186
          %v1327 = vunpack.c.l.b16 %v1187
          %v1328 = vunpack.c.h.b16 %v1187
          %v1329 = vunpack.c.l.b16 %v1188
          %v1330 = vunpack.c.h.b16 %v1188
          %v1331 = vunpack.c.l.b16 %v1189
          %v1332 = vunpack.c.h.b16 %v1189
          %v1333 = vunpack.c.l.b16 %v1190
          %v1334 = vunpack.c.h.b16 %v1190
          %v1335 = vunpack.c.l.b16 %v1191
          %v1336 = vunpack.c.h.b16 %v1191
          %v1337 = vunpack.c.l.b16 %v1192
          %v1338 = vunpack.c.h.b16 %v1192
          %v1339 = vunpack.c.l.b16 %v1193
          %v1340 = vunpack.c.h.b16 %v1193
          %v1341 = vunpack.c.l.b16 %v1194
          %v1342 = vunpack.c.h.b16 %v1194
          %v1343 = vunpack.c.l.b16 %v1195
          %v1344 = vunpack.c.h.b16 %v1195
          %v1345 = vunpack.c.l.b16 %v1196
          %v1346 = vunpack.c.h.b16 %v1196
          %v1347 = vunpack.c.l.b16 %v1197
          %v1348 = vunpack.c.h.b16 %v1197
          %v1349 = vunpack.c.l.b16 %v1198
          %v1350 = vunpack.c.h.b16 %v1198
          %v1351 = vunpack.c.l.b16 %v1199
          %v1352 = vunpack.c.h.b16 %v1199
          %v1353 = vunpack.c.l.b16 %v1200
          %v1354 = vunpack.c.h.b16 %v1200
          %v1355 = vunpack.c.l.b16 %v1201
          %v1356 = vunpack.c.h.b16 %v1201
          %v1357 = vunpack.c.l.b16 %v1202
          %v1358 = vunpack.c.h.b16 %v1202
          %v1359 = vunpack.c.l.b16 %v1203
          %v1360 = vunpack.c.h.b16 %v1203
          %v1361 = vunpack.c.l.b16 %v1204
          %v1362 = vunpack.c.h.b16 %v1204
          %v1363 = vunpack.c.l.b16 %v1205
          %v1364 = vunpack.c.h.b16 %v1205
          %v1365 = vunpack.c.l.b16 %v1206
          %v1366 = vunpack.c.h.b16 %v1206
          %v1367 = vunpack.c.l.b16 %v1207
          %v1368 = vunpack.c.h.b16 %v1207
          %v1369 = vunpack.c.l.b16 %v1208
          %v1370 = vunpack.c.h.b16 %v1208
          %v1371 = vunpack.c.l.b16 %v1209
          %v1372 = vunpack.c.h.b16 %v1209
          %v1373 = vunpack.c.l.b16 %v1210
          %v1374 = vunpack.c.h.b16 %v1210
          %v1375 = vunpack.c.l.b16 %v1211
          %v1376 = vunpack.c.h.b16 %v1211
          %v1377 = vunpack.c.l.b16 %v1212
          %v1378 = vunpack.c.h.b16 %v1212
          %v1379 = vunpack.c.l.b16 %v1213
          %v1380 = vunpack.c.h.b16 %v1213
          %v1381 = vunpack.c.l.b16 %v1214
          %v1382 = vunpack.c.h.b16 %v1214
          %v1383 = vunpack.c.l.b16 %v1215
          %v1384 = vunpack.c.h.b16 %v1215
          %v1385 = vunpack.c.l.b16 %v1216
          %v1386 = vunpack.c.h.b16 %v1216
          %v1387 = vunpack.c.l.b16 %v1217
          %v1388 = vunpack.c.h.b16 %v1217
          %v1389 = vunpack.c.l.b16 %v1218
          %v1390 = vunpack.c.h.b16 %v1218
          %v1391 = vunpack.c.l.b16 %v1219
          %v1392 = vunpack.c.h.b16 %v1219
          %v1393 = vunpack.c.l.b16 %v1220
          %v1394 = vunpack.c.h.b16 %v1220
          %v1395 = vunpack.c.l.b16 %v1221
          %v1396 = vunpack.c.h.b16 %v1221
          %v1397 = vunpack.c.l.b16 %v1222
          %v1398 = vunpack.c.h.b16 %v1222
          %v1399 = vunpack.c.l.b16 %v1223
          %v1400 = vunpack.c.h.b16 %v1223
          %v1401 = vunpack.c.l.b16 %v1224
          %v1402 = vunpack.c.h.b16 %v1224
          %v1403 = vunpack.c.l.b16 %v1225
          %v1404 = vunpack.c.h.b16 %v1225
          %v1405 = vunpack.c.l.b16 %v1226
          %v1406 = vunpack.c.h.b16 %v1226
          %v1407 = vunpack.c.l.b16 %v1227
          %v1408 = vunpack.c.h.b16 %v1227
          %v1409 = vunpack.c.l.b16 %v1228
          %v1410 = vunpack.c.h.b16 %v1228
          %v1411 = vunpack.c.l.b16 %v1229
          %v1412 = vunpack.c.h.b16 %v1229
          %v1413 = vunpack.c.l.b16 %v1230
          %v1414 = vunpack.c.h.b16 %v1230
          %v1415 = vunpack.c.l.b16 %v1231
          %v1416 = vunpack.c.h.b16 %v1231
          %v1417 = vunpack.c.l.b16 %v1232
          %v1418 = vunpack.c.h.b16 %v1232
          %v1419 = vunpack.c.l.b16 %v1233
          %v1420 = vunpack.c.h.b16 %v1233
          %v1421 = vunpack.c.l.b16 %v1234
          %v1422 = vunpack.c.h.b16 %v1234
          %v1423 = vunpack.c.l.b16 %v1235
          %v1424 = vunpack.c.h.b16 %v1235
          %v1425 = vunpack.c.l.b16 %v1236
          %v1426 = vunpack.c.h.b16 %v1236
          %v1427 = vunpack.c.l.b16 %v1237
          %v1428 = vunpack.c.h.b16 %v1237
          %v1429 = vunpack.c.l.b16 %v1238
          %v1430 = vunpack.c.h.b16 %v1238
          %v1431 = vunpack.c.l.b16 %v1239
          %v1432 = vunpack.c.h.b16 %v1239
          %v1433 = vunpack.c.l.b16 %v1240
          %v1434 = vunpack.c.h.b16 %v1240
          %v1435 = vunpack.c.l.b16 %v1241
          %v1436 = vunpack.c.h.b16 %v1241
          %v1437 = vunpack.c.l.b16 %v1242
          %v1438 = vunpack.c.h.b16 %v1242
          %v1439 = vunpack.c.l.b16 %v1243
          %v1440 = vunpack.c.h.b16 %v1243
          %v1441 = vunpack.c.l.b16 %v1244
          %v1442 = vunpack.c.h.b16 %v1244
          %v1443 = vunpack.c.l.b16 %v1245
          %v1444 = vunpack.c.h.b16 %v1245
          %v1445 = vunpack.c.l.b16 %v1246
          %v1446 = vunpack.c.h.b16 %v1246
          %v1447 = vunpack.c.l.b16 %v1247
          %v1448 = vunpack.c.h.b16 %v1247
          %v1449 = vunpack.c.l.b16 %v1248
          %v1450 = vunpack.c.h.b16 %v1248
          %v1451 = vpack.c.b16 %v1327, %v1323
          %v1452 = vpack.c.b16 %v1328, %v1324
          %v1453 = vpack.c.b16 %v1329, %v1325
          %v1454 = vpack.c.b16 %v1330, %v1326
          %v1455 = vpack.c.b16 %v1335, %v1331
          %v1456 = vpack.c.b16 %v1336, %v1332
          %v1457 = vpack.c.b16 %v1337, %v1333
          %v1458 = vpack.c.b16 %v1338, %v1334
          %v1459 = vpack.c.b16 %v1343, %v1339
          %v1460 = vpack.c.b16 %v1344, %v1340
          %v1461 = vpack.c.b16 %v1345, %v1341
          %v1462 = vpack.c.b16 %v1346, %v1342
          %v1463 = vpack.c.b16 %v1351, %v1347
          %v1464 = vpack.c.b16 %v1352, %v1348
          %v1465 = vpack.c.b16 %v1353, %v1349
          %v1466 = vpack.c.b16 %v1354, %v1350
          %v1467 = vpack.c.b16 %v1359, %v1355
          %v1468 = vpack.c.b16 %v1360, %v1356
          %v1469 = vpack.c.b16 %v1361, %v1357
          %v1470 = vpack.c.b16 %v1362, %v1358
          %v1471 = vpack.c.b16 %v1367, %v1363
          %v1472 = vpack.c.b16 %v1368, %v1364
          %v1473 = vpack.c.b16 %v1369, %v1365
          %v1474 = vpack.c.b16 %v1370, %v1366
          %v1475 = vpack.c.b16 %v1375, %v1371
          %v1476 = vpack.c.b16 %v1376, %v1372
          %v1477 = vpack.c.b16 %v1377, %v1373
          %v1478 = vpack.c.b16 %v1378, %v1374
          %v1479 = vpack.c.b16 %v1383, %v1379
          %v1480 = vpack.c.b16 %v1384, %v1380
          %v1481 = vpack.c.b16 %v1385, %v1381
          %v1482 = vpack.c.b16 %v1386, %v1382
          %v1483 = vpack.c.b16 %v1391, %v1387
          %v1484 = vpack.c.b16 %v1392, %v1388
          %v1485 = vpack.c.b16 %v1393, %v1389
          %v1486 = vpack.c.b16 %v1394, %v1390
          %v1487 = vpack.c.b16 %v1399, %v1395
          %v1488 = vpack.c.b16 %v1400, %v1396
          %v1489 = vpack.c.b16 %v1401, %v1397
          %v1490 = vpack.c.b16 %v1402, %v1398
          %v1491 = vpack.c.b16 %v1407, %v1403
          %v1492 = vpack.c.b16 %v1408, %v1404
          %v1493 = vpack.c.b16 %v1409, %v1405
          %v1494 = vpack.c.b16 %v1410, %v1406
          %v1495 = vpack.c.b16 %v1415, %v1411
          %v1496 = vpack.c.b16 %v1416, %v1412
          %v1497 = vpack.c.b16 %v1417, %v1413
          %v1498 = vpack.c.b16 %v1418, %v1414
          %v1499 = vpack.c.b16 %v1423, %v1419
          %v1500 = vpack.c.b16 %v1424, %v1420
          %v1501 = vpack.c.b16 %v1425, %v1421
          %v1502 = vpack.c.b16 %v1426, %v1422
          %v1503 = vpack.c.b16 %v1431, %v1427
          %v1504 = vpack.c.b16 %v1432, %v1428
          %v1505 = vpack.c.b16 %v1433, %v1429
          %v1506 = vpack.c.b16 %v1434, %v1430
          %v1507 = vpack.c.b16 %v1439, %v1435
          %v1508 = vpack.c.b16 %v1440, %v1436
          %v1509 = vpack.c.b16 %v1441, %v1437
          %v1510 = vpack.c.b16 %v1442, %v1438
          %v1511 = vpack.c.b16 %v1447, %v1443
          %v1512 = vpack.c.b16 %v1448, %v1444
          %v1513 = vpack.c.b16 %v1449, %v1445
          %v1514 = vpack.c.b16 %v1450, %v1446
          %1579 = vmatpush.bf16.msra.mxu0 %v1479
          %1580 = vmatpush.bf16.msra.mxu0 %v1475
          %1581 = vmatpush.bf16.msra.mxu0 %v1471
          %1582 = vmatpush.bf16.msra.mxu0 %v1467
          %1583 = vmatpush.bf16.msra.mxu0 %v1463
          %1584 = vmatpush.bf16.msra.mxu0 %v1459
          %1585 = vmatpush.bf16.msra.mxu0 %v1455
          %1586 = vmatpush.bf16.msra.mxu0 %v1451
          %1587 = vmatmul.bf16.gmra.mxu0 %v1169
          %v1588 = vpop.f32.mrf.mxu0
          %v1589 = vadd.f32 %v1251, %v1588
          %v1590 = vpop.f32.mrf.mxu0
          %v1591 = vadd.f32 %v1251, %v1590
          %1592 = vmatmul.bf16.gmra.mxu0 %v1171
          %v1593 = vpop.f32.mrf.mxu0
          %v1594 = vadd.f32 %v1251, %v1593
          %v1595 = vpop.f32.mrf.mxu0
          %v1596 = vadd.f32 %v1251, %v1595
          %1597 = vmatmul.bf16.gmra.mxu0 %v1173
          %v1598 = vpop.f32.mrf.mxu0
          %v1599 = vadd.f32 %v1251, %v1598
          %v1600 = vpop.f32.mrf.mxu0
          %v1601 = vadd.f32 %v1251, %v1600
          %1602 = vmatmul.bf16.gmra.mxu0 %v1175
          %v1603 = vpop.f32.mrf.mxu0
          %v1604 = vadd.f32 %v1251, %v1603
          %v1605 = vpop.f32.mrf.mxu0
          %v1606 = vadd.f32 %v1251, %v1605
          %1607 = vmatmul.bf16.gmra.mxu0 %v1177
          %v1608 = vpop.f32.mrf.mxu0
          %v1609 = vadd.f32 %v1251, %v1608
          %v1610 = vpop.f32.mrf.mxu0
          %v1611 = vadd.f32 %v1251, %v1610
          %1612 = vmatmul.bf16.gmra.mxu0 %v1179
          %v1613 = vpop.f32.mrf.mxu0
          %v1614 = vadd.f32 %v1251, %v1613
          %v1615 = vpop.f32.mrf.mxu0
          %v1616 = vadd.f32 %v1251, %v1615
          %1617 = vmatmul.bf16.gmra.mxu0 %v1181
          %v1618 = vpop.f32.mrf.mxu0
          %v1619 = vadd.f32 %v1251, %v1618
          %v1620 = vpop.f32.mrf.mxu0
          %v1621 = vadd.f32 %v1251, %v1620
          %1622 = vmatmul.bf16.gmra.mxu0 %v1183
          %v1623 = vpop.f32.mrf.mxu0
          %v1624 = vadd.f32 %v1251, %v1623
          %v1625 = vpop.f32.mrf.mxu0
          %v1626 = vadd.f32 %v1251, %v1625
          %1627 = vdwg.mxu0
          %1628 = vmatpush.bf16.msra.mxu0 %v1511
          %1629 = vmatpush.bf16.msra.mxu0 %v1507
          %1630 = vmatpush.bf16.msra.mxu0 %v1503
          %1631 = vmatpush.bf16.msra.mxu0 %v1499
          %1632 = vmatpush.bf16.msra.mxu0 %v1495
          %1633 = vmatpush.bf16.msra.mxu0 %v1491
          %1634 = vmatpush.bf16.msra.mxu0 %v1487
          %1635 = vmatpush.bf16.msra.mxu0 %v1483
          %1636 = vmatmul.bf16.gmra.mxu0 %v1170
          %v1637 = vpop.f32.mrf.mxu0
          %v1638 = vadd.f32 %v1589, %v1637
          %v1639 = vpop.f32.mrf.mxu0
          %v1640 = vadd.f32 %v1591, %v1639
          %1641 = vmatmul.bf16.gmra.mxu0 %v1172
          %v1642 = vpop.f32.mrf.mxu0
          %v1643 = vadd.f32 %v1594, %v1642
          %v1644 = vpop.f32.mrf.mxu0
          %v1645 = vadd.f32 %v1596, %v1644
          %1646 = vmatmul.bf16.gmra.mxu0 %v1174
          %v1647 = vpop.f32.mrf.mxu0
          %v1648 = vadd.f32 %v1599, %v1647
          %v1649 = vpop.f32.mrf.mxu0
          %v1650 = vadd.f32 %v1601, %v1649
          %1651 = vmatmul.bf16.gmra.mxu0 %v1176
          %v1652 = vpop.f32.mrf.mxu0
          %v1653 = vadd.f32 %v1604, %v1652
          %v1654 = vpop.f32.mrf.mxu0
          %v1655 = vadd.f32 %v1606, %v1654
          %1656 = vmatmul.bf16.gmra.mxu0 %v1178
          %v1657 = vpop.f32.mrf.mxu0
          %v1658 = vadd.f32 %v1609, %v1657
          %v1659 = vpop.f32.mrf.mxu0
          %v1660 = vadd.f32 %v1611, %v1659
          %1661 = vmatmul.bf16.gmra.mxu0 %v1180
          %v1662 = vpop.f32.mrf.mxu0
          %v1663 = vadd.f32 %v1614, %v1662
          %v1664 = vpop.f32.mrf.mxu0
          %v1665 = vadd.f32 %v1616, %v1664
          %1666 = vmatmul.bf16.gmra.mxu0 %v1182
          %v1667 = vpop.f32.mrf.mxu0
          %v1668 = vadd.f32 %v1619, %v1667
          %v1669 = vpop.f32.mrf.mxu0
          %v1670 = vadd.f32 %v1621, %v1669
          %1671 = vmatmul.bf16.gmra.mxu0 %v1184
          %v1672 = vpop.f32.mrf.mxu0
          %v1673 = vadd.f32 %v1624, %v1672
          %v1674 = vpop.f32.mrf.mxu0
          %v1675 = vadd.f32 %v1626, %v1674
          %1676 = vdwg.mxu0
          %1677 = vmatpush.bf16.msra.mxu0 %v1480
          %1678 = vmatpush.bf16.msra.mxu0 %v1476
          %1679 = vmatpush.bf16.msra.mxu0 %v1472
          %1680 = vmatpush.bf16.msra.mxu0 %v1468
          %1681 = vmatpush.bf16.msra.mxu0 %v1464
          %1682 = vmatpush.bf16.msra.mxu0 %v1460
          %1683 = vmatpush.bf16.msra.mxu0 %v1456
          %1684 = vmatpush.bf16.msra.mxu0 %v1452
          %1685 = vmatmul.bf16.gmra.mxu0 %v1169
          %v1686 = vpop.f32.mrf.mxu0
          %v1687 = vadd.f32 %v1252, %v1686
          %v1688 = vpop.f32.mrf.mxu0
          %v1689 = vadd.f32 %v1252, %v1688
          %1690 = vmatmul.bf16.gmra.mxu0 %v1171
          %v1691 = vpop.f32.mrf.mxu0
          %v1692 = vadd.f32 %v1252, %v1691
          %v1693 = vpop.f32.mrf.mxu0
          %v1694 = vadd.f32 %v1252, %v1693
          %1695 = vmatmul.bf16.gmra.mxu0 %v1173
          %v1696 = vpop.f32.mrf.mxu0
          %v1697 = vadd.f32 %v1252, %v1696
          %v1698 = vpop.f32.mrf.mxu0
          %v1699 = vadd.f32 %v1252, %v1698
          %1700 = vmatmul.bf16.gmra.mxu0 %v1175
          %v1701 = vpop.f32.mrf.mxu0
          %v1702 = vadd.f32 %v1252, %v1701
          %v1703 = vpop.f32.mrf.mxu0
          %v1704 = vadd.f32 %v1252, %v1703
          %1705 = vmatmul.bf16.gmra.mxu0 %v1177
          %v1706 = vpop.f32.mrf.mxu0
          %v1707 = vadd.f32 %v1252, %v1706
          %v1708 = vpop.f32.mrf.mxu0
          %v1709 = vadd.f32 %v1252, %v1708
          %1710 = vmatmul.bf16.gmra.mxu0 %v1179
          %v1711 = vpop.f32.mrf.mxu0
          %v1712 = vadd.f32 %v1252, %v1711
          %v1713 = vpop.f32.mrf.mxu0
          %v1714 = vadd.f32 %v1252, %v1713
          %1715 = vmatmul.bf16.gmra.mxu0 %v1181
          %v1716 = vpop.f32.mrf.mxu0
          %v1717 = vadd.f32 %v1252, %v1716
          %v1718 = vpop.f32.mrf.mxu0
          %v1719 = vadd.f32 %v1252, %v1718
          %1720 = vmatmul.bf16.gmra.mxu0 %v1183
          %v1721 = vpop.f32.mrf.mxu0
          %v1722 = vadd.f32 %v1252, %v1721
          %v1723 = vpop.f32.mrf.mxu0
          %v1724 = vadd.f32 %v1252, %v1723
          %1725 = vdwg.mxu0
          %1726 = vmatpush.bf16.msra.mxu0 %v1512
          %1727 = vmatpush.bf16.msra.mxu0 %v1508
          %1728 = vmatpush.bf16.msra.mxu0 %v1504
          %1729 = vmatpush.bf16.msra.mxu0 %v1500
          %1730 = vmatpush.bf16.msra.mxu0 %v1496
          %1731 = vmatpush.bf16.msra.mxu0 %v1492
          %1732 = vmatpush.bf16.msra.mxu0 %v1488
          %1733 = vmatpush.bf16.msra.mxu0 %v1484
          %1734 = vmatmul.bf16.gmra.mxu0 %v1170
          %v1735 = vpop.f32.mrf.mxu0
          %v1736 = vadd.f32 %v1687, %v1735
          %v1737 = vpop.f32.mrf.mxu0
          %v1738 = vadd.f32 %v1689, %v1737
          %1739 = vmatmul.bf16.gmra.mxu0 %v1172
          %v1740 = vpop.f32.mrf.mxu0
          %v1741 = vadd.f32 %v1692, %v1740
          %v1742 = vpop.f32.mrf.mxu0
          %v1743 = vadd.f32 %v1694, %v1742
          %1744 = vmatmul.bf16.gmra.mxu0 %v1174
          %v1745 = vpop.f32.mrf.mxu0
          %v1746 = vadd.f32 %v1697, %v1745
          %v1747 = vpop.f32.mrf.mxu0
          %v1748 = vadd.f32 %v1699, %v1747
          %1749 = vmatmul.bf16.gmra.mxu0 %v1176
          %v1750 = vpop.f32.mrf.mxu0
          %v1751 = vadd.f32 %v1702, %v1750
          %v1752 = vpop.f32.mrf.mxu0
          %v1753 = vadd.f32 %v1704, %v1752
          %1754 = vmatmul.bf16.gmra.mxu0 %v1178
          %v1755 = vpop.f32.mrf.mxu0
          %v1756 = vadd.f32 %v1707, %v1755
          %v1757 = vpop.f32.mrf.mxu0
          %v1758 = vadd.f32 %v1709, %v1757
          %1759 = vmatmul.bf16.gmra.mxu0 %v1180
          %v1760 = vpop.f32.mrf.mxu0
          %v1761 = vadd.f32 %v1712, %v1760
          %v1762 = vpop.f32.mrf.mxu0
          %v1763 = vadd.f32 %v1714, %v1762
          %1764 = vmatmul.bf16.gmra.mxu0 %v1182
          %v1765 = vpop.f32.mrf.mxu0
          %v1766 = vadd.f32 %v1717, %v1765
          %v1767 = vpop.f32.mrf.mxu0
          %v1768 = vadd.f32 %v1719, %v1767
          %1769 = vmatmul.bf16.gmra.mxu0 %v1184
          %v1770 = vpop.f32.mrf.mxu0
          %v1771 = vadd.f32 %v1722, %v1770
          %v1772 = vpop.f32.mrf.mxu0
          %v1773 = vadd.f32 %v1724, %v1772
          %1774 = vdwg.mxu0
          %1775 = vmatpush.bf16.msra.mxu0 %v1481
          %1776 = vmatpush.bf16.msra.mxu0 %v1477
          %1777 = vmatpush.bf16.msra.mxu0 %v1473
          %1778 = vmatpush.bf16.msra.mxu0 %v1469
          %1779 = vmatpush.bf16.msra.mxu0 %v1465
          %1780 = vmatpush.bf16.msra.mxu0 %v1461
          %1781 = vmatpush.bf16.msra.mxu0 %v1457
          %1782 = vmatpush.bf16.msra.mxu0 %v1453
          %1783 = vmatmul.bf16.gmra.mxu0 %v1169
          %v1784 = vpop.f32.mrf.mxu0
          %v1785 = vadd.f32 %v1253, %v1784
          %v1786 = vpop.f32.mrf.mxu0
          %v1787 = vadd.f32 %v1253, %v1786
          %1788 = vmatmul.bf16.gmra.mxu0 %v1171
          %v1789 = vpop.f32.mrf.mxu0
          %v1790 = vadd.f32 %v1253, %v1789
          %v1791 = vpop.f32.mrf.mxu0
          %v1792 = vadd.f32 %v1253, %v1791
          %1793 = vmatmul.bf16.gmra.mxu0 %v1173
          %v1794 = vpop.f32.mrf.mxu0
          %v1795 = vadd.f32 %v1253, %v1794
          %v1796 = vpop.f32.mrf.mxu0
          %v1797 = vadd.f32 %v1253, %v1796
          %1798 = vmatmul.bf16.gmra.mxu0 %v1175
          %v1799 = vpop.f32.mrf.mxu0
          %v1800 = vadd.f32 %v1253, %v1799
          %v1801 = vpop.f32.mrf.mxu0
          %v1802 = vadd.f32 %v1253, %v1801
          %1803 = vmatmul.bf16.gmra.mxu0 %v1177
          %v1804 = vpop.f32.mrf.mxu0
          %v1805 = vadd.f32 %v1253, %v1804
          %v1806 = vpop.f32.mrf.mxu0
          %v1807 = vadd.f32 %v1253, %v1806
          %1808 = vmatmul.bf16.gmra.mxu0 %v1179
          %v1809 = vpop.f32.mrf.mxu0
          %v1810 = vadd.f32 %v1253, %v1809
          %v1811 = vpop.f32.mrf.mxu0
          %v1812 = vadd.f32 %v1253, %v1811
          %1813 = vmatmul.bf16.gmra.mxu0 %v1181
          %v1814 = vpop.f32.mrf.mxu0
          %v1815 = vadd.f32 %v1253, %v1814
          %v1816 = vpop.f32.mrf.mxu0
          %v1817 = vadd.f32 %v1253, %v1816
          %1818 = vmatmul.bf16.gmra.mxu0 %v1183
          %v1819 = vpop.f32.mrf.mxu0
          %v1820 = vadd.f32 %v1253, %v1819
          %v1821 = vpop.f32.mrf.mxu0
          %v1822 = vadd.f32 %v1253, %v1821
          %1823 = vdwg.mxu0
          %1824 = vmatpush.bf16.msra.mxu0 %v1513
          %1825 = vmatpush.bf16.msra.mxu0 %v1509
          %1826 = vmatpush.bf16.msra.mxu0 %v1505
          %1827 = vmatpush.bf16.msra.mxu0 %v1501
          %1828 = vmatpush.bf16.msra.mxu0 %v1497
          %1829 = vmatpush.bf16.msra.mxu0 %v1493
          %1830 = vmatpush.bf16.msra.mxu0 %v1489
          %1831 = vmatpush.bf16.msra.mxu0 %v1485
          %1832 = vmatmul.bf16.gmra.mxu0 %v1170
          %v1833 = vpop.f32.mrf.mxu0
          %v1834 = vadd.f32 %v1785, %v1833
          %v1835 = vpop.f32.mrf.mxu0
          %v1836 = vadd.f32 %v1787, %v1835
          %1837 = vmatmul.bf16.gmra.mxu0 %v1172
          %v1838 = vpop.f32.mrf.mxu0
          %v1839 = vadd.f32 %v1790, %v1838
          %v1840 = vpop.f32.mrf.mxu0
          %v1841 = vadd.f32 %v1792, %v1840
          %1842 = vmatmul.bf16.gmra.mxu0 %v1174
          %v1843 = vpop.f32.mrf.mxu0
          %v1844 = vadd.f32 %v1795, %v1843
          %v1845 = vpop.f32.mrf.mxu0
          %v1846 = vadd.f32 %v1797, %v1845
          %1847 = vmatmul.bf16.gmra.mxu0 %v1176
          %v1848 = vpop.f32.mrf.mxu0
          %v1849 = vadd.f32 %v1800, %v1848
          %v1850 = vpop.f32.mrf.mxu0
          %v1851 = vadd.f32 %v1802, %v1850
          %1852 = vmatmul.bf16.gmra.mxu0 %v1178
          %v1853 = vpop.f32.mrf.mxu0
          %v1854 = vadd.f32 %v1805, %v1853
          %v1855 = vpop.f32.mrf.mxu0
          %v1856 = vadd.f32 %v1807, %v1855
          %1857 = vmatmul.bf16.gmra.mxu0 %v1180
          %v1858 = vpop.f32.mrf.mxu0
          %v1859 = vadd.f32 %v1810, %v1858
          %v1860 = vpop.f32.mrf.mxu0
          %v1861 = vadd.f32 %v1812, %v1860
          %1862 = vmatmul.bf16.gmra.mxu0 %v1182
          %v1863 = vpop.f32.mrf.mxu0
          %v1864 = vadd.f32 %v1815, %v1863
          %v1865 = vpop.f32.mrf.mxu0
          %v1866 = vadd.f32 %v1817, %v1865
          %1867 = vmatmul.bf16.gmra.mxu0 %v1184
          %v1868 = vpop.f32.mrf.mxu0
          %v1869 = vadd.f32 %v1820, %v1868
          %v1870 = vpop.f32.mrf.mxu0
          %v1871 = vadd.f32 %v1822, %v1870
          %1872 = vdwg.mxu0
          %1873 = vmatpush.bf16.msra.mxu0 %v1482
          %1874 = vmatpush.bf16.msra.mxu0 %v1478
          %1875 = vmatpush.bf16.msra.mxu0 %v1474
          %1876 = vmatpush.bf16.msra.mxu0 %v1470
          %1877 = vmatpush.bf16.msra.mxu0 %v1466
          %1878 = vmatpush.bf16.msra.mxu0 %v1462
          %1879 = vmatpush.bf16.msra.mxu0 %v1458
          %1880 = vmatpush.bf16.msra.mxu0 %v1454
          %1881 = vmatmul.bf16.gmra.mxu0 %v1169
          %v1882 = vpop.f32.mrf.mxu0
          %v1883 = vadd.f32 %v1254, %v1882
          %v1884 = vpop.f32.mrf.mxu0
          %v1885 = vadd.f32 %v1254, %v1884
          %1886 = vmatmul.bf16.gmra.mxu0 %v1171
          %v1887 = vpop.f32.mrf.mxu0
          %v1888 = vadd.f32 %v1254, %v1887
          %v1889 = vpop.f32.mrf.mxu0
          %v1890 = vadd.f32 %v1254, %v1889
          %1891 = vmatmul.bf16.gmra.mxu0 %v1173
          %v1892 = vpop.f32.mrf.mxu0
          %v1893 = vadd.f32 %v1254, %v1892
          %v1894 = vpop.f32.mrf.mxu0
          %v1895 = vadd.f32 %v1254, %v1894
          %1896 = vmatmul.bf16.gmra.mxu0 %v1175
          %v1897 = vpop.f32.mrf.mxu0
          %v1898 = vadd.f32 %v1254, %v1897
          %v1899 = vpop.f32.mrf.mxu0
          %v1900 = vadd.f32 %v1254, %v1899
          %1901 = vmatmul.bf16.gmra.mxu0 %v1177
          %v1902 = vpop.f32.mrf.mxu0
          %v1903 = vadd.f32 %v1254, %v1902
          %v1904 = vpop.f32.mrf.mxu0
          %v1905 = vadd.f32 %v1254, %v1904
          %1906 = vmatmul.bf16.gmra.mxu0 %v1179
          %v1907 = vpop.f32.mrf.mxu0
          %v1908 = vadd.f32 %v1254, %v1907
          %v1909 = vpop.f32.mrf.mxu0
          %v1910 = vadd.f32 %v1254, %v1909
          %1911 = vmatmul.bf16.gmra.mxu0 %v1181
          %v1912 = vpop.f32.mrf.mxu0
          %v1913 = vadd.f32 %v1254, %v1912
          %v1914 = vpop.f32.mrf.mxu0
          %v1915 = vadd.f32 %v1254, %v1914
          %1916 = vmatmul.bf16.gmra.mxu0 %v1183
          %v1917 = vpop.f32.mrf.mxu0
          %v1918 = vadd.f32 %v1254, %v1917
          %v1919 = vpop.f32.mrf.mxu0
          %v1920 = vadd.f32 %v1254, %v1919
          %1921 = vdwg.mxu0
          %1922 = vmatpush.bf16.msra.mxu0 %v1514
          %1923 = vmatpush.bf16.msra.mxu0 %v1510
          %1924 = vmatpush.bf16.msra.mxu0 %v1506
          %1925 = vmatpush.bf16.msra.mxu0 %v1502
          %1926 = vmatpush.bf16.msra.mxu0 %v1498
          %1927 = vmatpush.bf16.msra.mxu0 %v1494
          %1928 = vmatpush.bf16.msra.mxu0 %v1490
          %1929 = vmatpush.bf16.msra.mxu0 %v1486
          %1930 = vmatmul.bf16.gmra.mxu0 %v1170
          %v1931 = vpop.f32.mrf.mxu0
          %v1932 = vadd.f32 %v1883, %v1931
          %v1933 = vpop.f32.mrf.mxu0
          %v1934 = vadd.f32 %v1885, %v1933
          %1935 = vmatmul.bf16.gmra.mxu0 %v1172
          %v1936 = vpop.f32.mrf.mxu0
          %v1937 = vadd.f32 %v1888, %v1936
          %v1938 = vpop.f32.mrf.mxu0
          %v1939 = vadd.f32 %v1890, %v1938
          %1940 = vmatmul.bf16.gmra.mxu0 %v1174
          %v1941 = vpop.f32.mrf.mxu0
          %v1942 = vadd.f32 %v1893, %v1941
          %v1943 = vpop.f32.mrf.mxu0
          %v1944 = vadd.f32 %v1895, %v1943
          %1945 = vmatmul.bf16.gmra.mxu0 %v1176
          %v1946 = vpop.f32.mrf.mxu0
          %v1947 = vadd.f32 %v1898, %v1946
          %v1948 = vpop.f32.mrf.mxu0
          %v1949 = vadd.f32 %v1900, %v1948
          %1950 = vmatmul.bf16.gmra.mxu0 %v1178
          %v1951 = vpop.f32.mrf.mxu0
          %v1952 = vadd.f32 %v1903, %v1951
          %v1953 = vpop.f32.mrf.mxu0
          %v1954 = vadd.f32 %v1905, %v1953
          %1955 = vmatmul.bf16.gmra.mxu0 %v1180
          %v1956 = vpop.f32.mrf.mxu0
          %v1957 = vadd.f32 %v1908, %v1956
          %v1958 = vpop.f32.mrf.mxu0
          %v1959 = vadd.f32 %v1910, %v1958
          %1960 = vmatmul.bf16.gmra.mxu0 %v1182
          %v1961 = vpop.f32.mrf.mxu0
          %v1962 = vadd.f32 %v1913, %v1961
          %v1963 = vpop.f32.mrf.mxu0
          %v1964 = vadd.f32 %v1915, %v1963
          %1965 = vmatmul.bf16.gmra.mxu0 %v1184
          %v1966 = vpop.f32.mrf.mxu0
          %v1967 = vadd.f32 %v1918, %v1966
          %v1968 = vpop.f32.mrf.mxu0
          %v1969 = vadd.f32 %v1920, %v1968
          %1970 = vdwg.mxu0
          %v1971 = vpack.c.bf16 %v1736, %v1638
          %v1972 = vpack.c.bf16 %v1932, %v1834
          %v1973 = vpack.c.bf16 %v1738, %v1640
          %v1974 = vpack.c.bf16 %v1934, %v1836
          %v1975 = vpack.c.bf16 %v1741, %v1643
          %v1976 = vpack.c.bf16 %v1937, %v1839
          %v1977 = vpack.c.bf16 %v1743, %v1645
          %v1978 = vpack.c.bf16 %v1939, %v1841
          %v1979 = vpack.c.bf16 %v1746, %v1648
          %v1980 = vpack.c.bf16 %v1942, %v1844
          %v1981 = vpack.c.bf16 %v1748, %v1650
          %v1982 = vpack.c.bf16 %v1944, %v1846
          %v1983 = vpack.c.bf16 %v1751, %v1653
          %v1984 = vpack.c.bf16 %v1947, %v1849
          %v1985 = vpack.c.bf16 %v1753, %v1655
          %v1986 = vpack.c.bf16 %v1949, %v1851
          %v1987 = vpack.c.bf16 %v1756, %v1658
          %v1988 = vpack.c.bf16 %v1952, %v1854
          %v1989 = vpack.c.bf16 %v1758, %v1660
          %v1990 = vpack.c.bf16 %v1954, %v1856
          %v1991 = vpack.c.bf16 %v1761, %v1663
          %v1992 = vpack.c.bf16 %v1957, %v1859
          %v1993 = vpack.c.bf16 %v1763, %v1665
          %v1994 = vpack.c.bf16 %v1959, %v1861
          %v1995 = vpack.c.bf16 %v1766, %v1668
          %v1996 = vpack.c.bf16 %v1962, %v1864
          %v1997 = vpack.c.bf16 %v1768, %v1670
          %v1998 = vpack.c.bf16 %v1964, %v1866
          %v1999 = vpack.c.bf16 %v1771, %v1673
          %v2000 = vpack.c.bf16 %v1967, %v1869
          %v2001 = vpack.c.bf16 %v1773, %v1675
          %v2002 = vpack.c.bf16 %v1969, %v1871
          %2003 = vst [vmem:[#allocation2] sm:$0xff] %v1971
          %2004 = vst [vmem:[#allocation2 + $0x8] sm:$0xff] %v1972
          %2005 = vst [vmem:[#allocation2 + $0x10] sm:$0xff] %v1973
          %2006 = vst [vmem:[#allocation2 + $0x18] sm:$0xff] %v1974
          %2007 = vst [vmem:[#allocation2 + $0x20] sm:$0xff] %v1975
          %2008 = vst [vmem:[#allocation2 + $0x28] sm:$0xff] %v1976
          %2009 = vst [vmem:[#allocation2 + $0x30] sm:$0xff] %v1977
          %2010 = vst [vmem:[#allocation2 + $0x38] sm:$0xff] %v1978
          %2011 = vst [vmem:[#allocation2 + $0x40] sm:$0xff] %v1979
          %2012 = vst [vmem:[#allocation2 + $0x48] sm:$0xff] %v1980
          %2013 = vst [vmem:[#allocation2 + $0x50] sm:$0xff] %v1981
          %2014 = vst [vmem:[#allocation2 + $0x58] sm:$0xff] %v1982
          %2015 = vst [vmem:[#allocation2 + $0x60] sm:$0xff] %v1983
          %2016 = vst [vmem:[#allocation2 + $0x68] sm:$0xff] %v1984
          %2017 = vst [vmem:[#allocation2 + $0x70] sm:$0xff] %v1985
          %2018 = vst [vmem:[#allocation2 + $0x78] sm:$0xff] %v1986
          %2019 = vst [vmem:[#allocation2 + $0x80] sm:$0xff] %v1987
          %2020 = vst [vmem:[#allocation2 + $0x88] sm:$0xff] %v1988
          %2021 = vst [vmem:[#allocation2 + $0x90] sm:$0xff] %v1989
          %2022 = vst [vmem:[#allocation2 + $0x98] sm:$0xff] %v1990
          %2023 = vst [vmem:[#allocation2 + $0xa0] sm:$0xff] %v1991
          %2024 = vst [vmem:[#allocation2 + $0xa8] sm:$0xff] %v1992
          %2025 = vst [vmem:[#allocation2 + $0xb0] sm:$0xff] %v1993
          %2026 = vst [vmem:[#allocation2 + $0xb8] sm:$0xff] %v1994
          %2027 = vst [vmem:[#allocation2 + $0xc0] sm:$0xff] %v1995
          %2028 = vst [vmem:[#allocation2 + $0xc8] sm:$0xff] %v1996
          %2029 = vst [vmem:[#allocation2 + $0xd0] sm:$0xff] %v1997
          %2030 = vst [vmem:[#allocation2 + $0xd8] sm:$0xff] %v1998
          %2031 = vst [vmem:[#allocation2 + $0xe0] sm:$0xff] %v1999
          %2032 = vst [vmem:[#allocation2 + $0xe8] sm:$0xff] %v2000
          %2033 = vst [vmem:[#allocation2 + $0xf0] sm:$0xff] %v2001
          %2034 = vst [vmem:[#allocation2 + $0xf8] sm:$0xff] %v2002
        $region108: #{tpu_custom_call.1} parent=71 // pred_fallthru
          _
        %s2035 = smul.u32 %s39, 64
        %s2036 = sshra.s32 %s2035, 3
        %s2037 = sand.u32 %s2035, 7
        %s2038 = smul.u32 %s2036, 2
        %s2039 = smul.addr %s2038, 4
        %s2040 = scalar_lea.vmem %s506, %s2039 [#allocation3]
        %v2041 = vld [vmem:[%s2040] sm:$0xff]
        %v2042 = vld [vmem:[%s2040 + $0x8] sm:$0xff]
        %v2043 = vld [vmem:[%s2040 + $0x10] sm:$0xff]
        %v2044 = vld [vmem:[%s2040 + $0x18] sm:$0xff]
        %v2045 = vld [vmem:[%s2040 + $0x20] sm:$0xff]
        %v2046 = vld [vmem:[%s2040 + $0x28] sm:$0xff]
        %v2047 = vld [vmem:[%s2040 + $0x30] sm:$0xff]
        %v2048 = vld [vmem:[%s2040 + $0x38] sm:$0xff]
        %v2049 = vunpack.c.l.bf16 %v2041
        %v2050 = vunpack.c.h.bf16 %v2041
        %v2051 = vunpack.c.l.bf16 %v2042
        %v2052 = vunpack.c.h.bf16 %v2042
        %v2053 = vunpack.c.l.bf16 %v2043
        %v2054 = vunpack.c.h.bf16 %v2043
        %v2055 = vunpack.c.l.bf16 %v2044
        %v2056 = vunpack.c.h.bf16 %v2044
        %v2057 = vunpack.c.l.bf16 %v2045
        %v2058 = vunpack.c.h.bf16 %v2045
        %v2059 = vunpack.c.l.bf16 %v2046
        %v2060 = vunpack.c.h.bf16 %v2046
        %v2061 = vunpack.c.l.bf16 %v2047
        %v2062 = vunpack.c.h.bf16 %v2047
        %v2063 = vunpack.c.l.bf16 %v2048
        %v2064 = vunpack.c.h.bf16 %v2048
        %v2065 = vld [vmem:[%s5] sm:$0x3]
        %v2066 = vld [vmem:[#allocation11] sm:$0x3]
        %v2067 = vadd.f32 %v2049, %v2050
        %2068 = vadd.xlane.f32.xlu0 %v2067
        %v2069 = vpop.xlane.xlu0 %2068
        %v2070 = vadd.f32 %v2051, %v2052
        %2071 = vadd.xlane.f32.xlu0 %v2070
        %v2072 = vpop.xlane.xlu0 %2071
        %v2073 = vadd.f32 %v2053, %v2054
        %2074 = vadd.xlane.f32.xlu0 %v2073
        %v2075 = vpop.xlane.xlu0 %2074
        %v2076 = vadd.f32 %v2055, %v2056
        %2077 = vadd.xlane.f32.xlu0 %v2076
        %v2078 = vpop.xlane.xlu0 %2077
        %v2079 = vadd.f32 %v2057, %v2058
        %2080 = vadd.xlane.f32.xlu0 %v2079
        %v2081 = vpop.xlane.xlu0 %2080
        %v2082 = vadd.f32 %v2059, %v2060
        %2083 = vadd.xlane.f32.xlu0 %v2082
        %v2084 = vpop.xlane.xlu0 %2083
        %v2085 = vadd.f32 %v2061, %v2062
        %2086 = vadd.xlane.f32.xlu0 %v2085
        %v2087 = vpop.xlane.xlu0 %2086
        %v2088 = vadd.f32 %v2063, %v2064
        %2089 = vadd.xlane.f32.xlu0 %v2088
        %v2090 = vpop.xlane.xlu0 %2089
        %v2091 = vrcp.pop 256.0
        %v2092 = vmul.f32 256.0, %v2091
        %v2093 = vsub.f32 1.0, %v2092
        %v2094 = vmul.f32 %v2091, %v2093
        %v2095 = vadd.f32 %v2091, %v2094
        %vm2096 = vweird.f32 %v2091
        %v2097 = vsel %vm2096, %v2091, %v2095
        %v2098 = vmul.f32 %v2069, %v2097
        %v2099 = vmul.f32 %v2072, %v2097
        %v2100 = vmul.f32 %v2075, %v2097
        %v2101 = vmul.f32 %v2078, %v2097
        %v2102 = vmul.f32 %v2081, %v2097
        %v2103 = vmul.f32 %v2084, %v2097
        %v2104 = vmul.f32 %v2087, %v2097
        %v2105 = vmul.f32 %v2090, %v2097
        %v2106 = vmul.f32 %v2049, %v2049
        %v2107 = vmul.f32 %v2050, %v2050
        %v2108 = vmul.f32 %v2051, %v2051
        %v2109 = vmul.f32 %v2052, %v2052
        %v2110 = vmul.f32 %v2053, %v2053
        %v2111 = vmul.f32 %v2054, %v2054
        %v2112 = vmul.f32 %v2055, %v2055
        %v2113 = vmul.f32 %v2056, %v2056
        %v2114 = vmul.f32 %v2057, %v2057
        %v2115 = vmul.f32 %v2058, %v2058
        %v2116 = vmul.f32 %v2059, %v2059
        %v2117 = vmul.f32 %v2060, %v2060
        %v2118 = vmul.f32 %v2061, %v2061
        %v2119 = vmul.f32 %v2062, %v2062
        %v2120 = vmul.f32 %v2063, %v2063
        %v2121 = vmul.f32 %v2064, %v2064
        %v2122 = vadd.f32 %v2106, %v2107
        %2123 = vadd.xlane.f32.xlu0 %v2122
        %v2124 = vpop.xlane.xlu0 %2123
        %v2125 = vadd.f32 %v2108, %v2109
        %2126 = vadd.xlane.f32.xlu0 %v2125
        %v2127 = vpop.xlane.xlu0 %2126
        %v2128 = vadd.f32 %v2110, %v2111
        %2129 = vadd.xlane.f32.xlu0 %v2128
        %v2130 = vpop.xlane.xlu0 %2129
        %v2131 = vadd.f32 %v2112, %v2113
        %2132 = vadd.xlane.f32.xlu0 %v2131
        %v2133 = vpop.xlane.xlu0 %2132
        %v2134 = vadd.f32 %v2114, %v2115
        %2135 = vadd.xlane.f32.xlu0 %v2134
        %v2136 = vpop.xlane.xlu0 %2135
        %v2137 = vadd.f32 %v2116, %v2117
        %2138 = vadd.xlane.f32.xlu0 %v2137
        %v2139 = vpop.xlane.xlu0 %2138
        %v2140 = vadd.f32 %v2118, %v2119
        %2141 = vadd.xlane.f32.xlu0 %v2140
        %v2142 = vpop.xlane.xlu0 %2141
        %v2143 = vadd.f32 %v2120, %v2121
        %2144 = vadd.xlane.f32.xlu0 %v2143
        %v2145 = vpop.xlane.xlu0 %2144
        %v2146 = vmul.f32 %v2124, %v2097
        %v2147 = vmul.f32 %v2127, %v2097
        %v2148 = vmul.f32 %v2130, %v2097
        %v2149 = vmul.f32 %v2133, %v2097
        %v2150 = vmul.f32 %v2136, %v2097
        %v2151 = vmul.f32 %v2139, %v2097
        %v2152 = vmul.f32 %v2142, %v2097
        %v2153 = vmul.f32 %v2145, %v2097
        %v2154 = vmul.f32 %v2098, %v2098
        %v2155 = vmul.f32 %v2099, %v2099
        %v2156 = vmul.f32 %v2100, %v2100
        %v2157 = vmul.f32 %v2101, %v2101
        %v2158 = vmul.f32 %v2102, %v2102
        %v2159 = vmul.f32 %v2103, %v2103
        %v2160 = vmul.f32 %v2104, %v2104
        %v2161 = vmul.f32 %v2105, %v2105
        %v2162 = vsub.f32 %v2146, %v2154
        %v2163 = vsub.f32 %v2147, %v2155
        %v2164 = vsub.f32 %v2148, %v2156
        %v2165 = vsub.f32 %v2149, %v2157
        %v2166 = vsub.f32 %v2150, %v2158
        %v2167 = vsub.f32 %v2151, %v2159
        %v2168 = vsub.f32 %v2152, %v2160
        %v2169 = vsub.f32 %v2153, %v2161
        %v2170 = vmax.f32 %v2162, 0.0
        %v2171 = vmax.f32 %v2163, 0.0
        %v2172 = vmax.f32 %v2164, 0.0
        %v2173 = vmax.f32 %v2165, 0.0
        %v2174 = vmax.f32 %v2166, 0.0
        %v2175 = vmax.f32 %v2167, 0.0
        %v2176 = vmax.f32 %v2168, 0.0
        %v2177 = vmax.f32 %v2169, 0.0
        %v2178 = vsub.f32 %v2049, %v2098
        %v2179 = vsub.f32 %v2050, %v2098
        %v2180 = vsub.f32 %v2051, %v2099
        %v2181 = vsub.f32 %v2052, %v2099
        %v2182 = vsub.f32 %v2053, %v2100
        %v2183 = vsub.f32 %v2054, %v2100
        %v2184 = vsub.f32 %v2055, %v2101
        %v2185 = vsub.f32 %v2056, %v2101
        %v2186 = vsub.f32 %v2057, %v2102
        %v2187 = vsub.f32 %v2058, %v2102
        %v2188 = vsub.f32 %v2059, %v2103
        %v2189 = vsub.f32 %v2060, %v2103
        %v2190 = vsub.f32 %v2061, %v2104
        %v2191 = vsub.f32 %v2062, %v2104
        %v2192 = vsub.f32 %v2063, %v2105
        %v2193 = vsub.f32 %v2064, %v2105
        %v2194 = vadd.f32 %v2170, 1e-05
        %v2195 = vadd.f32 %v2171, 1e-05
        %v2196 = vadd.f32 %v2172, 1e-05
        %v2197 = vadd.f32 %v2173, 1e-05
        %v2198 = vadd.f32 %v2174, 1e-05
        %v2199 = vadd.f32 %v2175, 1e-05
        %v2200 = vadd.f32 %v2176, 1e-05
        %v2201 = vadd.f32 %v2177, 1e-05
        %v2202 = vrsqrt.pop %v2194
        %v2203 = vmul.f32 %v2202, %v2194
        %v2204 = vmul.f32 %v2203, %v2202
        %v2205 = vmul.f32 0.5, %v2204
        %v2206 = vsub.f32 1.5, %v2205
        %v2207 = vmul.f32 %v2202, %v2206
        %vm2208 = vweird.f32 %v2194
        %vm2209 = vweird.f32 %v2202
        %vm2210 = vmor %vm2208, %vm2209
        %v2211 = vsel %vm2210, %v2202, %v2207
        %v2212 = vrsqrt.pop %v2195
        %v2213 = vmul.f32 %v2212, %v2195
        %v2214 = vmul.f32 %v2213, %v2212
        %v2215 = vmul.f32 0.5, %v2214
        %v2216 = vsub.f32 1.5, %v2215
        %v2217 = vmul.f32 %v2212, %v2216
        %vm2218 = vweird.f32 %v2195
        %vm2219 = vweird.f32 %v2212
        %vm2220 = vmor %vm2218, %vm2219
        %v2221 = vsel %vm2220, %v2212, %v2217
        %v2222 = vrsqrt.pop %v2196
        %v2223 = vmul.f32 %v2222, %v2196
        %v2224 = vmul.f32 %v2223, %v2222
        %v2225 = vmul.f32 0.5, %v2224
        %v2226 = vsub.f32 1.5, %v2225
        %v2227 = vmul.f32 %v2222, %v2226
        %vm2228 = vweird.f32 %v2196
        %vm2229 = vweird.f32 %v2222
        %vm2230 = vmor %vm2228, %vm2229
        %v2231 = vsel %vm2230, %v2222, %v2227
        %v2232 = vrsqrt.pop %v2197
        %v2233 = vmul.f32 %v2232, %v2197
        %v2234 = vmul.f32 %v2233, %v2232
        %v2235 = vmul.f32 0.5, %v2234
        %v2236 = vsub.f32 1.5, %v2235
        %v2237 = vmul.f32 %v2232, %v2236
        %vm2238 = vweird.f32 %v2197
        %vm2239 = vweird.f32 %v2232
        %vm2240 = vmor %vm2238, %vm2239
        %v2241 = vsel %vm2240, %v2232, %v2237
        %v2242 = vrsqrt.pop %v2198
        %v2243 = vmul.f32 %v2242, %v2198
        %v2244 = vmul.f32 %v2243, %v2242
        %v2245 = vmul.f32 0.5, %v2244
        %v2246 = vsub.f32 1.5, %v2245
        %v2247 = vmul.f32 %v2242, %v2246
        %vm2248 = vweird.f32 %v2198
        %vm2249 = vweird.f32 %v2242
        %vm2250 = vmor %vm2248, %vm2249
        %v2251 = vsel %vm2250, %v2242, %v2247
        %v2252 = vrsqrt.pop %v2199
        %v2253 = vmul.f32 %v2252, %v2199
        %v2254 = vmul.f32 %v2253, %v2252
        %v2255 = vmul.f32 0.5, %v2254
        %v2256 = vsub.f32 1.5, %v2255
        %v2257 = vmul.f32 %v2252, %v2256
        %vm2258 = vweird.f32 %v2199
        %vm2259 = vweird.f32 %v2252
        %vm2260 = vmor %vm2258, %vm2259
        %v2261 = vsel %vm2260, %v2252, %v2257
        %v2262 = vrsqrt.pop %v2200
        %v2263 = vmul.f32 %v2262, %v2200
        %v2264 = vmul.f32 %v2263, %v2262
        %v2265 = vmul.f32 0.5, %v2264
        %v2266 = vsub.f32 1.5, %v2265
        %v2267 = vmul.f32 %v2262, %v2266
        %vm2268 = vweird.f32 %v2200
        %vm2269 = vweird.f32 %v2262
        %vm2270 = vmor %vm2268, %vm2269
        %v2271 = vsel %vm2270, %v2262, %v2267
        %v2272 = vrsqrt.pop %v2201
        %v2273 = vmul.f32 %v2272, %v2201
        %v2274 = vmul.f32 %v2273, %v2272
        %v2275 = vmul.f32 0.5, %v2274
        %v2276 = vsub.f32 1.5, %v2275
        %v2277 = vmul.f32 %v2272, %v2276
        %vm2278 = vweird.f32 %v2201
        %vm2279 = vweird.f32 %v2272
        %vm2280 = vmor %vm2278, %vm2279
        %v2281 = vsel %vm2280, %v2272, %v2277
        %v2282 = vmul.f32 %v2178, %v2211
        %v2283 = vmul.f32 %v2179, %v2211
        %v2284 = vmul.f32 %v2180, %v2221
        %v2285 = vmul.f32 %v2181, %v2221
        %v2286 = vmul.f32 %v2182, %v2231
        %v2287 = vmul.f32 %v2183, %v2231
        %v2288 = vmul.f32 %v2184, %v2241
        %v2289 = vmul.f32 %v2185, %v2241
        %v2290 = vmul.f32 %v2186, %v2251
        %v2291 = vmul.f32 %v2187, %v2251
        %v2292 = vmul.f32 %v2188, %v2261
        %v2293 = vmul.f32 %v2189, %v2261
        %v2294 = vmul.f32 %v2190, %v2271
        %v2295 = vmul.f32 %v2191, %v2271
        %v2296 = vmul.f32 %v2192, %v2281
        %v2297 = vmul.f32 %v2193, %v2281
        %v2299 = vperm.slane %v2065, 0
        %v2300 = vperm.slane %v2065, 1
        %v2303 = vmul.f32 %v2282, %v2299
        %v2304 = vmul.f32 %v2283, %v2300
        %v2305 = vmul.f32 %v2284, %v2299
        %v2306 = vmul.f32 %v2285, %v2300
        %v2307 = vmul.f32 %v2286, %v2299
        %v2308 = vmul.f32 %v2287, %v2300
        %v2309 = vmul.f32 %v2288, %v2299
        %v2310 = vmul.f32 %v2289, %v2300
        %v2311 = vmul.f32 %v2290, %v2299
        %v2312 = vmul.f32 %v2291, %v2300
        %v2313 = vmul.f32 %v2292, %v2299
        %v2314 = vmul.f32 %v2293, %v2300
        %v2315 = vmul.f32 %v2294, %v2299
        %v2316 = vmul.f32 %v2295, %v2300
        %v2317 = vmul.f32 %v2296, %v2299
        %v2318 = vmul.f32 %v2297, %v2300
        %v2320 = vperm.slane %v2066, 0
        %v2321 = vperm.slane %v2066, 1
        %v2324 = vadd.f32 %v2303, %v2320
        %v2325 = vadd.f32 %v2304, %v2321
        %v2326 = vadd.f32 %v2305, %v2320
        %v2327 = vadd.f32 %v2306, %v2321
        %v2328 = vadd.f32 %v2307, %v2320
        %v2329 = vadd.f32 %v2308, %v2321
        %v2330 = vadd.f32 %v2309, %v2320
        %v2331 = vadd.f32 %v2310, %v2321
        %v2332 = vadd.f32 %v2311, %v2320
        %v2333 = vadd.f32 %v2312, %v2321
        %v2334 = vadd.f32 %v2313, %v2320
        %v2335 = vadd.f32 %v2314, %v2321
        %v2336 = vadd.f32 %v2315, %v2320
        %v2337 = vadd.f32 %v2316, %v2321
        %v2338 = vadd.f32 %v2317, %v2320
        %v2339 = vadd.f32 %v2318, %v2321
        %v2340 = vpack.c.bf16 %v2326, %v2324
        %v2341 = vpack.c.bf16 %v2327, %v2325
        %v2342 = vpack.c.bf16 %v2330, %v2328
        %v2343 = vpack.c.bf16 %v2331, %v2329
        %v2344 = vpack.c.bf16 %v2334, %v2332
        %v2345 = vpack.c.bf16 %v2335, %v2333
        %v2346 = vpack.c.bf16 %v2338, %v2336
        %v2347 = vpack.c.bf16 %v2339, %v2337
        %v2348 = vld [vmem:[#allocation6] sm:$0xff]
        %v2349 = vld [vmem:[#allocation6 + $0x18] sm:$0xff]
        %v2350 = vld [vmem:[#allocation6 + $0x30] sm:$0xff]
        %v2351 = vld [vmem:[#allocation6 + $0x48] sm:$0xff]
        %v2352 = vld [vmem:[#allocation6 + $0x60] sm:$0xff]
        %v2353 = vld [vmem:[#allocation6 + $0x78] sm:$0xff]
        %v2354 = vld [vmem:[#allocation6 + $0x90] sm:$0xff]
        %v2355 = vld [vmem:[#allocation6 + $0xa8] sm:$0xff]
        %v2356 = vld [vmem:[#allocation6 + $0xc0] sm:$0xff]
        %v2357 = vld [vmem:[#allocation6 + $0xd8] sm:$0xff]
        %v2358 = vld [vmem:[#allocation6 + $0xf0] sm:$0xff]
        %v2359 = vld [vmem:[#allocation6 + $0x108] sm:$0xff]
        %v2360 = vld [vmem:[#allocation6 + $0x120] sm:$0xff]
        %v2361 = vld [vmem:[#allocation6 + $0x138] sm:$0xff]
        %v2362 = vld [vmem:[#allocation6 + $0x150] sm:$0xff]
        %v2363 = vld [vmem:[#allocation6 + $0x168] sm:$0xff]
        %v2364 = vld [vmem:[#allocation6 + $0x180] sm:$0xff]
        %v2365 = vld [vmem:[#allocation6 + $0x198] sm:$0xff]
        %v2366 = vld [vmem:[#allocation6 + $0x1b0] sm:$0xff]
        %v2367 = vld [vmem:[#allocation6 + $0x1c8] sm:$0xff]
        %v2368 = vld [vmem:[#allocation6 + $0x1e0] sm:$0xff]
        %v2369 = vld [vmem:[#allocation6 + $0x1f8] sm:$0xff]
        %v2370 = vld [vmem:[#allocation6 + $0x210] sm:$0xff]
        %v2371 = vld [vmem:[#allocation6 + $0x228] sm:$0xff]
        %v2372 = vld [vmem:[#allocation6 + $0x240] sm:$0xff]
        %v2373 = vld [vmem:[#allocation6 + $0x258] sm:$0xff]
        %v2374 = vld [vmem:[#allocation6 + $0x270] sm:$0xff]
        %v2375 = vld [vmem:[#allocation6 + $0x288] sm:$0xff]
        %v2376 = vld [vmem:[#allocation6 + $0x2a0] sm:$0xff]
        %v2377 = vld [vmem:[#allocation6 + $0x2b8] sm:$0xff]
        %v2378 = vld [vmem:[#allocation6 + $0x2d0] sm:$0xff]
        %v2379 = vld [vmem:[#allocation6 + $0x2e8] sm:$0xff]
        %v2380 = vld [vmem:[#allocation8] sm:$0x3]
        %v2382 = vperm.slane %v2380, 0
        %v2383 = vperm.slane %v2380, 1
        %v2418 = vunpack.c.l.b16 %v2348
        %v2419 = vunpack.c.h.b16 %v2348
        %v2420 = vunpack.c.l.b16 %v2349
        %v2421 = vunpack.c.h.b16 %v2349
        %v2422 = vunpack.c.l.b16 %v2350
        %v2423 = vunpack.c.h.b16 %v2350
        %v2424 = vunpack.c.l.b16 %v2351
        %v2425 = vunpack.c.h.b16 %v2351
        %v2426 = vunpack.c.l.b16 %v2352
        %v2427 = vunpack.c.h.b16 %v2352
        %v2428 = vunpack.c.l.b16 %v2353
        %v2429 = vunpack.c.h.b16 %v2353
        %v2430 = vunpack.c.l.b16 %v2354
        %v2431 = vunpack.c.h.b16 %v2354
        %v2432 = vunpack.c.l.b16 %v2355
        %v2433 = vunpack.c.h.b16 %v2355
        %v2434 = vunpack.c.l.b16 %v2356
        %v2435 = vunpack.c.h.b16 %v2356
        %v2436 = vunpack.c.l.b16 %v2357
        %v2437 = vunpack.c.h.b16 %v2357
        %v2438 = vunpack.c.l.b16 %v2358
        %v2439 = vunpack.c.h.b16 %v2358
        %v2440 = vunpack.c.l.b16 %v2359
        %v2441 = vunpack.c.h.b16 %v2359
        %v2442 = vunpack.c.l.b16 %v2360
        %v2443 = vunpack.c.h.b16 %v2360
        %v2444 = vunpack.c.l.b16 %v2361
        %v2445 = vunpack.c.h.b16 %v2361
        %v2446 = vunpack.c.l.b16 %v2362
        %v2447 = vunpack.c.h.b16 %v2362
        %v2448 = vunpack.c.l.b16 %v2363
        %v2449 = vunpack.c.h.b16 %v2363
        %v2450 = vunpack.c.l.b16 %v2364
        %v2451 = vunpack.c.h.b16 %v2364
        %v2452 = vunpack.c.l.b16 %v2365
        %v2453 = vunpack.c.h.b16 %v2365
        %v2454 = vunpack.c.l.b16 %v2366
        %v2455 = vunpack.c.h.b16 %v2366
        %v2456 = vunpack.c.l.b16 %v2367
        %v2457 = vunpack.c.h.b16 %v2367
        %v2458 = vunpack.c.l.b16 %v2368
        %v2459 = vunpack.c.h.b16 %v2368
        %v2460 = vunpack.c.l.b16 %v2369
        %v2461 = vunpack.c.h.b16 %v2369
        %v2462 = vunpack.c.l.b16 %v2370
        %v2463 = vunpack.c.h.b16 %v2370
        %v2464 = vunpack.c.l.b16 %v2371
        %v2465 = vunpack.c.h.b16 %v2371
        %v2466 = vunpack.c.l.b16 %v2372
        %v2467 = vunpack.c.h.b16 %v2372
        %v2468 = vunpack.c.l.b16 %v2373
        %v2469 = vunpack.c.h.b16 %v2373
        %v2470 = vunpack.c.l.b16 %v2374
        %v2471 = vunpack.c.h.b16 %v2374
        %v2472 = vunpack.c.l.b16 %v2375
        %v2473 = vunpack.c.h.b16 %v2375
        %v2474 = vunpack.c.l.b16 %v2376
        %v2475 = vunpack.c.h.b16 %v2376
        %v2476 = vunpack.c.l.b16 %v2377
        %v2477 = vunpack.c.h.b16 %v2377
        %v2478 = vunpack.c.l.b16 %v2378
        %v2479 = vunpack.c.h.b16 %v2378
        %v2480 = vunpack.c.l.b16 %v2379
        %v2481 = vunpack.c.h.b16 %v2379
        %v2482 = vpack.c.b16 %v2420, %v2418
        %v2483 = vpack.c.b16 %v2421, %v2419
        %v2484 = vpack.c.b16 %v2424, %v2422
        %v2485 = vpack.c.b16 %v2425, %v2423
        %v2486 = vpack.c.b16 %v2428, %v2426
        %v2487 = vpack.c.b16 %v2429, %v2427
        %v2488 = vpack.c.b16 %v2432, %v2430
        %v2489 = vpack.c.b16 %v2433, %v2431
        %v2490 = vpack.c.b16 %v2436, %v2434
        %v2491 = vpack.c.b16 %v2437, %v2435
        %v2492 = vpack.c.b16 %v2440, %v2438
        %v2493 = vpack.c.b16 %v2441, %v2439
        %v2494 = vpack.c.b16 %v2444, %v2442
        %v2495 = vpack.c.b16 %v2445, %v2443
        %v2496 = vpack.c.b16 %v2448, %v2446
        %v2497 = vpack.c.b16 %v2449, %v2447
        %v2498 = vpack.c.b16 %v2452, %v2450
        %v2499 = vpack.c.b16 %v2453, %v2451
        %v2500 = vpack.c.b16 %v2456, %v2454
        %v2501 = vpack.c.b16 %v2457, %v2455
        %v2502 = vpack.c.b16 %v2460, %v2458
        %v2503 = vpack.c.b16 %v2461, %v2459
        %v2504 = vpack.c.b16 %v2464, %v2462
        %v2505 = vpack.c.b16 %v2465, %v2463
        %v2506 = vpack.c.b16 %v2468, %v2466
        %v2507 = vpack.c.b16 %v2469, %v2467
        %v2508 = vpack.c.b16 %v2472, %v2470
        %v2509 = vpack.c.b16 %v2473, %v2471
        %v2510 = vpack.c.b16 %v2476, %v2474
        %v2511 = vpack.c.b16 %v2477, %v2475
        %v2512 = vpack.c.b16 %v2480, %v2478
        %v2513 = vpack.c.b16 %v2481, %v2479
        %2546 = vmatpush.bf16.msra.mxu0 %v2496
        %2547 = vmatpush.bf16.msra.mxu0 %v2494
        %2548 = vmatpush.bf16.msra.mxu0 %v2492
        %2549 = vmatpush.bf16.msra.mxu0 %v2490
        %2550 = vmatpush.bf16.msra.mxu0 %v2488
        %2551 = vmatpush.bf16.msra.mxu0 %v2486
        %2552 = vmatpush.bf16.msra.mxu0 %v2484
        %2553 = vmatpush.bf16.msra.mxu0 %v2482
        %2554 = vmatmul.bf16.gmra.mxu0 %v2340
        %v2555 = vpop.f32.mrf.mxu0
        %v2556 = vadd.f32 %v2382, %v2555
        %v2557 = vpop.f32.mrf.mxu0
        %v2558 = vadd.f32 %v2382, %v2557
        %2559 = vmatmul.bf16.gmra.mxu0 %v2342
        %v2560 = vpop.f32.mrf.mxu0
        %v2561 = vadd.f32 %v2382, %v2560
        %v2562 = vpop.f32.mrf.mxu0
        %v2563 = vadd.f32 %v2382, %v2562
        %2564 = vmatmul.bf16.gmra.mxu0 %v2344
        %v2565 = vpop.f32.mrf.mxu0
        %v2566 = vadd.f32 %v2382, %v2565
        %v2567 = vpop.f32.mrf.mxu0
        %v2568 = vadd.f32 %v2382, %v2567
        %2569 = vmatmul.bf16.gmra.mxu0 %v2346
        %v2570 = vpop.f32.mrf.mxu0
        %v2571 = vadd.f32 %v2382, %v2570
        %v2572 = vpop.f32.mrf.mxu0
        %v2573 = vadd.f32 %v2382, %v2572
        %2574 = vdwg.mxu0
        %2575 = vmatpush.bf16.msra.mxu0 %v2512
        %2576 = vmatpush.bf16.msra.mxu0 %v2510
        %2577 = vmatpush.bf16.msra.mxu0 %v2508
        %2578 = vmatpush.bf16.msra.mxu0 %v2506
        %2579 = vmatpush.bf16.msra.mxu0 %v2504
        %2580 = vmatpush.bf16.msra.mxu0 %v2502
        %2581 = vmatpush.bf16.msra.mxu0 %v2500
        %2582 = vmatpush.bf16.msra.mxu0 %v2498
        %2583 = vmatmul.bf16.gmra.mxu0 %v2341
        %v2584 = vpop.f32.mrf.mxu0
        %v2585 = vadd.f32 %v2556, %v2584
        %v2586 = vpop.f32.mrf.mxu0
        %v2587 = vadd.f32 %v2558, %v2586
        %2588 = vmatmul.bf16.gmra.mxu0 %v2343
        %v2589 = vpop.f32.mrf.mxu0
        %v2590 = vadd.f32 %v2561, %v2589
        %v2591 = vpop.f32.mrf.mxu0
        %v2592 = vadd.f32 %v2563, %v2591
        %2593 = vmatmul.bf16.gmra.mxu0 %v2345
        %v2594 = vpop.f32.mrf.mxu0
        %v2595 = vadd.f32 %v2566, %v2594
        %v2596 = vpop.f32.mrf.mxu0
        %v2597 = vadd.f32 %v2568, %v2596
        %2598 = vmatmul.bf16.gmra.mxu0 %v2347
        %v2599 = vpop.f32.mrf.mxu0
        %v2600 = vadd.f32 %v2571, %v2599
        %v2601 = vpop.f32.mrf.mxu0
        %v2602 = vadd.f32 %v2573, %v2601
        %2603 = vdwg.mxu0
        %2604 = vmatpush.bf16.msra.mxu0 %v2497
        %2605 = vmatpush.bf16.msra.mxu0 %v2495
        %2606 = vmatpush.bf16.msra.mxu0 %v2493
        %2607 = vmatpush.bf16.msra.mxu0 %v2491
        %2608 = vmatpush.bf16.msra.mxu0 %v2489
        %2609 = vmatpush.bf16.msra.mxu0 %v2487
        %2610 = vmatpush.bf16.msra.mxu0 %v2485
        %2611 = vmatpush.bf16.msra.mxu0 %v2483
        %2612 = vmatmul.bf16.gmra.mxu0 %v2340
        %v2613 = vpop.f32.mrf.mxu0
        %v2614 = vadd.f32 %v2383, %v2613
        %v2615 = vpop.f32.mrf.mxu0
        %v2616 = vadd.f32 %v2383, %v2615
        %2617 = vmatmul.bf16.gmra.mxu0 %v2342
        %v2618 = vpop.f32.mrf.mxu0
        %v2619 = vadd.f32 %v2383, %v2618
        %v2620 = vpop.f32.mrf.mxu0
        %v2621 = vadd.f32 %v2383, %v2620
        %2622 = vmatmul.bf16.gmra.mxu0 %v2344
        %v2623 = vpop.f32.mrf.mxu0
        %v2624 = vadd.f32 %v2383, %v2623
        %v2625 = vpop.f32.mrf.mxu0
        %v2626 = vadd.f32 %v2383, %v2625
        %2627 = vmatmul.bf16.gmra.mxu0 %v2346
        %v2628 = vpop.f32.mrf.mxu0
        %v2629 = vadd.f32 %v2383, %v2628
        %v2630 = vpop.f32.mrf.mxu0
        %v2631 = vadd.f32 %v2383, %v2630
        %2632 = vdwg.mxu0
        %2633 = vmatpush.bf16.msra.mxu0 %v2513
        %2634 = vmatpush.bf16.msra.mxu0 %v2511
        %2635 = vmatpush.bf16.msra.mxu0 %v2509
        %2636 = vmatpush.bf16.msra.mxu0 %v2507
        %2637 = vmatpush.bf16.msra.mxu0 %v2505
        %2638 = vmatpush.bf16.msra.mxu0 %v2503
        %2639 = vmatpush.bf16.msra.mxu0 %v2501
        %2640 = vmatpush.bf16.msra.mxu0 %v2499
        %2641 = vmatmul.bf16.gmra.mxu0 %v2341
        %v2642 = vpop.f32.mrf.mxu0
        %v2643 = vadd.f32 %v2614, %v2642
        %v2644 = vpop.f32.mrf.mxu0
        %v2645 = vadd.f32 %v2616, %v2644
        %2646 = vmatmul.bf16.gmra.mxu0 %v2343
        %v2647 = vpop.f32.mrf.mxu0
        %v2648 = vadd.f32 %v2619, %v2647
        %v2649 = vpop.f32.mrf.mxu0
        %v2650 = vadd.f32 %v2621, %v2649
        %2651 = vmatmul.bf16.gmra.mxu0 %v2345
        %v2652 = vpop.f32.mrf.mxu0
        %v2653 = vadd.f32 %v2624, %v2652
        %v2654 = vpop.f32.mrf.mxu0
        %v2655 = vadd.f32 %v2626, %v2654
        %2656 = vmatmul.bf16.gmra.mxu0 %v2347
        %v2657 = vpop.f32.mrf.mxu0
        %v2658 = vadd.f32 %v2629, %v2657
        %v2659 = vpop.f32.mrf.mxu0
        %v2660 = vadd.f32 %v2631, %v2659
        %2661 = vdwg.mxu0
        %v2662 = vpack.c.bf16 %v2643, %v2585
        %v2663 = vpack.c.bf16 %v2645, %v2587
        %v2664 = vpack.c.bf16 %v2648, %v2590
        %v2665 = vpack.c.bf16 %v2650, %v2592
        %v2666 = vpack.c.bf16 %v2653, %v2595
        %v2667 = vpack.c.bf16 %v2655, %v2597
        %v2668 = vpack.c.bf16 %v2658, %v2600
        %v2669 = vpack.c.bf16 %v2660, %v2602
        %v2670 = vld [vmem:[#allocation2] sm:$0xf]
        %v2671 = vld [vmem:[#allocation2 + $0x10] sm:$0xf]
        %v2672 = vld [vmem:[#allocation2 + $0x20] sm:$0xf]
        %v2673 = vld [vmem:[#allocation2 + $0x30] sm:$0xf]
        %v2674 = vld [vmem:[#allocation2 + $0x40] sm:$0xf]
        %v2675 = vld [vmem:[#allocation2 + $0x50] sm:$0xf]
        %v2676 = vld [vmem:[#allocation2 + $0x60] sm:$0xf]
        %v2677 = vld [vmem:[#allocation2 + $0x70] sm:$0xf]
        %v2678 = vld [vmem:[#allocation2 + $0x80] sm:$0xf]
        %v2679 = vld [vmem:[#allocation2 + $0x90] sm:$0xf]
        %v2680 = vld [vmem:[#allocation2 + $0xa0] sm:$0xf]
        %v2681 = vld [vmem:[#allocation2 + $0xb0] sm:$0xf]
        %v2682 = vld [vmem:[#allocation2 + $0xc0] sm:$0xf]
        %v2683 = vld [vmem:[#allocation2 + $0xd0] sm:$0xf]
        %v2684 = vld [vmem:[#allocation2 + $0xe0] sm:$0xf]
        %v2685 = vld [vmem:[#allocation2 + $0xf0] sm:$0xf]
        %v2686 = vld [vmem:[#allocation2 + $0x8] sm:$0xf]
        %v2687 = vld [vmem:[#allocation2 + $0x18] sm:$0xf]
        %v2688 = vld [vmem:[#allocation2 + $0x28] sm:$0xf]
        %v2689 = vld [vmem:[#allocation2 + $0x38] sm:$0xf]
        %v2690 = vld [vmem:[#allocation2 + $0x48] sm:$0xf]
        %v2691 = vld [vmem:[#allocation2 + $0x58] sm:$0xf]
        %v2692 = vld [vmem:[#allocation2 + $0x68] sm:$0xf]
        %v2693 = vld [vmem:[#allocation2 + $0x78] sm:$0xf]
        %v2694 = vld [vmem:[#allocation2 + $0x88] sm:$0xf]
        %v2695 = vld [vmem:[#allocation2 + $0x98] sm:$0xf]
        %v2696 = vld [vmem:[#allocation2 + $0xa8] sm:$0xf]
        %v2697 = vld [vmem:[#allocation2 + $0xb8] sm:$0xf]
        %v2698 = vld [vmem:[#allocation2 + $0xc8] sm:$0xf]
        %v2699 = vld [vmem:[#allocation2 + $0xd8] sm:$0xf]
        %v2700 = vld [vmem:[#allocation2 + $0xe8] sm:$0xf]
        %v2701 = vld [vmem:[#allocation2 + $0xf8] sm:$0xf]
        %v2710 = vunpack.c.l.b16 %v2662
        %v2711 = vunpack.c.l.b16 %v2663
        %v2712 = vunpack.c.l.b16 %v2664
        %v2713 = vunpack.c.l.b16 %v2665
        %v2714 = vunpack.c.l.b16 %v2666
        %v2715 = vunpack.c.l.b16 %v2667
        %v2716 = vunpack.c.l.b16 %v2668
        %v2717 = vunpack.c.l.b16 %v2669
        %v2718 = vpack.c.b16 %v2711, %v2710
        %v2719 = vpack.c.b16 %v2713, %v2712
        %v2720 = vpack.c.b16 %v2715, %v2714
        %v2721 = vpack.c.b16 %v2717, %v2716
        %v2742 = vunpack.c.l.b16 %v2670
        %v2743 = vunpack.c.l.b16 %v2671
        %v2744 = vunpack.c.l.b16 %v2672
        %v2745 = vunpack.c.l.b16 %v2673
        %v2746 = vunpack.c.l.b16 %v2674
        %v2747 = vunpack.c.l.b16 %v2675
        %v2748 = vunpack.c.l.b16 %v2676
        %v2749 = vunpack.c.l.b16 %v2677
        %v2750 = vunpack.c.l.b16 %v2678
        %v2751 = vunpack.c.l.b16 %v2679
        %v2752 = vunpack.c.l.b16 %v2680
        %v2753 = vunpack.c.l.b16 %v2681
        %v2754 = vunpack.c.l.b16 %v2682
        %v2755 = vunpack.c.l.b16 %v2683
        %v2756 = vunpack.c.l.b16 %v2684
        %v2757 = vunpack.c.l.b16 %v2685
        %v2758 = vpack.c.b16 %v2743, %v2742
        %v2759 = vpack.c.b16 %v2745, %v2744
        %v2760 = vpack.c.b16 %v2747, %v2746
        %v2761 = vpack.c.b16 %v2749, %v2748
        %v2762 = vpack.c.b16 %v2751, %v2750
        %v2763 = vpack.c.b16 %v2753, %v2752
        %v2764 = vpack.c.b16 %v2755, %v2754
        %v2765 = vpack.c.b16 %v2757, %v2756
        %2774 = vmatpush.bf16.xpose.msra.mxu0 %v2765
        %2775 = vmatpush.bf16.xpose.msra.mxu0 %v2764
        %2776 = vmatpush.bf16.xpose.msra.mxu0 %v2763
        %2777 = vmatpush.bf16.xpose.msra.mxu0 %v2762
        %2778 = vmatpush.bf16.xpose.msra.mxu0 %v2761
        %2779 = vmatpush.bf16.xpose.msra.mxu0 %v2760
        %2780 = vmatpush.bf16.xpose.msra.mxu0 %v2759
        %2781 = vmatpush.bf16.xpose.msra.mxu0 %v2758
        %2782 = vmatmul.bf16.gmra.mxu0 %v2718
        %v2783 = vpop.f32.mrf.mxu0
        %v2784 = vadd.f32 0.0, %v2783
        %v2785 = vpop.f32.mrf.mxu0
        %v2786 = vadd.f32 0.0, %v2785
        %2787 = vmatmul.bf16.gmra.mxu0 %v2719
        %v2788 = vpop.f32.mrf.mxu0
        %v2789 = vadd.f32 0.0, %v2788
        %v2790 = vpop.f32.mrf.mxu0
        %v2791 = vadd.f32 0.0, %v2790
        %2792 = vmatmul.bf16.gmra.mxu0 %v2720
        %v2793 = vpop.f32.mrf.mxu0
        %v2794 = vadd.f32 0.0, %v2793
        %v2795 = vpop.f32.mrf.mxu0
        %v2796 = vadd.f32 0.0, %v2795
        %2797 = vmatmul.bf16.gmra.mxu0 %v2721
        %v2798 = vpop.f32.mrf.mxu0
        %v2799 = vadd.f32 0.0, %v2798
        %v2800 = vpop.f32.mrf.mxu0
        %v2801 = vadd.f32 0.0, %v2800
        %2802 = vdwg.mxu0
        %2803 = vmax.xlane.f32.xlu0 %v2784
        %v2804 = vpop.xlane.xlu0 %2803
        %2805 = vmax.xlane.f32.xlu0 %v2786
        %v2806 = vpop.xlane.xlu0 %2805
        %2807 = vmax.xlane.f32.xlu0 %v2789
        %v2808 = vpop.xlane.xlu0 %2807
        %2809 = vmax.xlane.f32.xlu0 %v2791
        %v2810 = vpop.xlane.xlu0 %2809
        %2811 = vmax.xlane.f32.xlu0 %v2794
        %v2812 = vpop.xlane.xlu0 %2811
        %2813 = vmax.xlane.f32.xlu0 %v2796
        %v2814 = vpop.xlane.xlu0 %2813
        %2815 = vmax.xlane.f32.xlu0 %v2799
        %v2816 = vpop.xlane.xlu0 %2815
        %2817 = vmax.xlane.f32.xlu0 %v2801
        %v2818 = vpop.xlane.xlu0 %2817
        %v2819 = vsub.f32 %v2784, %v2804
        %v2820 = vsub.f32 %v2786, %v2806
        %v2821 = vsub.f32 %v2789, %v2808
        %v2822 = vsub.f32 %v2791, %v2810
        %v2823 = vsub.f32 %v2794, %v2812
        %v2824 = vsub.f32 %v2796, %v2814
        %v2825 = vsub.f32 %v2799, %v2816
        %v2826 = vsub.f32 %v2801, %v2818
        %v2827 = vmul.f32 %v2819, 1.442695
        %v2828 = vpow.pop %v2827
        %v2829 = vmul.f32 %v2820, 1.442695
        %v2830 = vpow.pop %v2829
        %v2831 = vmul.f32 %v2821, 1.442695
        %v2832 = vpow.pop %v2831
        %v2833 = vmul.f32 %v2822, 1.442695
        %v2834 = vpow.pop %v2833
        %v2835 = vmul.f32 %v2823, 1.442695
        %v2836 = vpow.pop %v2835
        %v2837 = vmul.f32 %v2824, 1.442695
        %v2838 = vpow.pop %v2837
        %v2839 = vmul.f32 %v2825, 1.442695
        %v2840 = vpow.pop %v2839
        %v2841 = vmul.f32 %v2826, 1.442695
        %v2842 = vpow.pop %v2841
        %2843 = vadd.xlane.f32.xlu0 %v2828
        %v2844 = vpop.xlane.xlu0 %2843
        %2845 = vadd.xlane.f32.xlu0 %v2830
        %v2846 = vpop.xlane.xlu0 %2845
        %2847 = vadd.xlane.f32.xlu0 %v2832
        %v2848 = vpop.xlane.xlu0 %2847
        %2849 = vadd.xlane.f32.xlu0 %v2834
        %v2850 = vpop.xlane.xlu0 %2849
        %2851 = vadd.xlane.f32.xlu0 %v2836
        %v2852 = vpop.xlane.xlu0 %2851
        %2853 = vadd.xlane.f32.xlu0 %v2838
        %v2854 = vpop.xlane.xlu0 %2853
        %2855 = vadd.xlane.f32.xlu0 %v2840
        %v2856 = vpop.xlane.xlu0 %2855
        %2857 = vadd.xlane.f32.xlu0 %v2842
        %v2858 = vpop.xlane.xlu0 %2857
        %v2859 = vrcp.pop %v2844
        %v2860 = vrcp.pop %v2846
        %v2861 = vrcp.pop %v2848
        %v2862 = vrcp.pop %v2850
        %v2863 = vrcp.pop %v2852
        %v2864 = vrcp.pop %v2854
        %v2865 = vrcp.pop %v2856
        %v2866 = vrcp.pop %v2858
        %v2867 = vmul.f32 %v2828, %v2859
        %v2868 = vmul.f32 %v2830, %v2860
        %v2869 = vmul.f32 %v2832, %v2861
        %v2870 = vmul.f32 %v2834, %v2862
        %v2871 = vmul.f32 %v2836, %v2863
        %v2872 = vmul.f32 %v2838, %v2864
        %v2873 = vmul.f32 %v2840, %v2865
        %v2874 = vmul.f32 %v2842, %v2866
        %v2875 = vpack.c.bf16 %v2868, %v2867
        %v2876 = vpack.c.bf16 %v2870, %v2869
        %v2877 = vpack.c.bf16 %v2872, %v2871
        %v2878 = vpack.c.bf16 %v2874, %v2873
        %v2895 = vunpack.c.l.b16 %v2686
        %v2896 = vunpack.c.l.b16 %v2687
        %v2897 = vunpack.c.l.b16 %v2688
        %v2898 = vunpack.c.l.b16 %v2689
        %v2899 = vunpack.c.l.b16 %v2690
        %v2900 = vunpack.c.l.b16 %v2691
        %v2901 = vunpack.c.l.b16 %v2692
        %v2902 = vunpack.c.l.b16 %v2693
        %v2903 = vunpack.c.l.b16 %v2694
        %v2904 = vunpack.c.l.b16 %v2695
        %v2905 = vunpack.c.l.b16 %v2696
        %v2906 = vunpack.c.l.b16 %v2697
        %v2907 = vunpack.c.l.b16 %v2698
        %v2908 = vunpack.c.l.b16 %v2699
        %v2909 = vunpack.c.l.b16 %v2700
        %v2910 = vunpack.c.l.b16 %v2701
        %v2911 = vpack.c.b16 %v2896, %v2895
        %v2912 = vpack.c.b16 %v2898, %v2897
        %v2913 = vpack.c.b16 %v2900, %v2899
        %v2914 = vpack.c.b16 %v2902, %v2901
        %v2915 = vpack.c.b16 %v2904, %v2903
        %v2916 = vpack.c.b16 %v2906, %v2905
        %v2917 = vpack.c.b16 %v2908, %v2907
        %v2918 = vpack.c.b16 %v2910, %v2909
        %2927 = vmatpush.bf16.msra.mxu0 %v2918
        %2928 = vmatpush.bf16.msra.mxu0 %v2917
        %2929 = vmatpush.bf16.msra.mxu0 %v2916
        %2930 = vmatpush.bf16.msra.mxu0 %v2915
        %2931 = vmatpush.bf16.msra.mxu0 %v2914
        %2932 = vmatpush.bf16.msra.mxu0 %v2913
        %2933 = vmatpush.bf16.msra.mxu0 %v2912
        %2934 = vmatpush.bf16.msra.mxu0 %v2911
        %2935 = vmatmul.bf16.gmra.mxu0 %v2875
        %v2936 = vpop.f32.mrf.mxu0
        %v2937 = vadd.f32 0.0, %v2936
        %v2938 = vpop.f32.mrf.mxu0
        %v2939 = vadd.f32 0.0, %v2938
        %2940 = vmatmul.bf16.gmra.mxu0 %v2876
        %v2941 = vpop.f32.mrf.mxu0
        %v2942 = vadd.f32 0.0, %v2941
        %v2943 = vpop.f32.mrf.mxu0
        %v2944 = vadd.f32 0.0, %v2943
        %2945 = vmatmul.bf16.gmra.mxu0 %v2877
        %v2946 = vpop.f32.mrf.mxu0
        %v2947 = vadd.f32 0.0, %v2946
        %v2948 = vpop.f32.mrf.mxu0
        %v2949 = vadd.f32 0.0, %v2948
        %2950 = vmatmul.bf16.gmra.mxu0 %v2878
        %v2951 = vpop.f32.mrf.mxu0
        %v2952 = vadd.f32 0.0, %v2951
        %v2953 = vpop.f32.mrf.mxu0
        %v2954 = vadd.f32 0.0, %v2953
        %2955 = vdwg.mxu0
        %v2956 = vpack.c.bf16 %v2937, %v2937
        %v2957 = vpack.c.bf16 %v2939, %v2939
        %v2958 = vpack.c.bf16 %v2942, %v2942
        %v2959 = vpack.c.bf16 %v2944, %v2944
        %v2960 = vpack.c.bf16 %v2947, %v2947
        %v2961 = vpack.c.bf16 %v2949, %v2949
        %v2962 = vpack.c.bf16 %v2952, %v2952
        %v2963 = vpack.c.bf16 %v2954, %v2954
        %v2964 = vld [vmem:[#allocation2 + $0x4] sm:$0xf]
        %v2965 = vld [vmem:[#allocation2 + $0x14] sm:$0xf]
        %v2966 = vld [vmem:[#allocation2 + $0x24] sm:$0xf]
        %v2967 = vld [vmem:[#allocation2 + $0x34] sm:$0xf]
        %v2968 = vld [vmem:[#allocation2 + $0x44] sm:$0xf]
        %v2969 = vld [vmem:[#allocation2 + $0x54] sm:$0xf]
        %v2970 = vld [vmem:[#allocation2 + $0x64] sm:$0xf]
        %v2971 = vld [vmem:[#allocation2 + $0x74] sm:$0xf]
        %v2972 = vld [vmem:[#allocation2 + $0x84] sm:$0xf]
        %v2973 = vld [vmem:[#allocation2 + $0x94] sm:$0xf]
        %v2974 = vld [vmem:[#allocation2 + $0xa4] sm:$0xf]
        %v2975 = vld [vmem:[#allocation2 + $0xb4] sm:$0xf]
        %v2976 = vld [vmem:[#allocation2 + $0xc4] sm:$0xf]
        %v2977 = vld [vmem:[#allocation2 + $0xd4] sm:$0xf]
        %v2978 = vld [vmem:[#allocation2 + $0xe4] sm:$0xf]
        %v2979 = vld [vmem:[#allocation2 + $0xf4] sm:$0xf]
        %v2980 = vld [vmem:[#allocation2 + $0xc] sm:$0xf]
        %v2981 = vld [vmem:[#allocation2 + $0x1c] sm:$0xf]
        %v2982 = vld [vmem:[#allocation2 + $0x2c] sm:$0xf]
        %v2983 = vld [vmem:[#allocation2 + $0x3c] sm:$0xf]
        %v2984 = vld [vmem:[#allocation2 + $0x4c] sm:$0xf]
        %v2985 = vld [vmem:[#allocation2 + $0x5c] sm:$0xf]
        %v2986 = vld [vmem:[#allocation2 + $0x6c] sm:$0xf]
        %v2987 = vld [vmem:[#allocation2 + $0x7c] sm:$0xf]
        %v2988 = vld [vmem:[#allocation2 + $0x8c] sm:$0xf]
        %v2989 = vld [vmem:[#allocation2 + $0x9c] sm:$0xf]
        %v2990 = vld [vmem:[#allocation2 + $0xac] sm:$0xf]
        %v2991 = vld [vmem:[#allocation2 + $0xbc] sm:$0xf]
        %v2992 = vld [vmem:[#allocation2 + $0xcc] sm:$0xf]
        %v2993 = vld [vmem:[#allocation2 + $0xdc] sm:$0xf]
        %v2994 = vld [vmem:[#allocation2 + $0xec] sm:$0xf]
        %v2995 = vld [vmem:[#allocation2 + $0xfc] sm:$0xf]
        %v2996 = vunpack.c.h.b16 %v2662
        %v2997 = vunpack.c.h.b16 %v2663
        %v2998 = vunpack.c.h.b16 %v2664
        %v2999 = vunpack.c.h.b16 %v2665
        %v3000 = vunpack.c.h.b16 %v2666
        %v3001 = vunpack.c.h.b16 %v2667
        %v3002 = vunpack.c.h.b16 %v2668
        %v3003 = vunpack.c.h.b16 %v2669
        %v3004 = vpack.c.b16 %v2997, %v2996
        %v3005 = vpack.c.b16 %v2999, %v2998
        %v3006 = vpack.c.b16 %v3001, %v3000
        %v3007 = vpack.c.b16 %v3003, %v3002
        %v3028 = vunpack.c.l.b16 %v2964
        %v3029 = vunpack.c.l.b16 %v2965
        %v3030 = vunpack.c.l.b16 %v2966
        %v3031 = vunpack.c.l.b16 %v2967
        %v3032 = vunpack.c.l.b16 %v2968
        %v3033 = vunpack.c.l.b16 %v2969
        %v3034 = vunpack.c.l.b16 %v2970
        %v3035 = vunpack.c.l.b16 %v2971
        %v3036 = vunpack.c.l.b16 %v2972
        %v3037 = vunpack.c.l.b16 %v2973
        %v3038 = vunpack.c.l.b16 %v2974
        %v3039 = vunpack.c.l.b16 %v2975
        %v3040 = vunpack.c.l.b16 %v2976
        %v3041 = vunpack.c.l.b16 %v2977
        %v3042 = vunpack.c.l.b16 %v2978
        %v3043 = vunpack.c.l.b16 %v2979
        %v3044 = vpack.c.b16 %v3029, %v3028
        %v3045 = vpack.c.b16 %v3031, %v3030
        %v3046 = vpack.c.b16 %v3033, %v3032
        %v3047 = vpack.c.b16 %v3035, %v3034
        %v3048 = vpack.c.b16 %v3037, %v3036
        %v3049 = vpack.c.b16 %v3039, %v3038
        %v3050 = vpack.c.b16 %v3041, %v3040
        %v3051 = vpack.c.b16 %v3043, %v3042
        %3060 = vmatpush.bf16.xpose.msra.mxu0 %v3051
        %3061 = vmatpush.bf16.xpose.msra.mxu0 %v3050
        %3062 = vmatpush.bf16.xpose.msra.mxu0 %v3049
        %3063 = vmatpush.bf16.xpose.msra.mxu0 %v3048
        %3064 = vmatpush.bf16.xpose.msra.mxu0 %v3047
        %3065 = vmatpush.bf16.xpose.msra.mxu0 %v3046
        %3066 = vmatpush.bf16.xpose.msra.mxu0 %v3045
        %3067 = vmatpush.bf16.xpose.msra.mxu0 %v3044
        %3068 = vmatmul.bf16.gmra.mxu0 %v3004
        %v3069 = vpop.f32.mrf.mxu0
        %v3070 = vadd.f32 0.0, %v3069
        %v3071 = vpop.f32.mrf.mxu0
        %v3072 = vadd.f32 0.0, %v3071
        %3073 = vmatmul.bf16.gmra.mxu0 %v3005
        %v3074 = vpop.f32.mrf.mxu0
        %v3075 = vadd.f32 0.0, %v3074
        %v3076 = vpop.f32.mrf.mxu0
        %v3077 = vadd.f32 0.0, %v3076
        %3078 = vmatmul.bf16.gmra.mxu0 %v3006
        %v3079 = vpop.f32.mrf.mxu0
        %v3080 = vadd.f32 0.0, %v3079
        %v3081 = vpop.f32.mrf.mxu0
        %v3082 = vadd.f32 0.0, %v3081
        %3083 = vmatmul.bf16.gmra.mxu0 %v3007
        %v3084 = vpop.f32.mrf.mxu0
        %v3085 = vadd.f32 0.0, %v3084
        %v3086 = vpop.f32.mrf.mxu0
        %v3087 = vadd.f32 0.0, %v3086
        %3088 = vdwg.mxu0
        %3089 = vmax.xlane.f32.xlu0 %v3070
        %v3090 = vpop.xlane.xlu0 %3089
        %3091 = vmax.xlane.f32.xlu0 %v3072
        %v3092 = vpop.xlane.xlu0 %3091
        %3093 = vmax.xlane.f32.xlu0 %v3075
        %v3094 = vpop.xlane.xlu0 %3093
        %3095 = vmax.xlane.f32.xlu0 %v3077
        %v3096 = vpop.xlane.xlu0 %3095
        %3097 = vmax.xlane.f32.xlu0 %v3080
        %v3098 = vpop.xlane.xlu0 %3097
        %3099 = vmax.xlane.f32.xlu0 %v3082
        %v3100 = vpop.xlane.xlu0 %3099
        %3101 = vmax.xlane.f32.xlu0 %v3085
        %v3102 = vpop.xlane.xlu0 %3101
        %3103 = vmax.xlane.f32.xlu0 %v3087
        %v3104 = vpop.xlane.xlu0 %3103
        %v3105 = vsub.f32 %v3070, %v3090
        %v3106 = vsub.f32 %v3072, %v3092
        %v3107 = vsub.f32 %v3075, %v3094
        %v3108 = vsub.f32 %v3077, %v3096
        %v3109 = vsub.f32 %v3080, %v3098
        %v3110 = vsub.f32 %v3082, %v3100
        %v3111 = vsub.f32 %v3085, %v3102
        %v3112 = vsub.f32 %v3087, %v3104
        %v3113 = vmul.f32 %v3105, 1.442695
        %v3114 = vpow.pop %v3113
        %v3115 = vmul.f32 %v3106, 1.442695
        %v3116 = vpow.pop %v3115
        %v3117 = vmul.f32 %v3107, 1.442695
        %v3118 = vpow.pop %v3117
        %v3119 = vmul.f32 %v3108, 1.442695
        %v3120 = vpow.pop %v3119
        %v3121 = vmul.f32 %v3109, 1.442695
        %v3122 = vpow.pop %v3121
        %v3123 = vmul.f32 %v3110, 1.442695
        %v3124 = vpow.pop %v3123
        %v3125 = vmul.f32 %v3111, 1.442695
        %v3126 = vpow.pop %v3125
        %v3127 = vmul.f32 %v3112, 1.442695
        %v3128 = vpow.pop %v3127
        %3129 = vadd.xlane.f32.xlu0 %v3114
        %v3130 = vpop.xlane.xlu0 %3129
        %3131 = vadd.xlane.f32.xlu0 %v3116
        %v3132 = vpop.xlane.xlu0 %3131
        %3133 = vadd.xlane.f32.xlu0 %v3118
        %v3134 = vpop.xlane.xlu0 %3133
        %3135 = vadd.xlane.f32.xlu0 %v3120
        %v3136 = vpop.xlane.xlu0 %3135
        %3137 = vadd.xlane.f32.xlu0 %v3122
        %v3138 = vpop.xlane.xlu0 %3137
        %3139 = vadd.xlane.f32.xlu0 %v3124
        %v3140 = vpop.xlane.xlu0 %3139
        %3141 = vadd.xlane.f32.xlu0 %v3126
        %v3142 = vpop.xlane.xlu0 %3141
        %3143 = vadd.xlane.f32.xlu0 %v3128
        %v3144 = vpop.xlane.xlu0 %3143
        %v3145 = vrcp.pop %v3130
        %v3146 = vrcp.pop %v3132
        %v3147 = vrcp.pop %v3134
        %v3148 = vrcp.pop %v3136
        %v3149 = vrcp.pop %v3138
        %v3150 = vrcp.pop %v3140
        %v3151 = vrcp.pop %v3142
        %v3152 = vrcp.pop %v3144
        %v3153 = vmul.f32 %v3114, %v3145
        %v3154 = vmul.f32 %v3116, %v3146
        %v3155 = vmul.f32 %v3118, %v3147
        %v3156 = vmul.f32 %v3120, %v3148
        %v3157 = vmul.f32 %v3122, %v3149
        %v3158 = vmul.f32 %v3124, %v3150
        %v3159 = vmul.f32 %v3126, %v3151
        %v3160 = vmul.f32 %v3128, %v3152
        %v3161 = vpack.c.bf16 %v3154, %v3153
        %v3162 = vpack.c.bf16 %v3156, %v3155
        %v3163 = vpack.c.bf16 %v3158, %v3157
        %v3164 = vpack.c.bf16 %v3160, %v3159
        %v3181 = vunpack.c.l.b16 %v2980
        %v3182 = vunpack.c.l.b16 %v2981
        %v3183 = vunpack.c.l.b16 %v2982
        %v3184 = vunpack.c.l.b16 %v2983
        %v3185 = vunpack.c.l.b16 %v2984
        %v3186 = vunpack.c.l.b16 %v2985
        %v3187 = vunpack.c.l.b16 %v2986
        %v3188 = vunpack.c.l.b16 %v2987
        %v3189 = vunpack.c.l.b16 %v2988
        %v3190 = vunpack.c.l.b16 %v2989
        %v3191 = vunpack.c.l.b16 %v2990
        %v3192 = vunpack.c.l.b16 %v2991
        %v3193 = vunpack.c.l.b16 %v2992
        %v3194 = vunpack.c.l.b16 %v2993
        %v3195 = vunpack.c.l.b16 %v2994
        %v3196 = vunpack.c.l.b16 %v2995
        %v3197 = vpack.c.b16 %v3182, %v3181
        %v3198 = vpack.c.b16 %v3184, %v3183
        %v3199 = vpack.c.b16 %v3186, %v3185
        %v3200 = vpack.c.b16 %v3188, %v3187
        %v3201 = vpack.c.b16 %v3190, %v3189
        %v3202 = vpack.c.b16 %v3192, %v3191
        %v3203 = vpack.c.b16 %v3194, %v3193
        %v3204 = vpack.c.b16 %v3196, %v3195
        %3213 = vmatpush.bf16.msra.mxu0 %v3204
        %3214 = vmatpush.bf16.msra.mxu0 %v3203
        %3215 = vmatpush.bf16.msra.mxu0 %v3202
        %3216 = vmatpush.bf16.msra.mxu0 %v3201
        %3217 = vmatpush.bf16.msra.mxu0 %v3200
        %3218 = vmatpush.bf16.msra.mxu0 %v3199
        %3219 = vmatpush.bf16.msra.mxu0 %v3198
        %3220 = vmatpush.bf16.msra.mxu0 %v3197
        %3221 = vmatmul.bf16.gmra.mxu0 %v3161
        %v3222 = vpop.f32.mrf.mxu0
        %v3223 = vadd.f32 0.0, %v3222
        %v3224 = vpop.f32.mrf.mxu0
        %v3225 = vadd.f32 0.0, %v3224
        %3226 = vmatmul.bf16.gmra.mxu0 %v3162
        %v3227 = vpop.f32.mrf.mxu0
        %v3228 = vadd.f32 0.0, %v3227
        %v3229 = vpop.f32.mrf.mxu0
        %v3230 = vadd.f32 0.0, %v3229
        %3231 = vmatmul.bf16.gmra.mxu0 %v3163
        %v3232 = vpop.f32.mrf.mxu0
        %v3233 = vadd.f32 0.0, %v3232
        %v3234 = vpop.f32.mrf.mxu0
        %v3235 = vadd.f32 0.0, %v3234
        %3236 = vmatmul.bf16.gmra.mxu0 %v3164
        %v3237 = vpop.f32.mrf.mxu0
        %v3238 = vadd.f32 0.0, %v3237
        %v3239 = vpop.f32.mrf.mxu0
        %v3240 = vadd.f32 0.0, %v3239
        %3241 = vdwg.mxu0
        %v3242 = vpack.c.bf16 %v3223, %v3223
        %v3243 = vpack.c.bf16 %v3225, %v3225
        %v3244 = vpack.c.bf16 %v3228, %v3228
        %v3245 = vpack.c.bf16 %v3230, %v3230
        %v3246 = vpack.c.bf16 %v3233, %v3233
        %v3247 = vpack.c.bf16 %v3235, %v3235
        %v3248 = vpack.c.bf16 %v3238, %v3238
        %v3249 = vpack.c.bf16 %v3240, %v3240
        %v3258 = vunpack.c.l.b16 %v2956
        %v3259 = vunpack.c.l.b16 %v2957
        %v3260 = vunpack.c.l.b16 %v2958
        %v3261 = vunpack.c.l.b16 %v2959
        %v3262 = vunpack.c.l.b16 %v2960
        %v3263 = vunpack.c.l.b16 %v2961
        %v3264 = vunpack.c.l.b16 %v2962
        %v3265 = vunpack.c.l.b16 %v2963
        %v3266 = vpack.c.b16 %v3259, %v3258
        %v3267 = vpack.c.b16 %v3261, %v3260
        %v3268 = vpack.c.b16 %v3263, %v3262
        %v3269 = vpack.c.b16 %v3265, %v3264
        %v3282 = vunpack.c.l.b16 %v3242
        %v3283 = vunpack.c.l.b16 %v3243
        %v3284 = vunpack.c.l.b16 %v3244
        %v3285 = vunpack.c.l.b16 %v3245
        %v3286 = vunpack.c.l.b16 %v3246
        %v3287 = vunpack.c.l.b16 %v3247
        %v3288 = vunpack.c.l.b16 %v3248
        %v3289 = vunpack.c.l.b16 %v3249
        %v3290 = vpack.c.b16 %v3283, %v3282
        %v3291 = vpack.c.b16 %v3285, %v3284
        %v3292 = vpack.c.b16 %v3287, %v3286
        %v3293 = vpack.c.b16 %v3289, %v3288
        %v3298 = vld [vmem:[#allocation9] sm:$0xff]
        %v3299 = vld [vmem:[#allocation9 + $0x8] sm:$0xff]
        %v3300 = vld [vmem:[#allocation9 + $0x10] sm:$0xff]
        %v3301 = vld [vmem:[#allocation9 + $0x18] sm:$0xff]
        %v3302 = vld [vmem:[#allocation9 + $0x20] sm:$0xff]
        %v3303 = vld [vmem:[#allocation9 + $0x28] sm:$0xff]
        %v3304 = vld [vmem:[#allocation9 + $0x30] sm:$0xff]
        %v3305 = vld [vmem:[#allocation9 + $0x38] sm:$0xff]
        %v3306 = vld [vmem:[#allocation9 + $0x40] sm:$0xff]
        %v3307 = vld [vmem:[#allocation9 + $0x48] sm:$0xff]
        %v3308 = vld [vmem:[#allocation9 + $0x50] sm:$0xff]
        %v3309 = vld [vmem:[#allocation9 + $0x58] sm:$0xff]
        %v3310 = vld [vmem:[#allocation9 + $0x60] sm:$0xff]
        %v3311 = vld [vmem:[#allocation9 + $0x68] sm:$0xff]
        %v3312 = vld [vmem:[#allocation9 + $0x70] sm:$0xff]
        %v3313 = vld [vmem:[#allocation9 + $0x78] sm:$0xff]
        %v3314 = vld [vmem:[#allocation9 + $0x80] sm:$0xff]
        %v3315 = vld [vmem:[#allocation9 + $0x88] sm:$0xff]
        %v3316 = vld [vmem:[#allocation9 + $0x90] sm:$0xff]
        %v3317 = vld [vmem:[#allocation9 + $0x98] sm:$0xff]
        %v3318 = vld [vmem:[#allocation9 + $0xa0] sm:$0xff]
        %v3319 = vld [vmem:[#allocation9 + $0xa8] sm:$0xff]
        %v3320 = vld [vmem:[#allocation9 + $0xb0] sm:$0xff]
        %v3321 = vld [vmem:[#allocation9 + $0xb8] sm:$0xff]
        %v3322 = vld [vmem:[#allocation9 + $0xc0] sm:$0xff]
        %v3323 = vld [vmem:[#allocation9 + $0xc8] sm:$0xff]
        %v3324 = vld [vmem:[#allocation9 + $0xd0] sm:$0xff]
        %v3325 = vld [vmem:[#allocation9 + $0xd8] sm:$0xff]
        %v3326 = vld [vmem:[#allocation9 + $0xe0] sm:$0xff]
        %v3327 = vld [vmem:[#allocation9 + $0xe8] sm:$0xff]
        %v3328 = vld [vmem:[#allocation9 + $0xf0] sm:$0xff]
        %v3329 = vld [vmem:[#allocation9 + $0xf8] sm:$0xff]
        %v3330 = vld [vmem:[%s4] sm:$0x3]
        %v3332 = vperm.slane %v3330, 0
        %v3333 = vperm.slane %v3330, 1
        %v3368 = vunpack.c.l.b16 %v3298
        %v3369 = vunpack.c.h.b16 %v3298
        %v3370 = vunpack.c.l.b16 %v3299
        %v3371 = vunpack.c.h.b16 %v3299
        %v3372 = vunpack.c.l.b16 %v3300
        %v3373 = vunpack.c.h.b16 %v3300
        %v3374 = vunpack.c.l.b16 %v3301
        %v3375 = vunpack.c.h.b16 %v3301
        %v3376 = vunpack.c.l.b16 %v3302
        %v3377 = vunpack.c.h.b16 %v3302
        %v3378 = vunpack.c.l.b16 %v3303
        %v3379 = vunpack.c.h.b16 %v3303
        %v3380 = vunpack.c.l.b16 %v3304
        %v3381 = vunpack.c.h.b16 %v3304
        %v3382 = vunpack.c.l.b16 %v3305
        %v3383 = vunpack.c.h.b16 %v3305
        %v3384 = vunpack.c.l.b16 %v3306
        %v3385 = vunpack.c.h.b16 %v3306
        %v3386 = vunpack.c.l.b16 %v3307
        %v3387 = vunpack.c.h.b16 %v3307
        %v3388 = vunpack.c.l.b16 %v3308
        %v3389 = vunpack.c.h.b16 %v3308
        %v3390 = vunpack.c.l.b16 %v3309
        %v3391 = vunpack.c.h.b16 %v3309
        %v3392 = vunpack.c.l.b16 %v3310
        %v3393 = vunpack.c.h.b16 %v3310
        %v3394 = vunpack.c.l.b16 %v3311
        %v3395 = vunpack.c.h.b16 %v3311
        %v3396 = vunpack.c.l.b16 %v3312
        %v3397 = vunpack.c.h.b16 %v3312
        %v3398 = vunpack.c.l.b16 %v3313
        %v3399 = vunpack.c.h.b16 %v3313
        %v3400 = vunpack.c.l.b16 %v3314
        %v3401 = vunpack.c.h.b16 %v3314
        %v3402 = vunpack.c.l.b16 %v3315
        %v3403 = vunpack.c.h.b16 %v3315
        %v3404 = vunpack.c.l.b16 %v3316
        %v3405 = vunpack.c.h.b16 %v3316
        %v3406 = vunpack.c.l.b16 %v3317
        %v3407 = vunpack.c.h.b16 %v3317
        %v3408 = vunpack.c.l.b16 %v3318
        %v3409 = vunpack.c.h.b16 %v3318
        %v3410 = vunpack.c.l.b16 %v3319
        %v3411 = vunpack.c.h.b16 %v3319
        %v3412 = vunpack.c.l.b16 %v3320
        %v3413 = vunpack.c.h.b16 %v3320
        %v3414 = vunpack.c.l.b16 %v3321
        %v3415 = vunpack.c.h.b16 %v3321
        %v3416 = vunpack.c.l.b16 %v3322
        %v3417 = vunpack.c.h.b16 %v3322
        %v3418 = vunpack.c.l.b16 %v3323
        %v3419 = vunpack.c.h.b16 %v3323
        %v3420 = vunpack.c.l.b16 %v3324
        %v3421 = vunpack.c.h.b16 %v3324
        %v3422 = vunpack.c.l.b16 %v3325
        %v3423 = vunpack.c.h.b16 %v3325
        %v3424 = vunpack.c.l.b16 %v3326
        %v3425 = vunpack.c.h.b16 %v3326
        %v3426 = vunpack.c.l.b16 %v3327
        %v3427 = vunpack.c.h.b16 %v3327
        %v3428 = vunpack.c.l.b16 %v3328
        %v3429 = vunpack.c.h.b16 %v3328
        %v3430 = vunpack.c.l.b16 %v3329
        %v3431 = vunpack.c.h.b16 %v3329
        %v3432 = vpack.c.b16 %v3370, %v3368
        %v3433 = vpack.c.b16 %v3371, %v3369
        %v3434 = vpack.c.b16 %v3374, %v3372
        %v3435 = vpack.c.b16 %v3375, %v3373
        %v3436 = vpack.c.b16 %v3378, %v3376
        %v3437 = vpack.c.b16 %v3379, %v3377
        %v3438 = vpack.c.b16 %v3382, %v3380
        %v3439 = vpack.c.b16 %v3383, %v3381
        %v3440 = vpack.c.b16 %v3386, %v3384
        %v3441 = vpack.c.b16 %v3387, %v3385
        %v3442 = vpack.c.b16 %v3390, %v3388
        %v3443 = vpack.c.b16 %v3391, %v3389
        %v3444 = vpack.c.b16 %v3394, %v3392
        %v3445 = vpack.c.b16 %v3395, %v3393
        %v3446 = vpack.c.b16 %v3398, %v3396
        %v3447 = vpack.c.b16 %v3399, %v3397
        %v3448 = vpack.c.b16 %v3402, %v3400
        %v3449 = vpack.c.b16 %v3403, %v3401
        %v3450 = vpack.c.b16 %v3406, %v3404
        %v3451 = vpack.c.b16 %v3407, %v3405
        %v3452 = vpack.c.b16 %v3410, %v3408
        %v3453 = vpack.c.b16 %v3411, %v3409
        %v3454 = vpack.c.b16 %v3414, %v3412
        %v3455 = vpack.c.b16 %v3415, %v3413
        %v3456 = vpack.c.b16 %v3418, %v3416
        %v3457 = vpack.c.b16 %v3419, %v3417
        %v3458 = vpack.c.b16 %v3422, %v3420
        %v3459 = vpack.c.b16 %v3423, %v3421
        %v3460 = vpack.c.b16 %v3426, %v3424
        %v3461 = vpack.c.b16 %v3427, %v3425
        %v3462 = vpack.c.b16 %v3430, %v3428
        %v3463 = vpack.c.b16 %v3431, %v3429
        %3496 = vmatpush.bf16.msra.mxu0 %v3446
        %3497 = vmatpush.bf16.msra.mxu0 %v3444
        %3498 = vmatpush.bf16.msra.mxu0 %v3442
        %3499 = vmatpush.bf16.msra.mxu0 %v3440
        %3500 = vmatpush.bf16.msra.mxu0 %v3438
        %3501 = vmatpush.bf16.msra.mxu0 %v3436
        %3502 = vmatpush.bf16.msra.mxu0 %v3434
        %3503 = vmatpush.bf16.msra.mxu0 %v3432
        %3504 = vmatmul.bf16.gmra.mxu0 %v3266
        %v3505 = vpop.f32.mrf.mxu0
        %v3506 = vadd.f32 %v3332, %v3505
        %v3507 = vpop.f32.mrf.mxu0
        %v3508 = vadd.f32 %v3332, %v3507
        %3509 = vmatmul.bf16.gmra.mxu0 %v3267
        %v3510 = vpop.f32.mrf.mxu0
        %v3511 = vadd.f32 %v3332, %v3510
        %v3512 = vpop.f32.mrf.mxu0
        %v3513 = vadd.f32 %v3332, %v3512
        %3514 = vmatmul.bf16.gmra.mxu0 %v3268
        %v3515 = vpop.f32.mrf.mxu0
        %v3516 = vadd.f32 %v3332, %v3515
        %v3517 = vpop.f32.mrf.mxu0
        %v3518 = vadd.f32 %v3332, %v3517
        %3519 = vmatmul.bf16.gmra.mxu0 %v3269
        %v3520 = vpop.f32.mrf.mxu0
        %v3521 = vadd.f32 %v3332, %v3520
        %v3522 = vpop.f32.mrf.mxu0
        %v3523 = vadd.f32 %v3332, %v3522
        %3524 = vdwg.mxu0
        %3525 = vmatpush.bf16.msra.mxu0 %v3462
        %3526 = vmatpush.bf16.msra.mxu0 %v3460
        %3527 = vmatpush.bf16.msra.mxu0 %v3458
        %3528 = vmatpush.bf16.msra.mxu0 %v3456
        %3529 = vmatpush.bf16.msra.mxu0 %v3454
        %3530 = vmatpush.bf16.msra.mxu0 %v3452
        %3531 = vmatpush.bf16.msra.mxu0 %v3450
        %3532 = vmatpush.bf16.msra.mxu0 %v3448
        %3533 = vmatmul.bf16.gmra.mxu0 %v3290
        %v3534 = vpop.f32.mrf.mxu0
        %v3535 = vadd.f32 %v3506, %v3534
        %v3536 = vpop.f32.mrf.mxu0
        %v3537 = vadd.f32 %v3508, %v3536
        %3538 = vmatmul.bf16.gmra.mxu0 %v3291
        %v3539 = vpop.f32.mrf.mxu0
        %v3540 = vadd.f32 %v3511, %v3539
        %v3541 = vpop.f32.mrf.mxu0
        %v3542 = vadd.f32 %v3513, %v3541
        %3543 = vmatmul.bf16.gmra.mxu0 %v3292
        %v3544 = vpop.f32.mrf.mxu0
        %v3545 = vadd.f32 %v3516, %v3544
        %v3546 = vpop.f32.mrf.mxu0
        %v3547 = vadd.f32 %v3518, %v3546
        %3548 = vmatmul.bf16.gmra.mxu0 %v3293
        %v3549 = vpop.f32.mrf.mxu0
        %v3550 = vadd.f32 %v3521, %v3549
        %v3551 = vpop.f32.mrf.mxu0
        %v3552 = vadd.f32 %v3523, %v3551
        %3553 = vdwg.mxu0
        %3554 = vmatpush.bf16.msra.mxu0 %v3447
        %3555 = vmatpush.bf16.msra.mxu0 %v3445
        %3556 = vmatpush.bf16.msra.mxu0 %v3443
        %3557 = vmatpush.bf16.msra.mxu0 %v3441
        %3558 = vmatpush.bf16.msra.mxu0 %v3439
        %3559 = vmatpush.bf16.msra.mxu0 %v3437
        %3560 = vmatpush.bf16.msra.mxu0 %v3435
        %3561 = vmatpush.bf16.msra.mxu0 %v3433
        %3562 = vmatmul.bf16.gmra.mxu0 %v3266
        %v3563 = vpop.f32.mrf.mxu0
        %v3564 = vadd.f32 %v3333, %v3563
        %v3565 = vpop.f32.mrf.mxu0
        %v3566 = vadd.f32 %v3333, %v3565
        %3567 = vmatmul.bf16.gmra.mxu0 %v3267
        %v3568 = vpop.f32.mrf.mxu0
        %v3569 = vadd.f32 %v3333, %v3568
        %v3570 = vpop.f32.mrf.mxu0
        %v3571 = vadd.f32 %v3333, %v3570
        %3572 = vmatmul.bf16.gmra.mxu0 %v3268
        %v3573 = vpop.f32.mrf.mxu0
        %v3574 = vadd.f32 %v3333, %v3573
        %v3575 = vpop.f32.mrf.mxu0
        %v3576 = vadd.f32 %v3333, %v3575
        %3577 = vmatmul.bf16.gmra.mxu0 %v3269
        %v3578 = vpop.f32.mrf.mxu0
        %v3579 = vadd.f32 %v3333, %v3578
        %v3580 = vpop.f32.mrf.mxu0
        %v3581 = vadd.f32 %v3333, %v3580
        %3582 = vdwg.mxu0
        %3583 = vmatpush.bf16.msra.mxu0 %v3463
        %3584 = vmatpush.bf16.msra.mxu0 %v3461
        %3585 = vmatpush.bf16.msra.mxu0 %v3459
        %3586 = vmatpush.bf16.msra.mxu0 %v3457
        %3587 = vmatpush.bf16.msra.mxu0 %v3455
        %3588 = vmatpush.bf16.msra.mxu0 %v3453
        %3589 = vmatpush.bf16.msra.mxu0 %v3451
        %3590 = vmatpush.bf16.msra.mxu0 %v3449
        %3591 = vmatmul.bf16.gmra.mxu0 %v3290
        %v3592 = vpop.f32.mrf.mxu0
        %v3593 = vadd.f32 %v3564, %v3592
        %v3594 = vpop.f32.mrf.mxu0
        %v3595 = vadd.f32 %v3566, %v3594
        %3596 = vmatmul.bf16.gmra.mxu0 %v3291
        %v3597 = vpop.f32.mrf.mxu0
        %v3598 = vadd.f32 %v3569, %v3597
        %v3599 = vpop.f32.mrf.mxu0
        %v3600 = vadd.f32 %v3571, %v3599
        %3601 = vmatmul.bf16.gmra.mxu0 %v3292
        %v3602 = vpop.f32.mrf.mxu0
        %v3603 = vadd.f32 %v3574, %v3602
        %v3604 = vpop.f32.mrf.mxu0
        %v3605 = vadd.f32 %v3576, %v3604
        %3606 = vmatmul.bf16.gmra.mxu0 %v3293
        %v3607 = vpop.f32.mrf.mxu0
        %v3608 = vadd.f32 %v3579, %v3607
        %v3609 = vpop.f32.mrf.mxu0
        %v3610 = vadd.f32 %v3581, %v3609
        %3611 = vdwg.mxu0
        %v3612 = vld [vmem:[%s7] sm:$0x3]
        %v3613 = vld [vmem:[#allocation12] sm:$0x3]
        %v3614 = vadd.f32 %v3535, %v3593
        %3615 = vadd.xlane.f32.xlu0 %v3614
        %v3616 = vpop.xlane.xlu0 %3615
        %v3617 = vadd.f32 %v3537, %v3595
        %3618 = vadd.xlane.f32.xlu0 %v3617
        %v3619 = vpop.xlane.xlu0 %3618
        %v3620 = vadd.f32 %v3540, %v3598
        %3621 = vadd.xlane.f32.xlu0 %v3620
        %v3622 = vpop.xlane.xlu0 %3621
        %v3623 = vadd.f32 %v3542, %v3600
        %3624 = vadd.xlane.f32.xlu0 %v3623
        %v3625 = vpop.xlane.xlu0 %3624
        %v3626 = vadd.f32 %v3545, %v3603
        %3627 = vadd.xlane.f32.xlu0 %v3626
        %v3628 = vpop.xlane.xlu0 %3627
        %v3629 = vadd.f32 %v3547, %v3605
        %3630 = vadd.xlane.f32.xlu0 %v3629
        %v3631 = vpop.xlane.xlu0 %3630
        %v3632 = vadd.f32 %v3550, %v3608
        %3633 = vadd.xlane.f32.xlu0 %v3632
        %v3634 = vpop.xlane.xlu0 %3633
        %v3635 = vadd.f32 %v3552, %v3610
        %3636 = vadd.xlane.f32.xlu0 %v3635
        %v3637 = vpop.xlane.xlu0 %3636
        %v3638 = vmul.f32 %v3616, %v2097
        %v3639 = vmul.f32 %v3619, %v2097
        %v3640 = vmul.f32 %v3622, %v2097
        %v3641 = vmul.f32 %v3625, %v2097
        %v3642 = vmul.f32 %v3628, %v2097
        %v3643 = vmul.f32 %v3631, %v2097
        %v3644 = vmul.f32 %v3634, %v2097
        %v3645 = vmul.f32 %v3637, %v2097
        %v3646 = vmul.f32 %v3535, %v3535
        %v3647 = vmul.f32 %v3593, %v3593
        %v3648 = vmul.f32 %v3537, %v3537
        %v3649 = vmul.f32 %v3595, %v3595
        %v3650 = vmul.f32 %v3540, %v3540
        %v3651 = vmul.f32 %v3598, %v3598
        %v3652 = vmul.f32 %v3542, %v3542
        %v3653 = vmul.f32 %v3600, %v3600
        %v3654 = vmul.f32 %v3545, %v3545
        %v3655 = vmul.f32 %v3603, %v3603
        %v3656 = vmul.f32 %v3547, %v3547
        %v3657 = vmul.f32 %v3605, %v3605
        %v3658 = vmul.f32 %v3550, %v3550
        %v3659 = vmul.f32 %v3608, %v3608
        %v3660 = vmul.f32 %v3552, %v3552
        %v3661 = vmul.f32 %v3610, %v3610
        %v3662 = vadd.f32 %v3646, %v3647
        %3663 = vadd.xlane.f32.xlu0 %v3662
        %v3664 = vpop.xlane.xlu0 %3663
        %v3665 = vadd.f32 %v3648, %v3649
        %3666 = vadd.xlane.f32.xlu0 %v3665
        %v3667 = vpop.xlane.xlu0 %3666
        %v3668 = vadd.f32 %v3650, %v3651
        %3669 = vadd.xlane.f32.xlu0 %v3668
        %v3670 = vpop.xlane.xlu0 %3669
        %v3671 = vadd.f32 %v3652, %v3653
        %3672 = vadd.xlane.f32.xlu0 %v3671
        %v3673 = vpop.xlane.xlu0 %3672
        %v3674 = vadd.f32 %v3654, %v3655
        %3675 = vadd.xlane.f32.xlu0 %v3674
        %v3676 = vpop.xlane.xlu0 %3675
        %v3677 = vadd.f32 %v3656, %v3657
        %3678 = vadd.xlane.f32.xlu0 %v3677
        %v3679 = vpop.xlane.xlu0 %3678
        %v3680 = vadd.f32 %v3658, %v3659
        %3681 = vadd.xlane.f32.xlu0 %v3680
        %v3682 = vpop.xlane.xlu0 %3681
        %v3683 = vadd.f32 %v3660, %v3661
        %3684 = vadd.xlane.f32.xlu0 %v3683
        %v3685 = vpop.xlane.xlu0 %3684
        %v3686 = vmul.f32 %v3664, %v2097
        %v3687 = vmul.f32 %v3667, %v2097
        %v3688 = vmul.f32 %v3670, %v2097
        %v3689 = vmul.f32 %v3673, %v2097
        %v3690 = vmul.f32 %v3676, %v2097
        %v3691 = vmul.f32 %v3679, %v2097
        %v3692 = vmul.f32 %v3682, %v2097
        %v3693 = vmul.f32 %v3685, %v2097
        %v3694 = vmul.f32 %v3638, %v3638
        %v3695 = vmul.f32 %v3639, %v3639
        %v3696 = vmul.f32 %v3640, %v3640
        %v3697 = vmul.f32 %v3641, %v3641
        %v3698 = vmul.f32 %v3642, %v3642
        %v3699 = vmul.f32 %v3643, %v3643
        %v3700 = vmul.f32 %v3644, %v3644
        %v3701 = vmul.f32 %v3645, %v3645
        %v3702 = vsub.f32 %v3686, %v3694
        %v3703 = vsub.f32 %v3687, %v3695
        %v3704 = vsub.f32 %v3688, %v3696
        %v3705 = vsub.f32 %v3689, %v3697
        %v3706 = vsub.f32 %v3690, %v3698
        %v3707 = vsub.f32 %v3691, %v3699
        %v3708 = vsub.f32 %v3692, %v3700
        %v3709 = vsub.f32 %v3693, %v3701
        %v3710 = vmax.f32 %v3702, 0.0
        %v3711 = vmax.f32 %v3703, 0.0
        %v3712 = vmax.f32 %v3704, 0.0
        %v3713 = vmax.f32 %v3705, 0.0
        %v3714 = vmax.f32 %v3706, 0.0
        %v3715 = vmax.f32 %v3707, 0.0
        %v3716 = vmax.f32 %v3708, 0.0
        %v3717 = vmax.f32 %v3709, 0.0
        %v3718 = vsub.f32 %v3535, %v3638
        %v3719 = vsub.f32 %v3593, %v3638
        %v3720 = vsub.f32 %v3537, %v3639
        %v3721 = vsub.f32 %v3595, %v3639
        %v3722 = vsub.f32 %v3540, %v3640
        %v3723 = vsub.f32 %v3598, %v3640
        %v3724 = vsub.f32 %v3542, %v3641
        %v3725 = vsub.f32 %v3600, %v3641
        %v3726 = vsub.f32 %v3545, %v3642
        %v3727 = vsub.f32 %v3603, %v3642
        %v3728 = vsub.f32 %v3547, %v3643
        %v3729 = vsub.f32 %v3605, %v3643
        %v3730 = vsub.f32 %v3550, %v3644
        %v3731 = vsub.f32 %v3608, %v3644
        %v3732 = vsub.f32 %v3552, %v3645
        %v3733 = vsub.f32 %v3610, %v3645
        %v3734 = vadd.f32 %v3710, 1e-05
        %v3735 = vadd.f32 %v3711, 1e-05
        %v3736 = vadd.f32 %v3712, 1e-05
        %v3737 = vadd.f32 %v3713, 1e-05
        %v3738 = vadd.f32 %v3714, 1e-05
        %v3739 = vadd.f32 %v3715, 1e-05
        %v3740 = vadd.f32 %v3716, 1e-05
        %v3741 = vadd.f32 %v3717, 1e-05
        %v3742 = vrsqrt.pop %v3734
        %v3743 = vmul.f32 %v3742, %v3734
        %v3744 = vmul.f32 %v3743, %v3742
        %v3745 = vmul.f32 0.5, %v3744
        %v3746 = vsub.f32 1.5, %v3745
        %v3747 = vmul.f32 %v3742, %v3746
        %vm3748 = vweird.f32 %v3734
        %vm3749 = vweird.f32 %v3742
        %vm3750 = vmor %vm3748, %vm3749
        %v3751 = vsel %vm3750, %v3742, %v3747
        %v3752 = vrsqrt.pop %v3735
        %v3753 = vmul.f32 %v3752, %v3735
        %v3754 = vmul.f32 %v3753, %v3752
        %v3755 = vmul.f32 0.5, %v3754
        %v3756 = vsub.f32 1.5, %v3755
        %v3757 = vmul.f32 %v3752, %v3756
        %vm3758 = vweird.f32 %v3735
        %vm3759 = vweird.f32 %v3752
        %vm3760 = vmor %vm3758, %vm3759
        %v3761 = vsel %vm3760, %v3752, %v3757
        %v3762 = vrsqrt.pop %v3736
        %v3763 = vmul.f32 %v3762, %v3736
        %v3764 = vmul.f32 %v3763, %v3762
        %v3765 = vmul.f32 0.5, %v3764
        %v3766 = vsub.f32 1.5, %v3765
        %v3767 = vmul.f32 %v3762, %v3766
        %vm3768 = vweird.f32 %v3736
        %vm3769 = vweird.f32 %v3762
        %vm3770 = vmor %vm3768, %vm3769
        %v3771 = vsel %vm3770, %v3762, %v3767
        %v3772 = vrsqrt.pop %v3737
        %v3773 = vmul.f32 %v3772, %v3737
        %v3774 = vmul.f32 %v3773, %v3772
        %v3775 = vmul.f32 0.5, %v3774
        %v3776 = vsub.f32 1.5, %v3775
        %v3777 = vmul.f32 %v3772, %v3776
        %vm3778 = vweird.f32 %v3737
        %vm3779 = vweird.f32 %v3772
        %vm3780 = vmor %vm3778, %vm3779
        %v3781 = vsel %vm3780, %v3772, %v3777
        %v3782 = vrsqrt.pop %v3738
        %v3783 = vmul.f32 %v3782, %v3738
        %v3784 = vmul.f32 %v3783, %v3782
        %v3785 = vmul.f32 0.5, %v3784
        %v3786 = vsub.f32 1.5, %v3785
        %v3787 = vmul.f32 %v3782, %v3786
        %vm3788 = vweird.f32 %v3738
        %vm3789 = vweird.f32 %v3782
        %vm3790 = vmor %vm3788, %vm3789
        %v3791 = vsel %vm3790, %v3782, %v3787
        %v3792 = vrsqrt.pop %v3739
        %v3793 = vmul.f32 %v3792, %v3739
        %v3794 = vmul.f32 %v3793, %v3792
        %v3795 = vmul.f32 0.5, %v3794
        %v3796 = vsub.f32 1.5, %v3795
        %v3797 = vmul.f32 %v3792, %v3796
        %vm3798 = vweird.f32 %v3739
        %vm3799 = vweird.f32 %v3792
        %vm3800 = vmor %vm3798, %vm3799
        %v3801 = vsel %vm3800, %v3792, %v3797
        %v3802 = vrsqrt.pop %v3740
        %v3803 = vmul.f32 %v3802, %v3740
        %v3804 = vmul.f32 %v3803, %v3802
        %v3805 = vmul.f32 0.5, %v3804
        %v3806 = vsub.f32 1.5, %v3805
        %v3807 = vmul.f32 %v3802, %v3806
        %vm3808 = vweird.f32 %v3740
        %vm3809 = vweird.f32 %v3802
        %vm3810 = vmor %vm3808, %vm3809
        %v3811 = vsel %vm3810, %v3802, %v3807
        %v3812 = vrsqrt.pop %v3741
        %v3813 = vmul.f32 %v3812, %v3741
        %v3814 = vmul.f32 %v3813, %v3812
        %v3815 = vmul.f32 0.5, %v3814
        %v3816 = vsub.f32 1.5, %v3815
        %v3817 = vmul.f32 %v3812, %v3816
        %vm3818 = vweird.f32 %v3741
        %vm3819 = vweird.f32 %v3812
        %vm3820 = vmor %vm3818, %vm3819
        %v3821 = vsel %vm3820, %v3812, %v3817
        %v3822 = vmul.f32 %v3718, %v3751
        %v3823 = vmul.f32 %v3719, %v3751
        %v3824 = vmul.f32 %v3720, %v3761
        %v3825 = vmul.f32 %v3721, %v3761
        %v3826 = vmul.f32 %v3722, %v3771
        %v3827 = vmul.f32 %v3723, %v3771
        %v3828 = vmul.f32 %v3724, %v3781
        %v3829 = vmul.f32 %v3725, %v3781
        %v3830 = vmul.f32 %v3726, %v3791
        %v3831 = vmul.f32 %v3727, %v3791
        %v3832 = vmul.f32 %v3728, %v3801
        %v3833 = vmul.f32 %v3729, %v3801
        %v3834 = vmul.f32 %v3730, %v3811
        %v3835 = vmul.f32 %v3731, %v3811
        %v3836 = vmul.f32 %v3732, %v3821
        %v3837 = vmul.f32 %v3733, %v3821
        %v3839 = vperm.slane %v3612, 0
        %v3840 = vperm.slane %v3612, 1
        %v3843 = vmul.f32 %v3822, %v3839
        %v3844 = vmul.f32 %v3823, %v3840
        %v3845 = vmul.f32 %v3824, %v3839
        %v3846 = vmul.f32 %v3825, %v3840
        %v3847 = vmul.f32 %v3826, %v3839
        %v3848 = vmul.f32 %v3827, %v3840
        %v3849 = vmul.f32 %v3828, %v3839
        %v3850 = vmul.f32 %v3829, %v3840
        %v3851 = vmul.f32 %v3830, %v3839
        %v3852 = vmul.f32 %v3831, %v3840
        %v3853 = vmul.f32 %v3832, %v3839
        %v3854 = vmul.f32 %v3833, %v3840
        %v3855 = vmul.f32 %v3834, %v3839
        %v3856 = vmul.f32 %v3835, %v3840
        %v3857 = vmul.f32 %v3836, %v3839
        %v3858 = vmul.f32 %v3837, %v3840
        %v3860 = vperm.slane %v3613, 0
        %v3861 = vperm.slane %v3613, 1
        %v3864 = vadd.f32 %v3843, %v3860
        %v3865 = vadd.f32 %v3844, %v3861
        %v3866 = vadd.f32 %v3845, %v3860
        %v3867 = vadd.f32 %v3846, %v3861
        %v3868 = vadd.f32 %v3847, %v3860
        %v3869 = vadd.f32 %v3848, %v3861
        %v3870 = vadd.f32 %v3849, %v3860
        %v3871 = vadd.f32 %v3850, %v3861
        %v3872 = vadd.f32 %v3851, %v3860
        %v3873 = vadd.f32 %v3852, %v3861
        %v3874 = vadd.f32 %v3853, %v3860
        %v3875 = vadd.f32 %v3854, %v3861
        %v3876 = vadd.f32 %v3855, %v3860
        %v3877 = vadd.f32 %v3856, %v3861
        %v3878 = vadd.f32 %v3857, %v3860
        %v3879 = vadd.f32 %v3858, %v3861
        %v3880 = vpack.c.bf16 %v3866, %v3864
        %v3881 = vpack.c.bf16 %v3867, %v3865
        %v3882 = vpack.c.bf16 %v3870, %v3868
        %v3883 = vpack.c.bf16 %v3871, %v3869
        %v3884 = vpack.c.bf16 %v3874, %v3872
        %v3885 = vpack.c.bf16 %v3875, %v3873
        %v3886 = vpack.c.bf16 %v3878, %v3876
        %v3887 = vpack.c.bf16 %v3879, %v3877
        %v3888 = vld [vmem:[#allocation14] sm:$0xff]
        %v3889 = vld [vmem:[#allocation14 + $0x8] sm:$0xff]
        %v3890 = vld [vmem:[#allocation14 + $0x10] sm:$0xff]
        %v3891 = vld [vmem:[#allocation14 + $0x18] sm:$0xff]
        %v3892 = vld [vmem:[#allocation14 + $0x20] sm:$0xff]
        %v3893 = vld [vmem:[#allocation14 + $0x28] sm:$0xff]
        %v3894 = vld [vmem:[#allocation14 + $0x30] sm:$0xff]
        %v3895 = vld [vmem:[#allocation14 + $0x38] sm:$0xff]
        %v3896 = vld [vmem:[#allocation14 + $0x40] sm:$0xff]
        %v3897 = vld [vmem:[#allocation14 + $0x48] sm:$0xff]
        %v3898 = vld [vmem:[#allocation14 + $0x50] sm:$0xff]
        %v3899 = vld [vmem:[#allocation14 + $0x58] sm:$0xff]
        %v3900 = vld [vmem:[#allocation14 + $0x60] sm:$0xff]
        %v3901 = vld [vmem:[#allocation14 + $0x68] sm:$0xff]
        %v3902 = vld [vmem:[#allocation14 + $0x70] sm:$0xff]
        %v3903 = vld [vmem:[#allocation14 + $0x78] sm:$0xff]
        %v3904 = vld [vmem:[#allocation14 + $0x80] sm:$0xff]
        %v3905 = vld [vmem:[#allocation14 + $0x88] sm:$0xff]
        %v3906 = vld [vmem:[#allocation14 + $0x90] sm:$0xff]
        %v3907 = vld [vmem:[#allocation14 + $0x98] sm:$0xff]
        %v3908 = vld [vmem:[#allocation14 + $0xa0] sm:$0xff]
        %v3909 = vld [vmem:[#allocation14 + $0xa8] sm:$0xff]
        %v3910 = vld [vmem:[#allocation14 + $0xb0] sm:$0xff]
        %v3911 = vld [vmem:[#allocation14 + $0xb8] sm:$0xff]
        %v3912 = vld [vmem:[#allocation14 + $0xc0] sm:$0xff]
        %v3913 = vld [vmem:[#allocation14 + $0xc8] sm:$0xff]
        %v3914 = vld [vmem:[#allocation14 + $0xd0] sm:$0xff]
        %v3915 = vld [vmem:[#allocation14 + $0xd8] sm:$0xff]
        %v3916 = vld [vmem:[#allocation14 + $0xe0] sm:$0xff]
        %v3917 = vld [vmem:[#allocation14 + $0xe8] sm:$0xff]
        %v3918 = vld [vmem:[#allocation14 + $0xf0] sm:$0xff]
        %v3919 = vld [vmem:[#allocation14 + $0xf8] sm:$0xff]
        %v3920 = vld [vmem:[%s10] sm:$0x3]
        %v3922 = vperm.slane %v3920, 0
        %v3923 = vperm.slane %v3920, 1
        %v3958 = vunpack.c.l.b16 %v3888
        %v3959 = vunpack.c.h.b16 %v3888
        %v3960 = vunpack.c.l.b16 %v3889
        %v3961 = vunpack.c.h.b16 %v3889
        %v3962 = vunpack.c.l.b16 %v3890
        %v3963 = vunpack.c.h.b16 %v3890
        %v3964 = vunpack.c.l.b16 %v3891
        %v3965 = vunpack.c.h.b16 %v3891
        %v3966 = vunpack.c.l.b16 %v3892
        %v3967 = vunpack.c.h.b16 %v3892
        %v3968 = vunpack.c.l.b16 %v3893
        %v3969 = vunpack.c.h.b16 %v3893
        %v3970 = vunpack.c.l.b16 %v3894
        %v3971 = vunpack.c.h.b16 %v3894
        %v3972 = vunpack.c.l.b16 %v3895
        %v3973 = vunpack.c.h.b16 %v3895
        %v3974 = vunpack.c.l.b16 %v3896
        %v3975 = vunpack.c.h.b16 %v3896
        %v3976 = vunpack.c.l.b16 %v3897
        %v3977 = vunpack.c.h.b16 %v3897
        %v3978 = vunpack.c.l.b16 %v3898
        %v3979 = vunpack.c.h.b16 %v3898
        %v3980 = vunpack.c.l.b16 %v3899
        %v3981 = vunpack.c.h.b16 %v3899
        %v3982 = vunpack.c.l.b16 %v3900
        %v3983 = vunpack.c.h.b16 %v3900
        %v3984 = vunpack.c.l.b16 %v3901
        %v3985 = vunpack.c.h.b16 %v3901
        %v3986 = vunpack.c.l.b16 %v3902
        %v3987 = vunpack.c.h.b16 %v3902
        %v3988 = vunpack.c.l.b16 %v3903
        %v3989 = vunpack.c.h.b16 %v3903
        %v3990 = vunpack.c.l.b16 %v3904
        %v3991 = vunpack.c.h.b16 %v3904
        %v3992 = vunpack.c.l.b16 %v3905
        %v3993 = vunpack.c.h.b16 %v3905
        %v3994 = vunpack.c.l.b16 %v3906
        %v3995 = vunpack.c.h.b16 %v3906
        %v3996 = vunpack.c.l.b16 %v3907
        %v3997 = vunpack.c.h.b16 %v3907
        %v3998 = vunpack.c.l.b16 %v3908
        %v3999 = vunpack.c.h.b16 %v3908
        %v4000 = vunpack.c.l.b16 %v3909
        %v4001 = vunpack.c.h.b16 %v3909
        %v4002 = vunpack.c.l.b16 %v3910
        %v4003 = vunpack.c.h.b16 %v3910
        %v4004 = vunpack.c.l.b16 %v3911
        %v4005 = vunpack.c.h.b16 %v3911
        %v4006 = vunpack.c.l.b16 %v3912
        %v4007 = vunpack.c.h.b16 %v3912
        %v4008 = vunpack.c.l.b16 %v3913
        %v4009 = vunpack.c.h.b16 %v3913
        %v4010 = vunpack.c.l.b16 %v3914
        %v4011 = vunpack.c.h.b16 %v3914
        %v4012 = vunpack.c.l.b16 %v3915
        %v4013 = vunpack.c.h.b16 %v3915
        %v4014 = vunpack.c.l.b16 %v3916
        %v4015 = vunpack.c.h.b16 %v3916
        %v4016 = vunpack.c.l.b16 %v3917
        %v4017 = vunpack.c.h.b16 %v3917
        %v4018 = vunpack.c.l.b16 %v3918
        %v4019 = vunpack.c.h.b16 %v3918
        %v4020 = vunpack.c.l.b16 %v3919
        %v4021 = vunpack.c.h.b16 %v3919
        %v4022 = vpack.c.b16 %v3960, %v3958
        %v4023 = vpack.c.b16 %v3961, %v3959
        %v4024 = vpack.c.b16 %v3964, %v3962
        %v4025 = vpack.c.b16 %v3965, %v3963
        %v4026 = vpack.c.b16 %v3968, %v3966
        %v4027 = vpack.c.b16 %v3969, %v3967
        %v4028 = vpack.c.b16 %v3972, %v3970
        %v4029 = vpack.c.b16 %v3973, %v3971
        %v4030 = vpack.c.b16 %v3976, %v3974
        %v4031 = vpack.c.b16 %v3977, %v3975
        %v4032 = vpack.c.b16 %v3980, %v3978
        %v4033 = vpack.c.b16 %v3981, %v3979
        %v4034 = vpack.c.b16 %v3984, %v3982
        %v4035 = vpack.c.b16 %v3985, %v3983
        %v4036 = vpack.c.b16 %v3988, %v3986
        %v4037 = vpack.c.b16 %v3989, %v3987
        %v4038 = vpack.c.b16 %v3992, %v3990
        %v4039 = vpack.c.b16 %v3993, %v3991
        %v4040 = vpack.c.b16 %v3996, %v3994
        %v4041 = vpack.c.b16 %v3997, %v3995
        %v4042 = vpack.c.b16 %v4000, %v3998
        %v4043 = vpack.c.b16 %v4001, %v3999
        %v4044 = vpack.c.b16 %v4004, %v4002
        %v4045 = vpack.c.b16 %v4005, %v4003
        %v4046 = vpack.c.b16 %v4008, %v4006
        %v4047 = vpack.c.b16 %v4009, %v4007
        %v4048 = vpack.c.b16 %v4012, %v4010
        %v4049 = vpack.c.b16 %v4013, %v4011
        %v4050 = vpack.c.b16 %v4016, %v4014
        %v4051 = vpack.c.b16 %v4017, %v4015
        %v4052 = vpack.c.b16 %v4020, %v4018
        %v4053 = vpack.c.b16 %v4021, %v4019
        %4086 = vmatpush.bf16.msra.mxu0 %v4036
        %4087 = vmatpush.bf16.msra.mxu0 %v4034
        %4088 = vmatpush.bf16.msra.mxu0 %v4032
        %4089 = vmatpush.bf16.msra.mxu0 %v4030
        %4090 = vmatpush.bf16.msra.mxu0 %v4028
        %4091 = vmatpush.bf16.msra.mxu0 %v4026
        %4092 = vmatpush.bf16.msra.mxu0 %v4024
        %4093 = vmatpush.bf16.msra.mxu0 %v4022
        %4094 = vmatmul.bf16.gmra.mxu0 %v3880
        %v4095 = vpop.f32.mrf.mxu0
        %v4096 = vadd.f32 %v3922, %v4095
        %v4097 = vpop.f32.mrf.mxu0
        %v4098 = vadd.f32 %v3922, %v4097
        %4099 = vmatmul.bf16.gmra.mxu0 %v3882
        %v4100 = vpop.f32.mrf.mxu0
        %v4101 = vadd.f32 %v3922, %v4100
        %v4102 = vpop.f32.mrf.mxu0
        %v4103 = vadd.f32 %v3922, %v4102
        %4104 = vmatmul.bf16.gmra.mxu0 %v3884
        %v4105 = vpop.f32.mrf.mxu0
        %v4106 = vadd.f32 %v3922, %v4105
        %v4107 = vpop.f32.mrf.mxu0
        %v4108 = vadd.f32 %v3922, %v4107
        %4109 = vmatmul.bf16.gmra.mxu0 %v3886
        %v4110 = vpop.f32.mrf.mxu0
        %v4111 = vadd.f32 %v3922, %v4110
        %v4112 = vpop.f32.mrf.mxu0
        %v4113 = vadd.f32 %v3922, %v4112
        %4114 = vdwg.mxu0
        %4115 = vmatpush.bf16.msra.mxu0 %v4052
        %4116 = vmatpush.bf16.msra.mxu0 %v4050
        %4117 = vmatpush.bf16.msra.mxu0 %v4048
        %4118 = vmatpush.bf16.msra.mxu0 %v4046
        %4119 = vmatpush.bf16.msra.mxu0 %v4044
        %4120 = vmatpush.bf16.msra.mxu0 %v4042
        %4121 = vmatpush.bf16.msra.mxu0 %v4040
        %4122 = vmatpush.bf16.msra.mxu0 %v4038
        %4123 = vmatmul.bf16.gmra.mxu0 %v3881
        %v4124 = vpop.f32.mrf.mxu0
        %v4125 = vadd.f32 %v4096, %v4124
        %v4126 = vpop.f32.mrf.mxu0
        %v4127 = vadd.f32 %v4098, %v4126
        %4128 = vmatmul.bf16.gmra.mxu0 %v3883
        %v4129 = vpop.f32.mrf.mxu0
        %v4130 = vadd.f32 %v4101, %v4129
        %v4131 = vpop.f32.mrf.mxu0
        %v4132 = vadd.f32 %v4103, %v4131
        %4133 = vmatmul.bf16.gmra.mxu0 %v3885
        %v4134 = vpop.f32.mrf.mxu0
        %v4135 = vadd.f32 %v4106, %v4134
        %v4136 = vpop.f32.mrf.mxu0
        %v4137 = vadd.f32 %v4108, %v4136
        %4138 = vmatmul.bf16.gmra.mxu0 %v3887
        %v4139 = vpop.f32.mrf.mxu0
        %v4140 = vadd.f32 %v4111, %v4139
        %v4141 = vpop.f32.mrf.mxu0
        %v4142 = vadd.f32 %v4113, %v4141
        %4143 = vdwg.mxu0
        %4144 = vmatpush.bf16.msra.mxu0 %v4037
        %4145 = vmatpush.bf16.msra.mxu0 %v4035
        %4146 = vmatpush.bf16.msra.mxu0 %v4033
        %4147 = vmatpush.bf16.msra.mxu0 %v4031
        %4148 = vmatpush.bf16.msra.mxu0 %v4029
        %4149 = vmatpush.bf16.msra.mxu0 %v4027
        %4150 = vmatpush.bf16.msra.mxu0 %v4025
        %4151 = vmatpush.bf16.msra.mxu0 %v4023
        %4152 = vmatmul.bf16.gmra.mxu0 %v3880
        %v4153 = vpop.f32.mrf.mxu0
        %v4154 = vadd.f32 %v3923, %v4153
        %v4155 = vpop.f32.mrf.mxu0
        %v4156 = vadd.f32 %v3923, %v4155
        %4157 = vmatmul.bf16.gmra.mxu0 %v3882
        %v4158 = vpop.f32.mrf.mxu0
        %v4159 = vadd.f32 %v3923, %v4158
        %v4160 = vpop.f32.mrf.mxu0
        %v4161 = vadd.f32 %v3923, %v4160
        %4162 = vmatmul.bf16.gmra.mxu0 %v3884
        %v4163 = vpop.f32.mrf.mxu0
        %v4164 = vadd.f32 %v3923, %v4163
        %v4165 = vpop.f32.mrf.mxu0
        %v4166 = vadd.f32 %v3923, %v4165
        %4167 = vmatmul.bf16.gmra.mxu0 %v3886
        %v4168 = vpop.f32.mrf.mxu0
        %v4169 = vadd.f32 %v3923, %v4168
        %v4170 = vpop.f32.mrf.mxu0
        %v4171 = vadd.f32 %v3923, %v4170
        %4172 = vdwg.mxu0
        %4173 = vmatpush.bf16.msra.mxu0 %v4053
        %4174 = vmatpush.bf16.msra.mxu0 %v4051
        %4175 = vmatpush.bf16.msra.mxu0 %v4049
        %4176 = vmatpush.bf16.msra.mxu0 %v4047
        %4177 = vmatpush.bf16.msra.mxu0 %v4045
        %4178 = vmatpush.bf16.msra.mxu0 %v4043
        %4179 = vmatpush.bf16.msra.mxu0 %v4041
        %4180 = vmatpush.bf16.msra.mxu0 %v4039
        %4181 = vmatmul.bf16.gmra.mxu0 %v3881
        %v4182 = vpop.f32.mrf.mxu0
        %v4183 = vadd.f32 %v4154, %v4182
        %v4184 = vpop.f32.mrf.mxu0
        %v4185 = vadd.f32 %v4156, %v4184
        %4186 = vmatmul.bf16.gmra.mxu0 %v3883
        %v4187 = vpop.f32.mrf.mxu0
        %v4188 = vadd.f32 %v4159, %v4187
        %v4189 = vpop.f32.mrf.mxu0
        %v4190 = vadd.f32 %v4161, %v4189
        %4191 = vmatmul.bf16.gmra.mxu0 %v3885
        %v4192 = vpop.f32.mrf.mxu0
        %v4193 = vadd.f32 %v4164, %v4192
        %v4194 = vpop.f32.mrf.mxu0
        %v4195 = vadd.f32 %v4166, %v4194
        %4196 = vmatmul.bf16.gmra.mxu0 %v3887
        %v4197 = vpop.f32.mrf.mxu0
        %v4198 = vadd.f32 %v4169, %v4197
        %v4199 = vpop.f32.mrf.mxu0
        %v4200 = vadd.f32 %v4171, %v4199
        %4201 = vdwg.mxu0
        %v4202 = vpack.c.bf16 %v4127, %v4125
        %v4203 = vpack.c.bf16 %v4185, %v4183
        %v4204 = vpack.c.bf16 %v4132, %v4130
        %v4205 = vpack.c.bf16 %v4190, %v4188
        %v4206 = vpack.c.bf16 %v4137, %v4135
        %v4207 = vpack.c.bf16 %v4195, %v4193
        %v4208 = vpack.c.bf16 %v4142, %v4140
        %v4209 = vpack.c.bf16 %v4200, %v4198
        %v4210 = vld [vmem:[#allocation15] sm:$0xff]
        %v4211 = vld [vmem:[#allocation15 + $0x8] sm:$0xff]
        %v4212 = vld [vmem:[#allocation15 + $0x10] sm:$0xff]
        %v4213 = vld [vmem:[#allocation15 + $0x18] sm:$0xff]
        %v4214 = vld [vmem:[#allocation15 + $0x20] sm:$0xff]
        %v4215 = vld [vmem:[#allocation15 + $0x28] sm:$0xff]
        %v4216 = vld [vmem:[#allocation15 + $0x30] sm:$0xff]
        %v4217 = vld [vmem:[#allocation15 + $0x38] sm:$0xff]
        %v4218 = vld [vmem:[#allocation15 + $0x40] sm:$0xff]
        %v4219 = vld [vmem:[#allocation15 + $0x48] sm:$0xff]
        %v4220 = vld [vmem:[#allocation15 + $0x50] sm:$0xff]
        %v4221 = vld [vmem:[#allocation15 + $0x58] sm:$0xff]
        %v4222 = vld [vmem:[#allocation15 + $0x60] sm:$0xff]
        %v4223 = vld [vmem:[#allocation15 + $0x68] sm:$0xff]
        %v4224 = vld [vmem:[#allocation15 + $0x70] sm:$0xff]
        %v4225 = vld [vmem:[#allocation15 + $0x78] sm:$0xff]
        %v4226 = vld [vmem:[#allocation15 + $0x80] sm:$0xff]
        %v4227 = vld [vmem:[#allocation15 + $0x88] sm:$0xff]
        %v4228 = vld [vmem:[#allocation15 + $0x90] sm:$0xff]
        %v4229 = vld [vmem:[#allocation15 + $0x98] sm:$0xff]
        %v4230 = vld [vmem:[#allocation15 + $0xa0] sm:$0xff]
        %v4231 = vld [vmem:[#allocation15 + $0xa8] sm:$0xff]
        %v4232 = vld [vmem:[#allocation15 + $0xb0] sm:$0xff]
        %v4233 = vld [vmem:[#allocation15 + $0xb8] sm:$0xff]
        %v4234 = vld [vmem:[#allocation15 + $0xc0] sm:$0xff]
        %v4235 = vld [vmem:[#allocation15 + $0xc8] sm:$0xff]
        %v4236 = vld [vmem:[#allocation15 + $0xd0] sm:$0xff]
        %v4237 = vld [vmem:[#allocation15 + $0xd8] sm:$0xff]
        %v4238 = vld [vmem:[#allocation15 + $0xe0] sm:$0xff]
        %v4239 = vld [vmem:[#allocation15 + $0xe8] sm:$0xff]
        %v4240 = vld [vmem:[#allocation15 + $0xf0] sm:$0xff]
        %v4241 = vld [vmem:[#allocation15 + $0xf8] sm:$0xff]
        %v4242 = vld [vmem:[%s12] sm:$0x3]
        %v4244 = vperm.slane %v4242, 0
        %v4245 = vperm.slane %v4242, 1
        %v4280 = vunpack.c.l.b16 %v4210
        %v4281 = vunpack.c.h.b16 %v4210
        %v4282 = vunpack.c.l.b16 %v4211
        %v4283 = vunpack.c.h.b16 %v4211
        %v4284 = vunpack.c.l.b16 %v4212
        %v4285 = vunpack.c.h.b16 %v4212
        %v4286 = vunpack.c.l.b16 %v4213
        %v4287 = vunpack.c.h.b16 %v4213
        %v4288 = vunpack.c.l.b16 %v4214
        %v4289 = vunpack.c.h.b16 %v4214
        %v4290 = vunpack.c.l.b16 %v4215
        %v4291 = vunpack.c.h.b16 %v4215
        %v4292 = vunpack.c.l.b16 %v4216
        %v4293 = vunpack.c.h.b16 %v4216
        %v4294 = vunpack.c.l.b16 %v4217
        %v4295 = vunpack.c.h.b16 %v4217
        %v4296 = vunpack.c.l.b16 %v4218
        %v4297 = vunpack.c.h.b16 %v4218
        %v4298 = vunpack.c.l.b16 %v4219
        %v4299 = vunpack.c.h.b16 %v4219
        %v4300 = vunpack.c.l.b16 %v4220
        %v4301 = vunpack.c.h.b16 %v4220
        %v4302 = vunpack.c.l.b16 %v4221
        %v4303 = vunpack.c.h.b16 %v4221
        %v4304 = vunpack.c.l.b16 %v4222
        %v4305 = vunpack.c.h.b16 %v4222
        %v4306 = vunpack.c.l.b16 %v4223
        %v4307 = vunpack.c.h.b16 %v4223
        %v4308 = vunpack.c.l.b16 %v4224
        %v4309 = vunpack.c.h.b16 %v4224
        %v4310 = vunpack.c.l.b16 %v4225
        %v4311 = vunpack.c.h.b16 %v4225
        %v4312 = vunpack.c.l.b16 %v4226
        %v4313 = vunpack.c.h.b16 %v4226
        %v4314 = vunpack.c.l.b16 %v4227
        %v4315 = vunpack.c.h.b16 %v4227
        %v4316 = vunpack.c.l.b16 %v4228
        %v4317 = vunpack.c.h.b16 %v4228
        %v4318 = vunpack.c.l.b16 %v4229
        %v4319 = vunpack.c.h.b16 %v4229
        %v4320 = vunpack.c.l.b16 %v4230
        %v4321 = vunpack.c.h.b16 %v4230
        %v4322 = vunpack.c.l.b16 %v4231
        %v4323 = vunpack.c.h.b16 %v4231
        %v4324 = vunpack.c.l.b16 %v4232
        %v4325 = vunpack.c.h.b16 %v4232
        %v4326 = vunpack.c.l.b16 %v4233
        %v4327 = vunpack.c.h.b16 %v4233
        %v4328 = vunpack.c.l.b16 %v4234
        %v4329 = vunpack.c.h.b16 %v4234
        %v4330 = vunpack.c.l.b16 %v4235
        %v4331 = vunpack.c.h.b16 %v4235
        %v4332 = vunpack.c.l.b16 %v4236
        %v4333 = vunpack.c.h.b16 %v4236
        %v4334 = vunpack.c.l.b16 %v4237
        %v4335 = vunpack.c.h.b16 %v4237
        %v4336 = vunpack.c.l.b16 %v4238
        %v4337 = vunpack.c.h.b16 %v4238
        %v4338 = vunpack.c.l.b16 %v4239
        %v4339 = vunpack.c.h.b16 %v4239
        %v4340 = vunpack.c.l.b16 %v4240
        %v4341 = vunpack.c.h.b16 %v4240
        %v4342 = vunpack.c.l.b16 %v4241
        %v4343 = vunpack.c.h.b16 %v4241
        %v4344 = vpack.c.b16 %v4282, %v4280
        %v4345 = vpack.c.b16 %v4283, %v4281
        %v4346 = vpack.c.b16 %v4286, %v4284
        %v4347 = vpack.c.b16 %v4287, %v4285
        %v4348 = vpack.c.b16 %v4290, %v4288
        %v4349 = vpack.c.b16 %v4291, %v4289
        %v4350 = vpack.c.b16 %v4294, %v4292
        %v4351 = vpack.c.b16 %v4295, %v4293
        %v4352 = vpack.c.b16 %v4298, %v4296
        %v4353 = vpack.c.b16 %v4299, %v4297
        %v4354 = vpack.c.b16 %v4302, %v4300
        %v4355 = vpack.c.b16 %v4303, %v4301
        %v4356 = vpack.c.b16 %v4306, %v4304
        %v4357 = vpack.c.b16 %v4307, %v4305
        %v4358 = vpack.c.b16 %v4310, %v4308
        %v4359 = vpack.c.b16 %v4311, %v4309
        %v4360 = vpack.c.b16 %v4314, %v4312
        %v4361 = vpack.c.b16 %v4315, %v4313
        %v4362 = vpack.c.b16 %v4318, %v4316
        %v4363 = vpack.c.b16 %v4319, %v4317
        %v4364 = vpack.c.b16 %v4322, %v4320
        %v4365 = vpack.c.b16 %v4323, %v4321
        %v4366 = vpack.c.b16 %v4326, %v4324
        %v4367 = vpack.c.b16 %v4327, %v4325
        %v4368 = vpack.c.b16 %v4330, %v4328
        %v4369 = vpack.c.b16 %v4331, %v4329
        %v4370 = vpack.c.b16 %v4334, %v4332
        %v4371 = vpack.c.b16 %v4335, %v4333
        %v4372 = vpack.c.b16 %v4338, %v4336
        %v4373 = vpack.c.b16 %v4339, %v4337
        %v4374 = vpack.c.b16 %v4342, %v4340
        %v4375 = vpack.c.b16 %v4343, %v4341
        %4408 = vmatpush.bf16.msra.mxu0 %v4358
        %4409 = vmatpush.bf16.msra.mxu0 %v4356
        %4410 = vmatpush.bf16.msra.mxu0 %v4354
        %4411 = vmatpush.bf16.msra.mxu0 %v4352
        %4412 = vmatpush.bf16.msra.mxu0 %v4350
        %4413 = vmatpush.bf16.msra.mxu0 %v4348
        %4414 = vmatpush.bf16.msra.mxu0 %v4346
        %4415 = vmatpush.bf16.msra.mxu0 %v4344
        %4416 = vmatmul.bf16.gmra.mxu0 %v4202
        %v4417 = vpop.f32.mrf.mxu0
        %v4418 = vadd.f32 %v4244, %v4417
        %v4419 = vpop.f32.mrf.mxu0
        %v4420 = vadd.f32 %v4244, %v4419
        %4421 = vmatmul.bf16.gmra.mxu0 %v4204
        %v4422 = vpop.f32.mrf.mxu0
        %v4423 = vadd.f32 %v4244, %v4422
        %v4424 = vpop.f32.mrf.mxu0
        %v4425 = vadd.f32 %v4244, %v4424
        %4426 = vmatmul.bf16.gmra.mxu0 %v4206
        %v4427 = vpop.f32.mrf.mxu0
        %v4428 = vadd.f32 %v4244, %v4427
        %v4429 = vpop.f32.mrf.mxu0
        %v4430 = vadd.f32 %v4244, %v4429
        %4431 = vmatmul.bf16.gmra.mxu0 %v4208
        %v4432 = vpop.f32.mrf.mxu0
        %v4433 = vadd.f32 %v4244, %v4432
        %v4434 = vpop.f32.mrf.mxu0
        %v4435 = vadd.f32 %v4244, %v4434
        %4436 = vdwg.mxu0
        %4437 = vmatpush.bf16.msra.mxu0 %v4374
        %4438 = vmatpush.bf16.msra.mxu0 %v4372
        %4439 = vmatpush.bf16.msra.mxu0 %v4370
        %4440 = vmatpush.bf16.msra.mxu0 %v4368
        %4441 = vmatpush.bf16.msra.mxu0 %v4366
        %4442 = vmatpush.bf16.msra.mxu0 %v4364
        %4443 = vmatpush.bf16.msra.mxu0 %v4362
        %4444 = vmatpush.bf16.msra.mxu0 %v4360
        %4445 = vmatmul.bf16.gmra.mxu0 %v4203
        %v4446 = vpop.f32.mrf.mxu0
        %v4447 = vadd.f32 %v4418, %v4446
        %v4448 = vpop.f32.mrf.mxu0
        %v4449 = vadd.f32 %v4420, %v4448
        %4450 = vmatmul.bf16.gmra.mxu0 %v4205
        %v4451 = vpop.f32.mrf.mxu0
        %v4452 = vadd.f32 %v4423, %v4451
        %v4453 = vpop.f32.mrf.mxu0
        %v4454 = vadd.f32 %v4425, %v4453
        %4455 = vmatmul.bf16.gmra.mxu0 %v4207
        %v4456 = vpop.f32.mrf.mxu0
        %v4457 = vadd.f32 %v4428, %v4456
        %v4458 = vpop.f32.mrf.mxu0
        %v4459 = vadd.f32 %v4430, %v4458
        %4460 = vmatmul.bf16.gmra.mxu0 %v4209
        %v4461 = vpop.f32.mrf.mxu0
        %v4462 = vadd.f32 %v4433, %v4461
        %v4463 = vpop.f32.mrf.mxu0
        %v4464 = vadd.f32 %v4435, %v4463
        %4465 = vdwg.mxu0
        %4466 = vmatpush.bf16.msra.mxu0 %v4359
        %4467 = vmatpush.bf16.msra.mxu0 %v4357
        %4468 = vmatpush.bf16.msra.mxu0 %v4355
        %4469 = vmatpush.bf16.msra.mxu0 %v4353
        %4470 = vmatpush.bf16.msra.mxu0 %v4351
        %4471 = vmatpush.bf16.msra.mxu0 %v4349
        %4472 = vmatpush.bf16.msra.mxu0 %v4347
        %4473 = vmatpush.bf16.msra.mxu0 %v4345
        %4474 = vmatmul.bf16.gmra.mxu0 %v4202
        %v4475 = vpop.f32.mrf.mxu0
        %v4476 = vadd.f32 %v4245, %v4475
        %v4477 = vpop.f32.mrf.mxu0
        %v4478 = vadd.f32 %v4245, %v4477
        %4479 = vmatmul.bf16.gmra.mxu0 %v4204
        %v4480 = vpop.f32.mrf.mxu0
        %v4481 = vadd.f32 %v4245, %v4480
        %v4482 = vpop.f32.mrf.mxu0
        %v4483 = vadd.f32 %v4245, %v4482
        %4484 = vmatmul.bf16.gmra.mxu0 %v4206
        %v4485 = vpop.f32.mrf.mxu0
        %v4486 = vadd.f32 %v4245, %v4485
        %v4487 = vpop.f32.mrf.mxu0
        %v4488 = vadd.f32 %v4245, %v4487
        %4489 = vmatmul.bf16.gmra.mxu0 %v4208
        %v4490 = vpop.f32.mrf.mxu0
        %v4491 = vadd.f32 %v4245, %v4490
        %v4492 = vpop.f32.mrf.mxu0
        %v4493 = vadd.f32 %v4245, %v4492
        %4494 = vdwg.mxu0
        %4495 = vmatpush.bf16.msra.mxu0 %v4375
        %4496 = vmatpush.bf16.msra.mxu0 %v4373
        %4497 = vmatpush.bf16.msra.mxu0 %v4371
        %4498 = vmatpush.bf16.msra.mxu0 %v4369
        %4499 = vmatpush.bf16.msra.mxu0 %v4367
        %4500 = vmatpush.bf16.msra.mxu0 %v4365
        %4501 = vmatpush.bf16.msra.mxu0 %v4363
        %4502 = vmatpush.bf16.msra.mxu0 %v4361
        %4503 = vmatmul.bf16.gmra.mxu0 %v4203
        %v4504 = vpop.f32.mrf.mxu0
        %v4505 = vadd.f32 %v4476, %v4504
        %v4506 = vpop.f32.mrf.mxu0
        %v4507 = vadd.f32 %v4478, %v4506
        %4508 = vmatmul.bf16.gmra.mxu0 %v4205
        %v4509 = vpop.f32.mrf.mxu0
        %v4510 = vadd.f32 %v4481, %v4509
        %v4511 = vpop.f32.mrf.mxu0
        %v4512 = vadd.f32 %v4483, %v4511
        %4513 = vmatmul.bf16.gmra.mxu0 %v4207
        %v4514 = vpop.f32.mrf.mxu0
        %v4515 = vadd.f32 %v4486, %v4514
        %v4516 = vpop.f32.mrf.mxu0
        %v4517 = vadd.f32 %v4488, %v4516
        %4518 = vmatmul.bf16.gmra.mxu0 %v4209
        %v4519 = vpop.f32.mrf.mxu0
        %v4520 = vadd.f32 %v4491, %v4519
        %v4521 = vpop.f32.mrf.mxu0
        %v4522 = vadd.f32 %v4493, %v4521
        %4523 = vdwg.mxu0
        %v4524 = vmax.f32 %v4447, 0.0
        %v4525 = vmax.f32 %v4505, 0.0
        %v4526 = vmax.f32 %v4449, 0.0
        %v4527 = vmax.f32 %v4507, 0.0
        %v4528 = vmax.f32 %v4452, 0.0
        %v4529 = vmax.f32 %v4510, 0.0
        %v4530 = vmax.f32 %v4454, 0.0
        %v4531 = vmax.f32 %v4512, 0.0
        %v4532 = vmax.f32 %v4457, 0.0
        %v4533 = vmax.f32 %v4515, 0.0
        %v4534 = vmax.f32 %v4459, 0.0
        %v4535 = vmax.f32 %v4517, 0.0
        %v4536 = vmax.f32 %v4462, 0.0
        %v4537 = vmax.f32 %v4520, 0.0
        %v4538 = vmax.f32 %v4464, 0.0
        %v4539 = vmax.f32 %v4522, 0.0
        %4540 = vst [vmem:[%s584] sm:$0xff] %v4524
        %4541 = vst [vmem:[%s584 + $0x8] sm:$0xff] %v4525
        %4542 = vst [vmem:[%s584 + $0x10] sm:$0xff] %v4526
        %4543 = vst [vmem:[%s584 + $0x18] sm:$0xff] %v4527
        %4544 = vst [vmem:[%s584 + $0x20] sm:$0xff] %v4528
        %4545 = vst [vmem:[%s584 + $0x28] sm:$0xff] %v4529
        %4546 = vst [vmem:[%s584 + $0x30] sm:$0xff] %v4530
        %4547 = vst [vmem:[%s584 + $0x38] sm:$0xff] %v4531
        %4548 = vst [vmem:[%s584 + $0x40] sm:$0xff] %v4532
        %4549 = vst [vmem:[%s584 + $0x48] sm:$0xff] %v4533
        %4550 = vst [vmem:[%s584 + $0x50] sm:$0xff] %v4534
        %4551 = vst [vmem:[%s584 + $0x58] sm:$0xff] %v4535
        %4552 = vst [vmem:[%s584 + $0x60] sm:$0xff] %v4536
        %4553 = vst [vmem:[%s584 + $0x68] sm:$0xff] %v4537
        %4554 = vst [vmem:[%s584 + $0x70] sm:$0xff] %v4538
        %4555 = vst [vmem:[%s584 + $0x78] sm:$0xff] %v4539
        %s4556 = sand.u32 %s334, 1
        %s4557 = scalar_lea.sflag [#allocation5], %s4556
        %s4558 = sand.u32 %s334, 1
        %s4559 = smul.addr %s4558, 128
        %s4560 = scalar_lea.vmem [#allocation17], %s4559
        // Predicated region
        $region109: #{tpu_custom_call.1} parent=71 // pred_check
          %p4561 = pneg %p344
        $region110: #{tpu_custom_call.1} parent=71 // pred_check_branch
          %4563 = sbr.rel (%p4561) target = $region112
        $region111: #{tpu_custom_call.1} parent=71 // pred_region
          %s4564 = smul.u32 8, %s39
          %4566 = vsyncadd %s4557, 0
          %s4567 = smul.addr %s4564, 2
          %s4568 = smul.addr %s38, 32
          %s4569 = sadd.s32 %s4567, %s4568
          %s4570 = smul.addr %s4569, 8
          %s4571 = scalar_lea.hbm %s13, %s4570
          %s4572 = sshll.u32 %s4560, 4
          %s4573 = int_to_ptr.vmem [resolvable:$true] %s4572
          %s4574 = sshll.u32 %s4571, 4
          %s4575 = int_to_ptr.hbm [resolvable:$true] %s4574
          %4580 = dma.vmem_to_hbm [thread:$0]  %s4573, 2048, %s4575, %s4557, 256, 256, 16
        $region112: #{tpu_custom_call.1} parent=71 // pred_fallthru
          _
      $region72: #{tpu_custom_call.1} parent=5 // pred_fallthru
        _
      %p4581 = scmp.le.s32.totalorder 2, %s29
      // Predicated region
      $region113: #{tpu_custom_call.1} parent=5 // pred_check
        %p4582 = pneg %p4581
      $region114: #{tpu_custom_call.1} parent=5 // pred_check_branch
        %4584 = sbr.rel (%p4582) target = $region116
      $region115: #{tpu_custom_call.1} parent=5 // pred_region
        %s4585 = ssub.s32 %s29, 2
        // Predicated region
        $region117: #{tpu_custom_call.1} parent=115 // pred_check
          %p4586 = pneg %p350
        $region118: #{tpu_custom_call.1} parent=115 // pred_check_branch
          %4588 = sbr.rel (%p4586) target = $region120
        $region119: #{tpu_custom_call.1} parent=115 // pred_region
          %s4589 = sand.u32 %s335, 1
          %s4590 = scalar_lea.sflag [#allocation5], %s4589
          %s4591 = sand.u32 %s335, 1
          %s4592 = smul.addr %s4591, 128
          %s4593 = scalar_lea.vmem [#allocation17], %s4592
          %4595 = dma.done %s4590, 2048
        $region120: #{tpu_custom_call.1} parent=115 // pred_fallthru
          _
      $region116: #{tpu_custom_call.1} parent=5 // pred_fallthru
        _
    $region6: #{tpu_custom_call.1} parent=1 // loop_footer
      %s33 = sadd.s32 1, %s29
    $region7: #{tpu_custom_call.1} parent=1 // loop_footer_branch
      %28 = sbr.rel target = $region3
    $region8: #{tpu_custom_call.1} parent=1 // loop_exit
      _
    %4596 = vsyncpa [#allocation4], 1
    %s4597 = scalar_lea.sflag [#allocation4], 1
    %4598 = vsyncpa %s4597, 1
    %4599 = vsyncpa [#allocation7], 1
    %4600 = vsyncpa [#allocation10], 1
    %4601 = vsyncpa [#allocation13], 1
    %4602 = vsyncpa [#allocation16], 1
    %4603 = vsyncpa [#allocation5], 1
    %s4604 = scalar_lea.sflag [#allocation5], 1
    %4605 = vsyncpa %s4604, 1

</llo_original>
